<compile_context>
chip_gen: v6e
topology: v6e:2x2x1
jax: 0.10.0
libtpu: 0.0.40
codegen_flags: <defaults>
</compile_context>

<pallas_src>
import math
import numpy as np

import jax
import jax.numpy as jnp
from jax import lax
from jax.experimental import pallas as pl
from jax.experimental.pallas import tpu as pltpu

D_MODEL = 128
N_LAYERS = 2
MAXLEN = 1024
TILE_N_MAX = 1024    # batch tile upper bound (multiple of 256 for MXU M-dim)
OUT_PAD = 8          # output lanes (>=2, last-dim == full array dim is legal)
LN_EPS = 1e-5


# ------------------------------------------------------------------ glue ----
def positional_encoding_table(d_model=D_MODEL, maxlen=MAXLEN, min_freq=1e-4):
    """Same math as PositionalEncoding._get_pos_enc (float64 numpy -> f32)."""
    position = np.arange(maxlen)
    freqs = min_freq ** (2 * (np.arange(d_model) // 2) / d_model)
    pos_enc = position[:, None] * freqs[None]
    pos_enc[:, ::2] = np.cos(pos_enc[:, ::2])
    pos_enc[:, 1::2] = np.sin(pos_enc[:, 1::2])
    return jnp.asarray(pos_enc, dtype=jnp.float32)


def init_params(key):
    """Deterministic parameter init mimicking torch.nn.Linear defaults."""
    ks = jax.random.split(key, 2 + 4 * N_LAYERS)

    def linear(k, fan_in, fan_out):
        kw, kb = jax.random.split(k)
        bound = 1.0 / math.sqrt(fan_in)
        w = jax.random.uniform(kw, (fan_in, fan_out), jnp.float32, -bound, bound)
        b = jax.random.uniform(kb, (1, fan_out), jnp.float32, -bound, bound)
        return w, b

    w_in, b_in = linear(ks[0], 2, D_MODEL)
    w_out, b_out = linear(ks[1], D_MODEL, 2)

    w1s, b1s, w2s, b2s = [], [], [], []
    for l in range(N_LAYERS):
        w1, b1 = linear(ks[2 + 4 * l], D_MODEL, D_MODEL)
        w2, b2 = linear(ks[3 + 4 * l], D_MODEL, D_MODEL)
        w1s.append(w1); b1s.append(b1); w2s.append(w2); b2s.append(b2)

    params = dict(
        pos_enc=positional_encoding_table(),
        w_in=w_in, b_in=b_in,
        w1=jnp.stack(w1s), b1=jnp.stack(b1s),          # (L, D, D), (L, 1, D)
        w2=jnp.stack(w2s), b2=jnp.stack(b2s),
        gamma=jnp.ones((N_LAYERS, 1, D_MODEL), jnp.float32),
        beta=jnp.zeros((N_LAYERS, 1, D_MODEL), jnp.float32),
        w_out=w_out, b_out=b_out,
    )
    return params


# ---------------------------------------------------------------- kernel ----
def _gelu_tanh(x):
    # tanh-approximate GELU: tanh lowers to the EUP (its own VLIW slot), so it
    # is essentially free next to the MXU matmuls.
    # TODO(synk): the torch module uses exact erf-GELU; tanh approximation is a
    # deliberate small deviation (passes 5e-2 tolerance).
    c = 0.7978845608028654  # sqrt(2/pi)
    return 0.5 * x * (1.0 + jnp.tanh(c * (x + 0.044715 * x * x * x)))


def _layernorm(y, gamma, beta):
    mean = jnp.mean(y, axis=-1, keepdims=True)
    var = jnp.mean((y - mean) ** 2, axis=-1, keepdims=True)
    return (y - mean) * lax.rsqrt(var + LN_EPS) * gamma + beta


def model_kernel(x_ref, t_ref, pos_ref,
                 win_ref, bin_ref,
                 w1_ref, b1_ref, w2_ref, b2_ref, g_ref, beta_ref,
                 wout_ref, bout_ref,
                 o_ref):
    tile_n = x_ref.shape[0]

    # lin_in: degenerate K=2 matmul done on the VPU as two broadcast mul-adds
    #   h[n, d] = x[n,0]*w_in[0,d] + x[n,1]*w_in[1,d] + b_in[d]
    x = x_ref[...]                                          # (T, 2) f32
    h = (x[:, 0:1] * win_ref[0:1, :]
         + x[:, 1:2] * win_ref[1:2, :]
         + bin_ref[...])                                    # (T, D) f32

    # In-kernel pos_enc[t] gather: one-hot (T, MAXLEN) built from an iota
    # compare, multiplied against the VMEM-resident bf16 table on the MXU.
    t_idx = t_ref[...]                                      # (T, 1) int32
    iota = lax.broadcasted_iota(jnp.int32, (tile_n, MAXLEN), 1)
    onehot = jnp.where(iota == t_idx, 1.0, 0.0).astype(jnp.bfloat16)
    emb = jnp.dot(onehot, pos_ref[...],
                  preferred_element_type=jnp.float32)       # (T, D) f32

    for l in range(N_LAYERS):               # static unrolled residual blocks
        z = h + emb                                             # x + emb(t)
        z1 = jnp.dot(z.astype(jnp.bfloat16), w1_ref[l],
                     preferred_element_type=jnp.float32) + b1_ref[l]
        a = _gelu_tanh(z1)                                      # GELU
        z2 = jnp.dot(a.astype(jnp.bfloat16), w2_ref[l],
                     preferred_element_type=jnp.float32) + b2_ref[l]
        h = _layernorm(h + z2, g_ref[l], beta_ref[l])           # norm(x + ..)

    # lin_out: bf16 (T, D) @ (D, 8); cols 2..7 are zero-padded.
    o_ref[...] = (jnp.dot(h.astype(jnp.bfloat16), wout_ref[...],
                          preferred_element_type=jnp.float32)
                  + bout_ref[...])


# --------------------------------------------------------------- wrapper ----
def basic_discrete_time_model(x, t, params, tile_n_max=TILE_N_MAX):
    N = x.shape[0]
    # Adaptive tile: multiple of 256 for the MXU M-dim, capped at TILE_N_MAX.
    tile_n = min(tile_n_max, ((N + 255) // 256) * 256)
    n_tiles = pl.cdiv(N, tile_n)
    n_pad = n_tiles * tile_n

    t2 = t.astype(jnp.int32).reshape(-1, 1)                  # (N, 1)
    if n_pad != N:
        # Only the tiny (N,2) x and (N,1) t are padded (~12 B/row); the big
        # N x 128 emb pad/copy from the previous version is gone (in-kernel
        # gather).  Padded rows stay finite and are sliced off below.
        x = jnp.pad(x, ((0, n_pad - N), (0, 0)))
        t2 = jnp.pad(t2, ((0, n_pad - N), (0, 0)))

    # bf16 weights for the MXU matmuls (f32 accumulation in-kernel).
    pos_bf = params["pos_enc"].astype(jnp.bfloat16)          # (1024, 128)
    w1_bf = params["w1"].astype(jnp.bfloat16)
    w2_bf = params["w2"].astype(jnp.bfloat16)

    # output projection padded to 8 lanes only (16x less writeback than 128).
    w_out_p = jnp.pad(params["w_out"], ((0, 0), (0, OUT_PAD - 2))
                      ).astype(jnp.bfloat16)                 # (128, 8) bf16
    b_out_p = jnp.pad(params["b_out"], ((0, 0), (0, OUT_PAD - 2)))  # (1, 8) f32

    def full(shape):
        ndim = len(shape)
        return pl.BlockSpec(shape, lambda i, _n=ndim: (0,) * _n)

    out = pl.pallas_call(
        model_kernel,
        out_shape=jax.ShapeDtypeStruct((n_pad, OUT_PAD), jnp.float32),
        grid=(n_tiles,),
        in_specs=[
            pl.BlockSpec((tile_n, 2), lambda i: (i, 0)),         # x
            pl.BlockSpec((tile_n, 1), lambda i: (i, 0)),         # t
            full((MAXLEN, D_MODEL)),                             # pos_enc (bf16)
            full((2, D_MODEL)),                                  # w_in
            full((1, D_MODEL)),                                  # b_in
            full((N_LAYERS, D_MODEL, D_MODEL)),                  # w1 (bf16)
            full((N_LAYERS, 1, D_MODEL)),                        # b1
            full((N_LAYERS, D_MODEL, D_MODEL)),                  # w2 (bf16)
            full((N_LAYERS, 1, D_MODEL)),                        # b2
            full((N_LAYERS, 1, D_MODEL)),                        # gamma
            full((N_LAYERS, 1, D_MODEL)),                        # beta
            full((D_MODEL, OUT_PAD)),                            # w_out (bf16, padded)
            full((1, OUT_PAD)),                                  # b_out (padded)
        ],
        out_specs=pl.BlockSpec((tile_n, OUT_PAD), lambda i: (i, 0)),
        compiler_params=pltpu.CompilerParams(
            dimension_semantics=("parallel",)),
    )(x, t2, pos_bf, params["w_in"], params["b_in"],
      w1_bf, params["b1"], w2_bf, params["b2"],
      params["gamma"], params["beta"], w_out_p, b_out_p)

    return out[:N, :2]


# ------------------------------------------------------------- reference ----
def reference_model(x, t, params):
    """Pure-JAX f32 reference matching the torch module exactly."""
    emb = params["pos_enc"][t]
    h = x @ params["w_in"] + params["b_in"]
    for l in range(N_LAYERS):
        z = h + emb
        z1 = z @ params["w1"][l] + params["b1"][l]
        a = 0.5 * z1 * (1.0 + lax.erf(z1 * 0.7071067811865476))   # exact GELU
        z2 = a @ params["w2"][l] + params["b2"][l]
        y = h + z2
        mean = jnp.mean(y, axis=-1, keepdims=True)
        var = jnp.mean((y - mean) ** 2, axis=-1, keepdims=True)
        h = (y - mean) * lax.rsqrt(var + LN_EPS) * params["gamma"][l] \
            + params["beta"][l]
    return h @ params["w_out"] + params["b_out"]


# ------------------------------------------------------------------ main ----
if __name__ == "__main__":
    key = jax.random.PRNGKey(0)
    kp, kx, kt = jax.random.split(key, 3)

    params = init_params(kp)

    # Small primary example (single 256-row tile).
    N = 16
    x = jax.random.normal(kx, (N, 2), jnp.float32)              # 2-D points
    t = jax.random.randint(kt, (N,), 0, MAXLEN, jnp.int32)      # discrete time

    out = jax.block_until_ready(basic_discrete_time_model(x, t, params))
    ref = jax.block_until_ready(reference_model(x, t, params))
    np.testing.assert_allclose(np.asarray(out), np.asarray(ref),
                               rtol=5e-2, atol=5e-2)

    # Multi-tile + ragged-remainder sanity check (3 tiles of 1024).
    kx2, kt2 = jax.random.split(kx)
    N2 = 2500
    x2 = jax.random.normal(kx2, (N2, 2), jnp.float32)
    t2 = jax.random.randint(kt2, (N2,), 0, MAXLEN, jnp.int32)
    out2 = jax.block_until_ready(basic_discrete_time_model(x2, t2, params))
    ref2 = jax.block_until_ready(reference_model(x2, t2, params))
    np.testing.assert_allclose(np.asarray(out2), np.asarray(ref2),
                               rtol=5e-2, atol=5e-2)

    print("KERNEL_OK")
</pallas_src>

<mosaic_0001>
module attributes {stable_mosaic.version = 11 : i64} {
  func.func @model_kernel(%arg0: i32, %arg1: memref<256x2xf32, #tpu.memory_space<vmem>>, %arg2: memref<256x1xi32, #tpu.memory_space<vmem>>, %arg3: memref<1024x128xbf16, #tpu.memory_space<vmem>>, %arg4: memref<2x128xf32, #tpu.memory_space<vmem>>, %arg5: memref<1x128xf32, #tpu.memory_space<vmem>>, %arg6: memref<2x128x128xbf16, #tpu.memory_space<vmem>>, %arg7: memref<2x1x128xf32, #tpu.memory_space<vmem>>, %arg8: memref<2x128x128xbf16, #tpu.memory_space<vmem>>, %arg9: memref<2x1x128xf32, #tpu.memory_space<vmem>>, %arg10: memref<2x1x128xf32, #tpu.memory_space<vmem>>, %arg11: memref<2x1x128xf32, #tpu.memory_space<vmem>>, %arg12: memref<128x8xbf16, #tpu.memory_space<vmem>>, %arg13: memref<1x8xf32, #tpu.memory_space<vmem>>, %arg14: memref<256x8xf32, #tpu.memory_space<vmem>>) attributes {dimension_semantics = [#tpu.dimension_semantics<parallel>], iteration_bounds = array<i64: 1>, scalar_prefetch = 0 : i64, scratch_operands = 0 : i64, tpu.core_type = #tpu.core_type<tc>, window_params = [{transform_indices = @transform_0, window_bounds = array<i64: 256, 2>}, {transform_indices = @transform_1, window_bounds = array<i64: 256, 1>}, {pipeline_mode = #tpu.pipeline_mode<synchronous>, transform_indices = @transform_2, window_bounds = array<i64: 1024, 128>}, {pipeline_mode = #tpu.pipeline_mode<synchronous>, transform_indices = @transform_3, window_bounds = array<i64: 2, 128>}, {pipeline_mode = #tpu.pipeline_mode<synchronous>, transform_indices = @transform_4, window_bounds = array<i64: 1, 128>}, {pipeline_mode = #tpu.pipeline_mode<synchronous>, transform_indices = @transform_5, window_bounds = array<i64: 2, 128, 128>}, {pipeline_mode = #tpu.pipeline_mode<synchronous>, transform_indices = @transform_6, window_bounds = array<i64: 2, 1, 128>}, {pipeline_mode = #tpu.pipeline_mode<synchronous>, transform_indices = @transform_7, window_bounds = array<i64: 2, 128, 128>}, {pipeline_mode = #tpu.pipeline_mode<synchronous>, transform_indices = @transform_8, window_bounds = array<i64: 2, 1, 128>}, {pipeline_mode = #tpu.pipeline_mode<synchronous>, transform_indices = @transform_9, window_bounds = array<i64: 2, 1, 128>}, {pipeline_mode = #tpu.pipeline_mode<synchronous>, transform_indices = @transform_10, window_bounds = array<i64: 2, 1, 128>}, {pipeline_mode = #tpu.pipeline_mode<synchronous>, transform_indices = @transform_11, window_bounds = array<i64: 128, 8>}, {pipeline_mode = #tpu.pipeline_mode<synchronous>, transform_indices = @transform_12, window_bounds = array<i64: 1, 8>}, {transform_indices = @transform_13, window_bounds = array<i64: 256, 8>}]} {
    %c0 = arith.constant 0 : index
    %c0_0 = arith.constant 0 : index
    %0 = vector.load %arg1[%c0, %c0_0] : memref<256x2xf32, #tpu.memory_space<vmem>>, vector<256x2xf32>
    %1 = vector.extract_strided_slice %0 {offsets = [0, 0], sizes = [256, 1], strides = [1, 1]} : vector<256x2xf32> to vector<256x1xf32>
    %c0_1 = arith.constant 0 : index
    %c0_2 = arith.constant 0 : index
    %2 = vector.load %arg4[%c0_1, %c0_2] : memref<2x128xf32, #tpu.memory_space<vmem>>, vector<1x128xf32>
    %3 = vector.broadcast %1 : vector<256x1xf32> to vector<256x128xf32>
    %4 = vector.broadcast %2 : vector<1x128xf32> to vector<256x128xf32>
    %5 = arith.mulf %3, %4 : vector<256x128xf32>
    %6 = vector.extract_strided_slice %0 {offsets = [0, 1], sizes = [256, 1], strides = [1, 1]} : vector<256x2xf32> to vector<256x1xf32>
    %c1 = arith.constant 1 : index
    %c0_3 = arith.constant 0 : index
    %7 = vector.load %arg4[%c1, %c0_3] : memref<2x128xf32, #tpu.memory_space<vmem>>, vector<1x128xf32>
    %8 = vector.broadcast %6 : vector<256x1xf32> to vector<256x128xf32>
    %9 = vector.broadcast %7 : vector<1x128xf32> to vector<256x128xf32>
    %10 = arith.mulf %8, %9 : vector<256x128xf32>
    %11 = arith.addf %5, %10 : vector<256x128xf32>
    %c0_4 = arith.constant 0 : index
    %c0_5 = arith.constant 0 : index
    %12 = vector.load %arg5[%c0_4, %c0_5] : memref<1x128xf32, #tpu.memory_space<vmem>>, vector<1x128xf32>
    %13 = vector.broadcast %12 : vector<1x128xf32> to vector<256x128xf32>
    %14 = arith.addf %11, %13 : vector<256x128xf32>
    %c0_6 = arith.constant 0 : index
    %c0_7 = arith.constant 0 : index
    %15 = vector.load %arg2[%c0_6, %c0_7] : memref<256x1xi32, #tpu.memory_space<vmem>>, vector<256x1xi32>
    %16 = tpu.iota {dimensions = array<i32: 1>} : vector<256x1024xi32>
    %17 = vector.broadcast %15 : vector<256x1xi32> to vector<256x1024xi32>
    %18 = arith.cmpi eq, %16, %17 : vector<256x1024xi32>
    %cst = arith.constant 1.000000e+00 : f32
    %cst_8 = arith.constant 0.000000e+00 : f32
    %19 = vector.broadcast %cst : f32 to vector<256x1024xf32>
    %20 = vector.broadcast %cst_8 : f32 to vector<256x1024xf32>
    %21 = arith.select %18, %19, %20 : vector<256x1024xi1>, vector<256x1024xf32>
    %22 = arith.truncf %21 : vector<256x1024xf32> to vector<256x1024xbf16>
    %c0_9 = arith.constant 0 : index
    %c0_10 = arith.constant 0 : index
    %23 = vector.load %arg3[%c0_9, %c0_10] : memref<1024x128xbf16, #tpu.memory_space<vmem>>, vector<1024x128xbf16>
    %cst_11 = arith.constant dense<0.000000e+00> : vector<256x128xf32>
    %24 = tpu.matmul %22, %23, %cst_11 {dimension_numbers = #tpu.dot_dimension_numbers<[1], [0], [0], [1], [0, 0, 1, 1], [], []>} : vector<256x1024xbf16>, vector<1024x128xbf16>, vector<256x128xf32> -> vector<256x128xf32>
    %25 = arith.addf %14, %24 : vector<256x128xf32>
    %26 = arith.truncf %25 : vector<256x128xf32> to vector<256x128xbf16>
    %c0_12 = arith.constant 0 : index
    %c0_13 = arith.constant 0 : index
    %c0_14 = arith.constant 0 : index
    %27 = vector.load %arg6[%c0_12, %c0_13, %c0_14] : memref<2x128x128xbf16, #tpu.memory_space<vmem>>, vector<1x128x128xbf16>
    %28 = vector.shape_cast %27 : vector<1x128x128xbf16> to vector<128x128xbf16>
    %cst_15 = arith.constant dense<0.000000e+00> : vector<256x128xf32>
    %29 = tpu.matmul %26, %28, %cst_15 {dimension_numbers = #tpu.dot_dimension_numbers<[1], [0], [0], [1], [0, 0, 1, 1], [], []>} : vector<256x128xbf16>, vector<128x128xbf16>, vector<256x128xf32> -> vector<256x128xf32>
    %c0_16 = arith.constant 0 : index
    %c0_17 = arith.constant 0 : index
    %c0_18 = arith.constant 0 : index
    %30 = vector.load %arg7[%c0_16, %c0_17, %c0_18] : memref<2x1x128xf32, #tpu.memory_space<vmem>>, vector<1x1x128xf32>
    %31 = vector.shape_cast %30 : vector<1x1x128xf32> to vector<1x128xf32>
    %32 = vector.broadcast %31 : vector<1x128xf32> to vector<256x128xf32>
    %33 = arith.addf %29, %32 : vector<256x128xf32>
    %cst_19 = arith.constant 5.000000e-01 : f32
    %34 = vector.broadcast %cst_19 : f32 to vector<256x128xf32>
    %35 = arith.mulf %34, %33 : vector<256x128xf32>
    %cst_20 = arith.constant 4.471500e-02 : f32
    %36 = vector.broadcast %cst_20 : f32 to vector<256x128xf32>
    %37 = arith.mulf %36, %33 : vector<256x128xf32>
    %38 = arith.mulf %37, %33 : vector<256x128xf32>
    %39 = arith.mulf %38, %33 : vector<256x128xf32>
    %40 = arith.addf %33, %39 : vector<256x128xf32>
    %cst_21 = arith.constant 0.797884583 : f32
    %41 = vector.broadcast %cst_21 : f32 to vector<256x128xf32>
    %42 = arith.mulf %41, %40 : vector<256x128xf32>
    %43 = math.tanh %42 : vector<256x128xf32>
    %cst_22 = arith.constant 1.000000e+00 : f32
    %44 = vector.broadcast %cst_22 : f32 to vector<256x128xf32>
    %45 = arith.addf %44, %43 : vector<256x128xf32>
    %46 = arith.mulf %35, %45 : vector<256x128xf32>
    %47 = arith.truncf %46 : vector<256x128xf32> to vector<256x128xbf16>
    %c0_23 = arith.constant 0 : index
    %c0_24 = arith.constant 0 : index
    %c0_25 = arith.constant 0 : index
    %48 = vector.load %arg8[%c0_23, %c0_24, %c0_25] : memref<2x128x128xbf16, #tpu.memory_space<vmem>>, vector<1x128x128xbf16>
    %49 = vector.shape_cast %48 : vector<1x128x128xbf16> to vector<128x128xbf16>
    %cst_26 = arith.constant dense<0.000000e+00> : vector<256x128xf32>
    %50 = tpu.matmul %47, %49, %cst_26 {dimension_numbers = #tpu.dot_dimension_numbers<[1], [0], [0], [1], [0, 0, 1, 1], [], []>} : vector<256x128xbf16>, vector<128x128xbf16>, vector<256x128xf32> -> vector<256x128xf32>
    %c0_27 = arith.constant 0 : index
    %c0_28 = arith.constant 0 : index
    %c0_29 = arith.constant 0 : index
    %51 = vector.load %arg9[%c0_27, %c0_28, %c0_29] : memref<2x1x128xf32, #tpu.memory_space<vmem>>, vector<1x1x128xf32>
    %52 = vector.shape_cast %51 : vector<1x1x128xf32> to vector<1x128xf32>
    %53 = vector.broadcast %52 : vector<1x128xf32> to vector<256x128xf32>
    %54 = arith.addf %50, %53 : vector<256x128xf32>
    %55 = arith.addf %14, %54 : vector<256x128xf32>
    %c0_30 = arith.constant 0 : index
    %c0_31 = arith.constant 0 : index
    %c0_32 = arith.constant 0 : index
    %56 = vector.load %arg10[%c0_30, %c0_31, %c0_32] : memref<2x1x128xf32, #tpu.memory_space<vmem>>, vector<1x1x128xf32>
    %57 = vector.shape_cast %56 : vector<1x1x128xf32> to vector<1x128xf32>
    %c0_33 = arith.constant 0 : index
    %c0_34 = arith.constant 0 : index
    %c0_35 = arith.constant 0 : index
    %58 = vector.load %arg11[%c0_33, %c0_34, %c0_35] : memref<2x1x128xf32, #tpu.memory_space<vmem>>, vector<1x1x128xf32>
    %59 = vector.shape_cast %58 : vector<1x1x128xf32> to vector<1x128xf32>
    %cst_36 = arith.constant dense<0.000000e+00> : vector<256xf32>
    %60 = vector.multi_reduction <add>, %55, %cst_36 [1] : vector<256x128xf32> to vector<256xf32>
    %61 = vector.shape_cast %60 : vector<256xf32> to vector<256x1xf32>
    %cst_37 = arith.constant 1.280000e+02 : f32
    %62 = vector.broadcast %cst_37 : f32 to vector<256x1xf32>
    %63 = arith.divf %61, %62 : vector<256x1xf32>
    %64 = vector.broadcast %63 : vector<256x1xf32> to vector<256x128xf32>
    %65 = arith.subf %55, %64 : vector<256x128xf32>
    %66 = arith.mulf %65, %65 : vector<256x128xf32>
    %cst_38 = arith.constant dense<0.000000e+00> : vector<256xf32>
    %67 = vector.multi_reduction <add>, %66, %cst_38 [1] : vector<256x128xf32> to vector<256xf32>
    %68 = vector.shape_cast %67 : vector<256xf32> to vector<256x1xf32>
    %cst_39 = arith.constant 1.280000e+02 : f32
    %69 = vector.broadcast %cst_39 : f32 to vector<256x1xf32>
    %70 = arith.divf %68, %69 : vector<256x1xf32>
    %71 = vector.broadcast %63 : vector<256x1xf32> to vector<256x128xf32>
    %72 = arith.subf %55, %71 : vector<256x128xf32>
    %cst_40 = arith.constant 9.99999974E-6 : f32
    %73 = vector.broadcast %cst_40 : f32 to vector<256x1xf32>
    %74 = arith.addf %70, %73 : vector<256x1xf32>
    %75 = math.rsqrt %74 : vector<256x1xf32>
    %76 = vector.broadcast %75 : vector<256x1xf32> to vector<256x128xf32>
    %77 = arith.mulf %72, %76 : vector<256x128xf32>
    %78 = vector.broadcast %57 : vector<1x128xf32> to vector<256x128xf32>
    %79 = arith.mulf %77, %78 : vector<256x128xf32>
    %80 = vector.broadcast %59 : vector<1x128xf32> to vector<256x128xf32>
    %81 = arith.addf %79, %80 : vector<256x128xf32>
    %82 = arith.addf %81, %24 : vector<256x128xf32>
    %83 = arith.truncf %82 : vector<256x128xf32> to vector<256x128xbf16>
    %c1_41 = arith.constant 1 : index
    %c0_42 = arith.constant 0 : index
    %c0_43 = arith.constant 0 : index
    %84 = vector.load %arg6[%c1_41, %c0_42, %c0_43] : memref<2x128x128xbf16, #tpu.memory_space<vmem>>, vector<1x128x128xbf16>
    %85 = vector.shape_cast %84 : vector<1x128x128xbf16> to vector<128x128xbf16>
    %cst_44 = arith.constant dense<0.000000e+00> : vector<256x128xf32>
    %86 = tpu.matmul %83, %85, %cst_44 {dimension_numbers = #tpu.dot_dimension_numbers<[1], [0], [0], [1], [0, 0, 1, 1], [], []>} : vector<256x128xbf16>, vector<128x128xbf16>, vector<256x128xf32> -> vector<256x128xf32>
    %c1_45 = arith.constant 1 : index
    %c0_46 = arith.constant 0 : index
    %c0_47 = arith.constant 0 : index
    %87 = vector.load %arg7[%c1_45, %c0_46, %c0_47] : memref<2x1x128xf32, #tpu.memory_space<vmem>>, vector<1x1x128xf32>
    %88 = vector.shape_cast %87 : vector<1x1x128xf32> to vector<1x128xf32>
    %89 = vector.broadcast %88 : vector<1x128xf32> to vector<256x128xf32>
    %90 = arith.addf %86, %89 : vector<256x128xf32>
    %cst_48 = arith.constant 5.000000e-01 : f32
    %91 = vector.broadcast %cst_48 : f32 to vector<256x128xf32>
    %92 = arith.mulf %91, %90 : vector<256x128xf32>
    %cst_49 = arith.constant 4.471500e-02 : f32
    %93 = vector.broadcast %cst_49 : f32 to vector<256x128xf32>
    %94 = arith.mulf %93, %90 : vector<256x128xf32>
    %95 = arith.mulf %94, %90 : vector<256x128xf32>
    %96 = arith.mulf %95, %90 : vector<256x128xf32>
    %97 = arith.addf %90, %96 : vector<256x128xf32>
    %cst_50 = arith.constant 0.797884583 : f32
    %98 = vector.broadcast %cst_50 : f32 to vector<256x128xf32>
    %99 = arith.mulf %98, %97 : vector<256x128xf32>
    %100 = math.tanh %99 : vector<256x128xf32>
    %cst_51 = arith.constant 1.000000e+00 : f32
    %101 = vector.broadcast %cst_51 : f32 to vector<256x128xf32>
    %102 = arith.addf %101, %100 : vector<256x128xf32>
    %103 = arith.mulf %92, %102 : vector<256x128xf32>
    %104 = arith.truncf %103 : vector<256x128xf32> to vector<256x128xbf16>
    %c1_52 = arith.constant 1 : index
    %c0_53 = arith.constant 0 : index
    %c0_54 = arith.constant 0 : index
    %105 = vector.load %arg8[%c1_52, %c0_53, %c0_54] : memref<2x128x128xbf16, #tpu.memory_space<vmem>>, vector<1x128x128xbf16>
    %106 = vector.shape_cast %105 : vector<1x128x128xbf16> to vector<128x128xbf16>
    %cst_55 = arith.constant dense<0.000000e+00> : vector<256x128xf32>
    %107 = tpu.matmul %104, %106, %cst_55 {dimension_numbers = #tpu.dot_dimension_numbers<[1], [0], [0], [1], [0, 0, 1, 1], [], []>} : vector<256x128xbf16>, vector<128x128xbf16>, vector<256x128xf32> -> vector<256x128xf32>
    %c1_56 = arith.constant 1 : index
    %c0_57 = arith.constant 0 : index
    %c0_58 = arith.constant 0 : index
    %108 = vector.load %arg9[%c1_56, %c0_57, %c0_58] : memref<2x1x128xf32, #tpu.memory_space<vmem>>, vector<1x1x128xf32>
    %109 = vector.shape_cast %108 : vector<1x1x128xf32> to vector<1x128xf32>
    %110 = vector.broadcast %109 : vector<1x128xf32> to vector<256x128xf32>
    %111 = arith.addf %107, %110 : vector<256x128xf32>
    %112 = arith.addf %81, %111 : vector<256x128xf32>
    %c1_59 = arith.constant 1 : index
    %c0_60 = arith.constant 0 : index
    %c0_61 = arith.constant 0 : index
    %113 = vector.load %arg10[%c1_59, %c0_60, %c0_61] : memref<2x1x128xf32, #tpu.memory_space<vmem>>, vector<1x1x128xf32>
    %114 = vector.shape_cast %113 : vector<1x1x128xf32> to vector<1x128xf32>
    %c1_62 = arith.constant 1 : index
    %c0_63 = arith.constant 0 : index
    %c0_64 = arith.constant 0 : index
    %115 = vector.load %arg11[%c1_62, %c0_63, %c0_64] : memref<2x1x128xf32, #tpu.memory_space<vmem>>, vector<1x1x128xf32>
    %116 = vector.shape_cast %115 : vector<1x1x128xf32> to vector<1x128xf32>
    %cst_65 = arith.constant dense<0.000000e+00> : vector<256xf32>
    %117 = vector.multi_reduction <add>, %112, %cst_65 [1] : vector<256x128xf32> to vector<256xf32>
    %118 = vector.shape_cast %117 : vector<256xf32> to vector<256x1xf32>
    %cst_66 = arith.constant 1.280000e+02 : f32
    %119 = vector.broadcast %cst_66 : f32 to vector<256x1xf32>
    %120 = arith.divf %118, %119 : vector<256x1xf32>
    %121 = vector.broadcast %120 : vector<256x1xf32> to vector<256x128xf32>
    %122 = arith.subf %112, %121 : vector<256x128xf32>
    %123 = arith.mulf %122, %122 : vector<256x128xf32>
    %cst_67 = arith.constant dense<0.000000e+00> : vector<256xf32>
    %124 = vector.multi_reduction <add>, %123, %cst_67 [1] : vector<256x128xf32> to vector<256xf32>
    %125 = vector.shape_cast %124 : vector<256xf32> to vector<256x1xf32>
    %cst_68 = arith.constant 1.280000e+02 : f32
    %126 = vector.broadcast %cst_68 : f32 to vector<256x1xf32>
    %127 = arith.divf %125, %126 : vector<256x1xf32>
    %128 = vector.broadcast %120 : vector<256x1xf32> to vector<256x128xf32>
    %129 = arith.subf %112, %128 : vector<256x128xf32>
    %cst_69 = arith.constant 9.99999974E-6 : f32
    %130 = vector.broadcast %cst_69 : f32 to vector<256x1xf32>
    %131 = arith.addf %127, %130 : vector<256x1xf32>
    %132 = math.rsqrt %131 : vector<256x1xf32>
    %133 = vector.broadcast %132 : vector<256x1xf32> to vector<256x128xf32>
    %134 = arith.mulf %129, %133 : vector<256x128xf32>
    %135 = vector.broadcast %114 : vector<1x128xf32> to vector<256x128xf32>
    %136 = arith.mulf %134, %135 : vector<256x128xf32>
    %137 = vector.broadcast %116 : vector<1x128xf32> to vector<256x128xf32>
    %138 = arith.addf %136, %137 : vector<256x128xf32>
    %139 = arith.truncf %138 : vector<256x128xf32> to vector<256x128xbf16>
    %c0_70 = arith.constant 0 : index
    %c0_71 = arith.constant 0 : index
    %140 = vector.load %arg12[%c0_70, %c0_71] : memref<128x8xbf16, #tpu.memory_space<vmem>>, vector<128x8xbf16>
    %cst_72 = arith.constant dense<0.000000e+00> : vector<256x8xf32>
    %141 = tpu.matmul %139, %140, %cst_72 {dimension_numbers = #tpu.dot_dimension_numbers<[1], [0], [0], [1], [0, 0, 1, 1], [], []>} : vector<256x128xbf16>, vector<128x8xbf16>, vector<256x8xf32> -> vector<256x8xf32>
    %c0_73 = arith.constant 0 : index
    %c0_74 = arith.constant 0 : index
    %142 = vector.load %arg13[%c0_73, %c0_74] : memref<1x8xf32, #tpu.memory_space<vmem>>, vector<1x8xf32>
    %143 = vector.broadcast %142 : vector<1x8xf32> to vector<256x8xf32>
    %144 = arith.addf %141, %143 : vector<256x8xf32>
    %c0_75 = arith.constant 0 : index
    %c0_76 = arith.constant 0 : index
    %145 = vector.load %arg14[%c0_75, %c0_76] : memref<256x8xf32, #tpu.memory_space<vmem>>, vector<256x8xf32>
    tpu.vector_store %arg14[%c0_75, %c0_76], %144 {strides = array<i32>} : memref<256x8xf32, #tpu.memory_space<vmem>>, vector<256x8xf32>,
    return
  }
  func.func @transform_0(%arg0: i32) -> (i32, i32) {
    %c0_i32 = arith.constant 0 : i32
    %c0_i32_0 = arith.constant 0 : i32
    return %arg0, %c0_i32 : i32, i32
  }
  func.func @transform_1(%arg0: i32) -> (i32, i32) {
    %c0_i32 = arith.constant 0 : i32
    %c0_i32_0 = arith.constant 0 : i32
    return %arg0, %c0_i32 : i32, i32
  }
  func.func @transform_2(%arg0: i32) -> (i32, i32) {
    %c0_i32 = arith.constant 0 : i32
    %c0_i32_0 = arith.constant 0 : i32
    %c0_i32_1 = arith.constant 0 : i32
    return %c0_i32, %c0_i32_0 : i32, i32
  }
  func.func @transform_3(%arg0: i32) -> (i32, i32) {
    %c0_i32 = arith.constant 0 : i32
    %c0_i32_0 = arith.constant 0 : i32
    %c0_i32_1 = arith.constant 0 : i32
    return %c0_i32, %c0_i32_0 : i32, i32
  }
  func.func @transform_4(%arg0: i32) -> (i32, i32) {
    %c0_i32 = arith.constant 0 : i32
    %c0_i32_0 = arith.constant 0 : i32
    %c0_i32_1 = arith.constant 0 : i32
    return %c0_i32, %c0_i32_0 : i32, i32
  }
  func.func @transform_5(%arg0: i32) -> (i32, i32, i32) {
    %c0_i32 = arith.constant 0 : i32
    %c0_i32_0 = arith.constant 0 : i32
    %c0_i32_1 = arith.constant 0 : i32
    %c0_i32_2 = arith.constant 0 : i32
    return %c0_i32, %c0_i32_0, %c0_i32_1 : i32, i32, i32
  }
  func.func @transform_6(%arg0: i32) -> (i32, i32, i32) {
    %c0_i32 = arith.constant 0 : i32
    %c0_i32_0 = arith.constant 0 : i32
    %c0_i32_1 = arith.constant 0 : i32
    %c0_i32_2 = arith.constant 0 : i32
    return %c0_i32, %c0_i32_0, %c0_i32_1 : i32, i32, i32
  }
  func.func @transform_7(%arg0: i32) -> (i32, i32, i32) {
    %c0_i32 = arith.constant 0 : i32
    %c0_i32_0 = arith.constant 0 : i32
    %c0_i32_1 = arith.constant 0 : i32
    %c0_i32_2 = arith.constant 0 : i32
    return %c0_i32, %c0_i32_0, %c0_i32_1 : i32, i32, i32
  }
  func.func @transform_8(%arg0: i32) -> (i32, i32, i32) {
    %c0_i32 = arith.constant 0 : i32
    %c0_i32_0 = arith.constant 0 : i32
    %c0_i32_1 = arith.constant 0 : i32
    %c0_i32_2 = arith.constant 0 : i32
    return %c0_i32, %c0_i32_0, %c0_i32_1 : i32, i32, i32
  }
  func.func @transform_9(%arg0: i32) -> (i32, i32, i32) {
    %c0_i32 = arith.constant 0 : i32
    %c0_i32_0 = arith.constant 0 : i32
    %c0_i32_1 = arith.constant 0 : i32
    %c0_i32_2 = arith.constant 0 : i32
    return %c0_i32, %c0_i32_0, %c0_i32_1 : i32, i32, i32
  }
  func.func @transform_10(%arg0: i32) -> (i32, i32, i32) {
    %c0_i32 = arith.constant 0 : i32
    %c0_i32_0 = arith.constant 0 : i32
    %c0_i32_1 = arith.constant 0 : i32
    %c0_i32_2 = arith.constant 0 : i32
    return %c0_i32, %c0_i32_0, %c0_i32_1 : i32, i32, i32
  }
  func.func @transform_11(%arg0: i32) -> (i32, i32) {
    %c0_i32 = arith.constant 0 : i32
    %c0_i32_0 = arith.constant 0 : i32
    %c0_i32_1 = arith.constant 0 : i32
    return %c0_i32, %c0_i32_0 : i32, i32
  }
  func.func @transform_12(%arg0: i32) -> (i32, i32) {
    %c0_i32 = arith.constant 0 : i32
    %c0_i32_0 = arith.constant 0 : i32
    %c0_i32_1 = arith.constant 0 : i32
    return %c0_i32, %c0_i32_0 : i32, i32
  }
  func.func @transform_13(%arg0: i32) -> (i32, i32) {
    %c0_i32 = arith.constant 0 : i32
    %c0_i32_0 = arith.constant 0 : i32
    return %arg0, %c0_i32 : i32, i32
  }
}

</mosaic_0001>

<llo_original>
// kernel: tpu_custom_call.1
$region0: #{tpu_custom_call.1}
  #allocation0 [shape = 'u32[]', space=smem, size = 0x4, offset = 0x4, fixed_abs, tag = 'smem constant byte address 0x4 - core index']
  #allocation1 [shape = 'u32[144,128]{1,0:T(1,128)}', space=vmem, size = 0x12000, scoped, tag = 'internal scratch']
  %s0 = inlined_call_operand.vmem [shape: f32[256,2], index: 0, kind: input, shape index: {}]
  %s1 = inlined_call_operand.vmem [shape: s32[256,1], index: 1, kind: input, shape index: {}]
  %s2 = inlined_call_operand.vmem [shape: bf16[1024,128], index: 2, kind: input, shape index: {}]
  %s3 = inlined_call_operand.vmem [shape: f32[2,128], index: 3, kind: input, shape index: {}]
  %s4 = inlined_call_operand.vmem [shape: f32[1,128], index: 4, kind: input, shape index: {}]
  %s5 = inlined_call_operand.hbm [shape: bf16[2,128,128], index: 5, kind: input, shape index: {}]
  %s6 = inlined_call_operand.vmem [shape: f32[2,1,128], index: 6, kind: input, shape index: {}]
  %s7 = inlined_call_operand.hbm [shape: bf16[2,128,128], index: 7, kind: input, shape index: {}]
  %s8 = inlined_call_operand.vmem [shape: f32[2,1,128], index: 8, kind: input, shape index: {}]
  %s9 = inlined_call_operand.vmem [shape: f32[2,1,128], index: 9, kind: input, shape index: {}]
  %s10 = inlined_call_operand.vmem [shape: f32[2,1,128], index: 10, kind: input, shape index: {}]
  %s11 = inlined_call_operand.vmem [shape: bf16[128,8], index: 11, kind: input, shape index: {}]
  %s12 = inlined_call_operand.vmem [shape: f32[1,8], index: 12, kind: input, shape index: {}]
  %s13 = inlined_call_operand.vmem [shape: f32[256,8], index: 13, kind: output, shape index: {}]
  %s14 = sld [smem:[#allocation0]]
  $region70: #{tpu_custom_call.1} parent=0
    _
  %s16 = ssub.s32 1, %s14
  %s17 = scalar_select 0, %s16, %s14
  $region1: #{tpu_custom_call.1} parent=0
    #allocation2 [shape = 'u8[65536]{0}', space=vmem, size = 0x10000, scoped, tag = 'input window, operand 5, single buffered']
    #allocation3 [shape = 's32[1]{0}', space=sflag, size = 0x4, scoped, tag = 'scoped memory for tpu_custom_call.1']
    #allocation4 [shape = 'u8[65536]{0}', space=vmem, size = 0x10000, scoped, tag = 'input window, operand 7, single buffered']
    #allocation5 [shape = 's32[1]{0}', space=sflag, size = 0x4, scoped, tag = 'scoped memory for tpu_custom_call.1']
    %18 = vsyncpa [#allocation3], 0
    %19 = vsyncpa [#allocation5], 0
    // Predicated region
    $region2: #{tpu_custom_call.1} parent=1 // pred_check
      _
    $region3: #{tpu_custom_call.1} parent=1 // pred_check_branch
      %21 = sbr.rel (0) target = $region5
    $region4: #{tpu_custom_call.1} parent=1 // pred_region
      _
    $region5: #{tpu_custom_call.1} parent=1 // pred_fallthru
      _
    // Predicated region
    $region6: #{tpu_custom_call.1} parent=1 // pred_check
      _
    $region7: #{tpu_custom_call.1} parent=1 // pred_check_branch
      %23 = sbr.rel (0) target = $region9
    $region8: #{tpu_custom_call.1} parent=1 // pred_region
      _
    $region9: #{tpu_custom_call.1} parent=1 // pred_fallthru
      _
    // Predicated region
    $region10: #{tpu_custom_call.1} parent=1 // pred_check
      _
    $region11: #{tpu_custom_call.1} parent=1 // pred_check_branch
      %25 = sbr.rel (0) target = $region13
    $region12: #{tpu_custom_call.1} parent=1 // pred_region
      _
    $region13: #{tpu_custom_call.1} parent=1 // pred_fallthru
      _
    // Predicated region
    $region14: #{tpu_custom_call.1} parent=1 // pred_check
      _
    $region15: #{tpu_custom_call.1} parent=1 // pred_check_branch
      %27 = sbr.rel (0) target = $region17
    $region16: #{tpu_custom_call.1} parent=1 // pred_region
      _
    $region17: #{tpu_custom_call.1} parent=1 // pred_fallthru
      _
    // Predicated region
    $region18: #{tpu_custom_call.1} parent=1 // pred_check
      _
    $region19: #{tpu_custom_call.1} parent=1 // pred_check_branch
      %29 = sbr.rel (0) target = $region21
    $region20: #{tpu_custom_call.1} parent=1 // pred_region
      _
    $region21: #{tpu_custom_call.1} parent=1 // pred_fallthru
      _
    // Predicated region
    $region22: #{tpu_custom_call.1} parent=1 // pred_check
      _
    $region23: #{tpu_custom_call.1} parent=1 // pred_check_branch
      %31 = sbr.rel (0) target = $region25
    $region24: #{tpu_custom_call.1} parent=1 // pred_region
      %s33 = ssub.s32 2048, 2048
      %34 = vsyncadd [#allocation3], %s33
      %s35 = sshll.u32 [#allocation2], 4
      %s36 = int_to_ptr.vmem [resolvable:$true] %s35
      %41 = dma.hbm_to_vmem [thread:$0]  %s5, 2048, %s36, [#allocation3], 64, 64, 4
    $region25: #{tpu_custom_call.1} parent=1 // pred_fallthru
      _
    // Predicated region
    $region26: #{tpu_custom_call.1} parent=1 // pred_check
      _
    $region27: #{tpu_custom_call.1} parent=1 // pred_check_branch
      %43 = sbr.rel (0) target = $region29
    $region28: #{tpu_custom_call.1} parent=1 // pred_region
      _
    $region29: #{tpu_custom_call.1} parent=1 // pred_fallthru
      _
    // Predicated region
    $region30: #{tpu_custom_call.1} parent=1 // pred_check
      _
    $region31: #{tpu_custom_call.1} parent=1 // pred_check_branch
      %45 = sbr.rel (0) target = $region33
    $region32: #{tpu_custom_call.1} parent=1 // pred_region
      %s47 = ssub.s32 2048, 2048
      %48 = vsyncadd [#allocation5], %s47
      %s49 = sshll.u32 [#allocation4], 4
      %s50 = int_to_ptr.vmem [resolvable:$true] %s49
      %55 = dma.hbm_to_vmem [thread:$0]  %s7, 2048, %s50, [#allocation5], 64, 64, 4
    $region33: #{tpu_custom_call.1} parent=1 // pred_fallthru
      _
    // Predicated region
    $region34: #{tpu_custom_call.1} parent=1 // pred_check
      _
    $region35: #{tpu_custom_call.1} parent=1 // pred_check_branch
      %57 = sbr.rel (0) target = $region37
    $region36: #{tpu_custom_call.1} parent=1 // pred_region
      _
    $region37: #{tpu_custom_call.1} parent=1 // pred_fallthru
      _
    // Predicated region
    $region38: #{tpu_custom_call.1} parent=1 // pred_check
      _
    $region39: #{tpu_custom_call.1} parent=1 // pred_check_branch
      %59 = sbr.rel (0) target = $region41
    $region40: #{tpu_custom_call.1} parent=1 // pred_region
      _
    $region41: #{tpu_custom_call.1} parent=1 // pred_fallthru
      _
    // Predicated region
    $region42: #{tpu_custom_call.1} parent=1 // pred_check
      _
    $region43: #{tpu_custom_call.1} parent=1 // pred_check_branch
      %61 = sbr.rel (0) target = $region45
    $region44: #{tpu_custom_call.1} parent=1 // pred_region
      _
    $region45: #{tpu_custom_call.1} parent=1 // pred_fallthru
      _
    // Predicated region
    $region46: #{tpu_custom_call.1} parent=1 // pred_check
      _
    $region47: #{tpu_custom_call.1} parent=1 // pred_check_branch
      %63 = sbr.rel (0) target = $region49
    $region48: #{tpu_custom_call.1} parent=1 // pred_region
      _
    $region49: #{tpu_custom_call.1} parent=1 // pred_fallthru
      _
    // Predicated region
    $region50: #{tpu_custom_call.1} parent=1 // pred_check
      _
    $region51: #{tpu_custom_call.1} parent=1 // pred_check_branch
      %65 = sbr.rel (0) target = $region53
    $region52: #{tpu_custom_call.1} parent=1 // pred_region
      _
    $region53: #{tpu_custom_call.1} parent=1 // pred_fallthru
      _
    // Predicated region
    $region54: #{tpu_custom_call.1} parent=1 // pred_check
      _
    $region55: #{tpu_custom_call.1} parent=1 // pred_check_branch
      %67 = sbr.rel (0) target = $region57
    $region56: #{tpu_custom_call.1} parent=1 // pred_region
      %68 = dma.done [#allocation3], 2048
    $region57: #{tpu_custom_call.1} parent=1 // pred_fallthru
      _
    // Predicated region
    $region58: #{tpu_custom_call.1} parent=1 // pred_check
      _
    $region59: #{tpu_custom_call.1} parent=1 // pred_check_branch
      %70 = sbr.rel (0) target = $region61
    $region60: #{tpu_custom_call.1} parent=1 // pred_region
      %71 = dma.done [#allocation5], 2048
    $region61: #{tpu_custom_call.1} parent=1 // pred_fallthru
      _
    %v73 = vld [vmem:[%s0] sm:$0xff]
    %v74 = vld [vmem:[%s0 + $0x8] sm:$0xff]
    %v75 = vld [vmem:[%s0 + $0x10] sm:$0xff]
    %v76 = vld [vmem:[%s0 + $0x18] sm:$0xff]
    %v77 = vld [vmem:[%s0 + $0x20] sm:$0xff]
    %v78 = vld [vmem:[%s0 + $0x28] sm:$0xff]
    %v79 = vld [vmem:[%s0 + $0x30] sm:$0xff]
    %v80 = vld [vmem:[%s0 + $0x38] sm:$0xff]
    %v81 = vld [vmem:[%s0 + $0x40] sm:$0xff]
    %v82 = vld [vmem:[%s0 + $0x48] sm:$0xff]
    %v83 = vld [vmem:[%s0 + $0x50] sm:$0xff]
    %v84 = vld [vmem:[%s0 + $0x58] sm:$0xff]
    %v85 = vld [vmem:[%s0 + $0x60] sm:$0xff]
    %v86 = vld [vmem:[%s0 + $0x68] sm:$0xff]
    %v87 = vld [vmem:[%s0 + $0x70] sm:$0xff]
    %v88 = vld [vmem:[%s0 + $0x78] sm:$0xff]
    %v89 = vld [vmem:[%s0 + $0x80] sm:$0xff]
    %v90 = vld [vmem:[%s0 + $0x88] sm:$0xff]
    %v91 = vld [vmem:[%s0 + $0x90] sm:$0xff]
    %v92 = vld [vmem:[%s0 + $0x98] sm:$0xff]
    %v93 = vld [vmem:[%s0 + $0xa0] sm:$0xff]
    %v94 = vld [vmem:[%s0 + $0xa8] sm:$0xff]
    %v95 = vld [vmem:[%s0 + $0xb0] sm:$0xff]
    %v96 = vld [vmem:[%s0 + $0xb8] sm:$0xff]
    %v97 = vld [vmem:[%s0 + $0xc0] sm:$0xff]
    %v98 = vld [vmem:[%s0 + $0xc8] sm:$0xff]
    %v99 = vld [vmem:[%s0 + $0xd0] sm:$0xff]
    %v100 = vld [vmem:[%s0 + $0xd8] sm:$0xff]
    %v101 = vld [vmem:[%s0 + $0xe0] sm:$0xff]
    %v102 = vld [vmem:[%s0 + $0xe8] sm:$0xff]
    %v103 = vld [vmem:[%s0 + $0xf0] sm:$0xff]
    %v104 = vld [vmem:[%s0 + $0xf8] sm:$0xff]
    %v105 = vld [vmem:[%s3] sm:$0x1]
    %107 = vset.pattern.permute.xlu0 0
    %108 = vperm.xlu0 %107, %v73
    %v109 = vpop.permute.xlu0 %108
    %112 = vset.pattern.permute.xlu0 0
    %113 = vperm.xlu0 %112, %v74
    %v114 = vpop.permute.xlu0 %113
    %117 = vset.pattern.permute.xlu0 0
    %118 = vperm.xlu0 %117, %v75
    %v119 = vpop.permute.xlu0 %118
    %122 = vset.pattern.permute.xlu0 0
    %123 = vperm.xlu0 %122, %v76
    %v124 = vpop.permute.xlu0 %123
    %127 = vset.pattern.permute.xlu0 0
    %128 = vperm.xlu0 %127, %v77
    %v129 = vpop.permute.xlu0 %128
    %132 = vset.pattern.permute.xlu0 0
    %133 = vperm.xlu0 %132, %v78
    %v134 = vpop.permute.xlu0 %133
    %137 = vset.pattern.permute.xlu0 0
    %138 = vperm.xlu0 %137, %v79
    %v139 = vpop.permute.xlu0 %138
    %142 = vset.pattern.permute.xlu0 0
    %143 = vperm.xlu0 %142, %v80
    %v144 = vpop.permute.xlu0 %143
    %147 = vset.pattern.permute.xlu0 0
    %148 = vperm.xlu0 %147, %v81
    %v149 = vpop.permute.xlu0 %148
    %152 = vset.pattern.permute.xlu0 0
    %153 = vperm.xlu0 %152, %v82
    %v154 = vpop.permute.xlu0 %153
    %157 = vset.pattern.permute.xlu0 0
    %158 = vperm.xlu0 %157, %v83
    %v159 = vpop.permute.xlu0 %158
    %162 = vset.pattern.permute.xlu0 0
    %163 = vperm.xlu0 %162, %v84
    %v164 = vpop.permute.xlu0 %163
    %167 = vset.pattern.permute.xlu0 0
    %168 = vperm.xlu0 %167, %v85
    %v169 = vpop.permute.xlu0 %168
    %172 = vset.pattern.permute.xlu0 0
    %173 = vperm.xlu0 %172, %v86
    %v174 = vpop.permute.xlu0 %173
    %177 = vset.pattern.permute.xlu0 0
    %178 = vperm.xlu0 %177, %v87
    %v179 = vpop.permute.xlu0 %178
    %182 = vset.pattern.permute.xlu0 0
    %183 = vperm.xlu0 %182, %v88
    %v184 = vpop.permute.xlu0 %183
    %187 = vset.pattern.permute.xlu0 0
    %188 = vperm.xlu0 %187, %v89
    %v189 = vpop.permute.xlu0 %188
    %192 = vset.pattern.permute.xlu0 0
    %193 = vperm.xlu0 %192, %v90
    %v194 = vpop.permute.xlu0 %193
    %197 = vset.pattern.permute.xlu0 0
    %198 = vperm.xlu0 %197, %v91
    %v199 = vpop.permute.xlu0 %198
    %202 = vset.pattern.permute.xlu0 0
    %203 = vperm.xlu0 %202, %v92
    %v204 = vpop.permute.xlu0 %203
    %207 = vset.pattern.permute.xlu0 0
    %208 = vperm.xlu0 %207, %v93
    %v209 = vpop.permute.xlu0 %208
    %212 = vset.pattern.permute.xlu0 0
    %213 = vperm.xlu0 %212, %v94
    %v214 = vpop.permute.xlu0 %213
    %217 = vset.pattern.permute.xlu0 0
    %218 = vperm.xlu0 %217, %v95
    %v219 = vpop.permute.xlu0 %218
    %222 = vset.pattern.permute.xlu0 0
    %223 = vperm.xlu0 %222, %v96
    %v224 = vpop.permute.xlu0 %223
    %227 = vset.pattern.permute.xlu0 0
    %228 = vperm.xlu0 %227, %v97
    %v229 = vpop.permute.xlu0 %228
    %232 = vset.pattern.permute.xlu0 0
    %233 = vperm.xlu0 %232, %v98
    %v234 = vpop.permute.xlu0 %233
    %237 = vset.pattern.permute.xlu0 0
    %238 = vperm.xlu0 %237, %v99
    %v239 = vpop.permute.xlu0 %238
    %242 = vset.pattern.permute.xlu0 0
    %243 = vperm.xlu0 %242, %v100
    %v244 = vpop.permute.xlu0 %243
    %247 = vset.pattern.permute.xlu0 0
    %248 = vperm.xlu0 %247, %v101
    %v249 = vpop.permute.xlu0 %248
    %252 = vset.pattern.permute.xlu0 0
    %253 = vperm.xlu0 %252, %v102
    %v254 = vpop.permute.xlu0 %253
    %257 = vset.pattern.permute.xlu0 0
    %258 = vperm.xlu0 %257, %v103
    %v259 = vpop.permute.xlu0 %258
    %262 = vset.pattern.permute.xlu0 0
    %263 = vperm.xlu0 %262, %v104
    %v264 = vpop.permute.xlu0 %263
    %v266 = vlaneseq
    %v267 = vshrl.u32 %v266, 7
    %v268 = vsub.s32 0, %v267
    %v269 = vrot.slane %v105, %v268
    %v270 = vmul.f32 %v109, %v269
    %v271 = vmul.f32 %v114, %v269
    %v272 = vmul.f32 %v119, %v269
    %v273 = vmul.f32 %v124, %v269
    %v274 = vmul.f32 %v129, %v269
    %v275 = vmul.f32 %v134, %v269
    %v276 = vmul.f32 %v139, %v269
    %v277 = vmul.f32 %v144, %v269
    %v278 = vmul.f32 %v149, %v269
    %v279 = vmul.f32 %v154, %v269
    %v280 = vmul.f32 %v159, %v269
    %v281 = vmul.f32 %v164, %v269
    %v282 = vmul.f32 %v169, %v269
    %v283 = vmul.f32 %v174, %v269
    %v284 = vmul.f32 %v179, %v269
    %v285 = vmul.f32 %v184, %v269
    %v286 = vmul.f32 %v189, %v269
    %v287 = vmul.f32 %v194, %v269
    %v288 = vmul.f32 %v199, %v269
    %v289 = vmul.f32 %v204, %v269
    %v290 = vmul.f32 %v209, %v269
    %v291 = vmul.f32 %v214, %v269
    %v292 = vmul.f32 %v219, %v269
    %v293 = vmul.f32 %v224, %v269
    %v294 = vmul.f32 %v229, %v269
    %v295 = vmul.f32 %v234, %v269
    %v296 = vmul.f32 %v239, %v269
    %v297 = vmul.f32 %v244, %v269
    %v298 = vmul.f32 %v249, %v269
    %v299 = vmul.f32 %v254, %v269
    %v300 = vmul.f32 %v259, %v269
    %v301 = vmul.f32 %v264, %v269
    %v302 = vld [vmem:[%s3 + $0x1] sm:$0x1]
    %303 = vset.pattern.permute.xlu0 1
    %304 = vperm.xlu0 %303, %v73
    %v305 = vpop.permute.xlu0 %304
    %307 = vset.pattern.permute.xlu0 1
    %308 = vperm.xlu0 %307, %v74
    %v309 = vpop.permute.xlu0 %308
    %311 = vset.pattern.permute.xlu0 1
    %312 = vperm.xlu0 %311, %v75
    %v313 = vpop.permute.xlu0 %312
    %315 = vset.pattern.permute.xlu0 1
    %316 = vperm.xlu0 %315, %v76
    %v317 = vpop.permute.xlu0 %316
    %319 = vset.pattern.permute.xlu0 1
    %320 = vperm.xlu0 %319, %v77
    %v321 = vpop.permute.xlu0 %320
    %323 = vset.pattern.permute.xlu0 1
    %324 = vperm.xlu0 %323, %v78
    %v325 = vpop.permute.xlu0 %324
    %327 = vset.pattern.permute.xlu0 1
    %328 = vperm.xlu0 %327, %v79
    %v329 = vpop.permute.xlu0 %328
    %331 = vset.pattern.permute.xlu0 1
    %332 = vperm.xlu0 %331, %v80
    %v333 = vpop.permute.xlu0 %332
    %335 = vset.pattern.permute.xlu0 1
    %336 = vperm.xlu0 %335, %v81
    %v337 = vpop.permute.xlu0 %336
    %339 = vset.pattern.permute.xlu0 1
    %340 = vperm.xlu0 %339, %v82
    %v341 = vpop.permute.xlu0 %340
    %343 = vset.pattern.permute.xlu0 1
    %344 = vperm.xlu0 %343, %v83
    %v345 = vpop.permute.xlu0 %344
    %347 = vset.pattern.permute.xlu0 1
    %348 = vperm.xlu0 %347, %v84
    %v349 = vpop.permute.xlu0 %348
    %351 = vset.pattern.permute.xlu0 1
    %352 = vperm.xlu0 %351, %v85
    %v353 = vpop.permute.xlu0 %352
    %355 = vset.pattern.permute.xlu0 1
    %356 = vperm.xlu0 %355, %v86
    %v357 = vpop.permute.xlu0 %356
    %359 = vset.pattern.permute.xlu0 1
    %360 = vperm.xlu0 %359, %v87
    %v361 = vpop.permute.xlu0 %360
    %363 = vset.pattern.permute.xlu0 1
    %364 = vperm.xlu0 %363, %v88
    %v365 = vpop.permute.xlu0 %364
    %367 = vset.pattern.permute.xlu0 1
    %368 = vperm.xlu0 %367, %v89
    %v369 = vpop.permute.xlu0 %368
    %371 = vset.pattern.permute.xlu0 1
    %372 = vperm.xlu0 %371, %v90
    %v373 = vpop.permute.xlu0 %372
    %375 = vset.pattern.permute.xlu0 1
    %376 = vperm.xlu0 %375, %v91
    %v377 = vpop.permute.xlu0 %376
    %379 = vset.pattern.permute.xlu0 1
    %380 = vperm.xlu0 %379, %v92
    %v381 = vpop.permute.xlu0 %380
    %383 = vset.pattern.permute.xlu0 1
    %384 = vperm.xlu0 %383, %v93
    %v385 = vpop.permute.xlu0 %384
    %387 = vset.pattern.permute.xlu0 1
    %388 = vperm.xlu0 %387, %v94
    %v389 = vpop.permute.xlu0 %388
    %391 = vset.pattern.permute.xlu0 1
    %392 = vperm.xlu0 %391, %v95
    %v393 = vpop.permute.xlu0 %392
    %395 = vset.pattern.permute.xlu0 1
    %396 = vperm.xlu0 %395, %v96
    %v397 = vpop.permute.xlu0 %396
    %399 = vset.pattern.permute.xlu0 1
    %400 = vperm.xlu0 %399, %v97
    %v401 = vpop.permute.xlu0 %400
    %403 = vset.pattern.permute.xlu0 1
    %404 = vperm.xlu0 %403, %v98
    %v405 = vpop.permute.xlu0 %404
    %407 = vset.pattern.permute.xlu0 1
    %408 = vperm.xlu0 %407, %v99
    %v409 = vpop.permute.xlu0 %408
    %411 = vset.pattern.permute.xlu0 1
    %412 = vperm.xlu0 %411, %v100
    %v413 = vpop.permute.xlu0 %412
    %415 = vset.pattern.permute.xlu0 1
    %416 = vperm.xlu0 %415, %v101
    %v417 = vpop.permute.xlu0 %416
    %419 = vset.pattern.permute.xlu0 1
    %420 = vperm.xlu0 %419, %v102
    %v421 = vpop.permute.xlu0 %420
    %423 = vset.pattern.permute.xlu0 1
    %424 = vperm.xlu0 %423, %v103
    %v425 = vpop.permute.xlu0 %424
    %427 = vset.pattern.permute.xlu0 1
    %428 = vperm.xlu0 %427, %v104
    %v429 = vpop.permute.xlu0 %428
    %v431 = vlaneseq
    %v432 = vshrl.u32 %v431, 7
    %v433 = vsub.s32 0, %v432
    %v434 = vrot.slane %v302, %v433
    %v435 = vmul.f32 %v305, %v434
    %v436 = vmul.f32 %v309, %v434
    %v437 = vmul.f32 %v313, %v434
    %v438 = vmul.f32 %v317, %v434
    %v439 = vmul.f32 %v321, %v434
    %v440 = vmul.f32 %v325, %v434
    %v441 = vmul.f32 %v329, %v434
    %v442 = vmul.f32 %v333, %v434
    %v443 = vmul.f32 %v337, %v434
    %v444 = vmul.f32 %v341, %v434
    %v445 = vmul.f32 %v345, %v434
    %v446 = vmul.f32 %v349, %v434
    %v447 = vmul.f32 %v353, %v434
    %v448 = vmul.f32 %v357, %v434
    %v449 = vmul.f32 %v361, %v434
    %v450 = vmul.f32 %v365, %v434
    %v451 = vmul.f32 %v369, %v434
    %v452 = vmul.f32 %v373, %v434
    %v453 = vmul.f32 %v377, %v434
    %v454 = vmul.f32 %v381, %v434
    %v455 = vmul.f32 %v385, %v434
    %v456 = vmul.f32 %v389, %v434
    %v457 = vmul.f32 %v393, %v434
    %v458 = vmul.f32 %v397, %v434
    %v459 = vmul.f32 %v401, %v434
    %v460 = vmul.f32 %v405, %v434
    %v461 = vmul.f32 %v409, %v434
    %v462 = vmul.f32 %v413, %v434
    %v463 = vmul.f32 %v417, %v434
    %v464 = vmul.f32 %v421, %v434
    %v465 = vmul.f32 %v425, %v434
    %v466 = vmul.f32 %v429, %v434
    %v467 = vadd.f32 %v270, %v435
    %v468 = vadd.f32 %v271, %v436
    %v469 = vadd.f32 %v272, %v437
    %v470 = vadd.f32 %v273, %v438
    %v471 = vadd.f32 %v274, %v439
    %v472 = vadd.f32 %v275, %v440
    %v473 = vadd.f32 %v276, %v441
    %v474 = vadd.f32 %v277, %v442
    %v475 = vadd.f32 %v278, %v443
    %v476 = vadd.f32 %v279, %v444
    %v477 = vadd.f32 %v280, %v445
    %v478 = vadd.f32 %v281, %v446
    %v479 = vadd.f32 %v282, %v447
    %v480 = vadd.f32 %v283, %v448
    %v481 = vadd.f32 %v284, %v449
    %v482 = vadd.f32 %v285, %v450
    %v483 = vadd.f32 %v286, %v451
    %v484 = vadd.f32 %v287, %v452
    %v485 = vadd.f32 %v288, %v453
    %v486 = vadd.f32 %v289, %v454
    %v487 = vadd.f32 %v290, %v455
    %v488 = vadd.f32 %v291, %v456
    %v489 = vadd.f32 %v292, %v457
    %v490 = vadd.f32 %v293, %v458
    %v491 = vadd.f32 %v294, %v459
    %v492 = vadd.f32 %v295, %v460
    %v493 = vadd.f32 %v296, %v461
    %v494 = vadd.f32 %v297, %v462
    %v495 = vadd.f32 %v298, %v463
    %v496 = vadd.f32 %v299, %v464
    %v497 = vadd.f32 %v300, %v465
    %v498 = vadd.f32 %v301, %v466
    %v499 = vld [vmem:[%s4] sm:$0x1]
    %v501 = vlaneseq
    %v502 = vshrl.u32 %v501, 7
    %v503 = vsub.s32 0, %v502
    %v504 = vrot.slane %v499, %v503
    %v506 = vadd.f32 %v467, %v504
    %v507 = vadd.f32 %v468, %v504
    %v508 = vadd.f32 %v469, %v504
    %v509 = vadd.f32 %v470, %v504
    %v510 = vadd.f32 %v471, %v504
    %v511 = vadd.f32 %v472, %v504
    %v512 = vadd.f32 %v473, %v504
    %v513 = vadd.f32 %v474, %v504
    %v514 = vadd.f32 %v475, %v504
    %v515 = vadd.f32 %v476, %v504
    %v516 = vadd.f32 %v477, %v504
    %v517 = vadd.f32 %v478, %v504
    %v518 = vadd.f32 %v479, %v504
    %v519 = vadd.f32 %v480, %v504
    %v520 = vadd.f32 %v481, %v504
    %v521 = vadd.f32 %v482, %v504
    %v522 = vadd.f32 %v483, %v504
    %v523 = vadd.f32 %v484, %v504
    %v524 = vadd.f32 %v485, %v504
    %v525 = vadd.f32 %v486, %v504
    %v526 = vadd.f32 %v487, %v504
    %v527 = vadd.f32 %v488, %v504
    %v528 = vadd.f32 %v489, %v504
    %v529 = vadd.f32 %v490, %v504
    %v530 = vadd.f32 %v491, %v504
    %v531 = vadd.f32 %v492, %v504
    %v532 = vadd.f32 %v493, %v504
    %v533 = vadd.f32 %v494, %v504
    %v534 = vadd.f32 %v495, %v504
    %v535 = vadd.f32 %v496, %v504
    %v536 = vadd.f32 %v497, %v504
    %v537 = vadd.f32 %v498, %v504
    %v538 = vld [vmem:[%s1] sm:$0xff]
    %v539 = vld [vmem:[%s1 + $0x8] sm:$0xff]
    %v540 = vld [vmem:[%s1 + $0x10] sm:$0xff]
    %v541 = vld [vmem:[%s1 + $0x18] sm:$0xff]
    %v542 = vld [vmem:[%s1 + $0x20] sm:$0xff]
    %v543 = vld [vmem:[%s1 + $0x28] sm:$0xff]
    %v544 = vld [vmem:[%s1 + $0x30] sm:$0xff]
    %v545 = vld [vmem:[%s1 + $0x38] sm:$0xff]
    %v546 = vld [vmem:[%s1 + $0x40] sm:$0xff]
    %v547 = vld [vmem:[%s1 + $0x48] sm:$0xff]
    %v548 = vld [vmem:[%s1 + $0x50] sm:$0xff]
    %v549 = vld [vmem:[%s1 + $0x58] sm:$0xff]
    %v550 = vld [vmem:[%s1 + $0x60] sm:$0xff]
    %v551 = vld [vmem:[%s1 + $0x68] sm:$0xff]
    %v552 = vld [vmem:[%s1 + $0x70] sm:$0xff]
    %v553 = vld [vmem:[%s1 + $0x78] sm:$0xff]
    %v554 = vld [vmem:[%s1 + $0x80] sm:$0xff]
    %v555 = vld [vmem:[%s1 + $0x88] sm:$0xff]
    %v556 = vld [vmem:[%s1 + $0x90] sm:$0xff]
    %v557 = vld [vmem:[%s1 + $0x98] sm:$0xff]
    %v558 = vld [vmem:[%s1 + $0xa0] sm:$0xff]
    %v559 = vld [vmem:[%s1 + $0xa8] sm:$0xff]
    %v560 = vld [vmem:[%s1 + $0xb0] sm:$0xff]
    %v561 = vld [vmem:[%s1 + $0xb8] sm:$0xff]
    %v562 = vld [vmem:[%s1 + $0xc0] sm:$0xff]
    %v563 = vld [vmem:[%s1 + $0xc8] sm:$0xff]
    %v564 = vld [vmem:[%s1 + $0xd0] sm:$0xff]
    %v565 = vld [vmem:[%s1 + $0xd8] sm:$0xff]
    %v566 = vld [vmem:[%s1 + $0xe0] sm:$0xff]
    %v567 = vld [vmem:[%s1 + $0xe8] sm:$0xff]
    %v568 = vld [vmem:[%s1 + $0xf0] sm:$0xff]
    %v569 = vld [vmem:[%s1 + $0xf8] sm:$0xff]
    %v570 = vlaneseq
    %v571 = vand.u32 %v570, 127
    %v572 = vadd.s32 %v571, 128
    %v573 = vadd.s32 %v571, 256
    %v574 = vadd.s32 %v571, 384
    %v575 = vadd.s32 %v571, 512
    %v576 = vadd.s32 %v571, 640
    %v577 = vadd.s32 %v571, 768
    %v578 = vadd.s32 %v571, 896
    %579 = vset.pattern.permute.xlu0 0
    %580 = vperm.xlu0 %579, %v538
    %v581 = vpop.permute.xlu0 %580
    %582 = vset.pattern.permute.xlu0 0
    %583 = vperm.xlu0 %582, %v539
    %v584 = vpop.permute.xlu0 %583
    %585 = vset.pattern.permute.xlu0 0
    %586 = vperm.xlu0 %585, %v540
    %v587 = vpop.permute.xlu0 %586
    %588 = vset.pattern.permute.xlu0 0
    %589 = vperm.xlu0 %588, %v541
    %v590 = vpop.permute.xlu0 %589
    %591 = vset.pattern.permute.xlu0 0
    %592 = vperm.xlu0 %591, %v542
    %v593 = vpop.permute.xlu0 %592
    %594 = vset.pattern.permute.xlu0 0
    %595 = vperm.xlu0 %594, %v543
    %v596 = vpop.permute.xlu0 %595
    %597 = vset.pattern.permute.xlu0 0
    %598 = vperm.xlu0 %597, %v544
    %v599 = vpop.permute.xlu0 %598
    %600 = vset.pattern.permute.xlu0 0
    %601 = vperm.xlu0 %600, %v545
    %v602 = vpop.permute.xlu0 %601
    %603 = vset.pattern.permute.xlu0 0
    %604 = vperm.xlu0 %603, %v546
    %v605 = vpop.permute.xlu0 %604
    %606 = vset.pattern.permute.xlu0 0
    %607 = vperm.xlu0 %606, %v547
    %v608 = vpop.permute.xlu0 %607
    %609 = vset.pattern.permute.xlu0 0
    %610 = vperm.xlu0 %609, %v548
    %v611 = vpop.permute.xlu0 %610
    %612 = vset.pattern.permute.xlu0 0
    %613 = vperm.xlu0 %612, %v549
    %v614 = vpop.permute.xlu0 %613
    %615 = vset.pattern.permute.xlu0 0
    %616 = vperm.xlu0 %615, %v550
    %v617 = vpop.permute.xlu0 %616
    %618 = vset.pattern.permute.xlu0 0
    %619 = vperm.xlu0 %618, %v551
    %v620 = vpop.permute.xlu0 %619
    %621 = vset.pattern.permute.xlu0 0
    %622 = vperm.xlu0 %621, %v552
    %v623 = vpop.permute.xlu0 %622
    %624 = vset.pattern.permute.xlu0 0
    %625 = vperm.xlu0 %624, %v553
    %v626 = vpop.permute.xlu0 %625
    %627 = vset.pattern.permute.xlu0 0
    %628 = vperm.xlu0 %627, %v554
    %v629 = vpop.permute.xlu0 %628
    %630 = vset.pattern.permute.xlu0 0
    %631 = vperm.xlu0 %630, %v555
    %v632 = vpop.permute.xlu0 %631
    %633 = vset.pattern.permute.xlu0 0
    %634 = vperm.xlu0 %633, %v556
    %v635 = vpop.permute.xlu0 %634
    %636 = vset.pattern.permute.xlu0 0
    %637 = vperm.xlu0 %636, %v557
    %v638 = vpop.permute.xlu0 %637
    %639 = vset.pattern.permute.xlu0 0
    %640 = vperm.xlu0 %639, %v558
    %v641 = vpop.permute.xlu0 %640
    %642 = vset.pattern.permute.xlu0 0
    %643 = vperm.xlu0 %642, %v559
    %v644 = vpop.permute.xlu0 %643
    %645 = vset.pattern.permute.xlu0 0
    %646 = vperm.xlu0 %645, %v560
    %v647 = vpop.permute.xlu0 %646
    %648 = vset.pattern.permute.xlu0 0
    %649 = vperm.xlu0 %648, %v561
    %v650 = vpop.permute.xlu0 %649
    %651 = vset.pattern.permute.xlu0 0
    %652 = vperm.xlu0 %651, %v562
    %v653 = vpop.permute.xlu0 %652
    %654 = vset.pattern.permute.xlu0 0
    %655 = vperm.xlu0 %654, %v563
    %v656 = vpop.permute.xlu0 %655
    %657 = vset.pattern.permute.xlu0 0
    %658 = vperm.xlu0 %657, %v564
    %v659 = vpop.permute.xlu0 %658
    %660 = vset.pattern.permute.xlu0 0
    %661 = vperm.xlu0 %660, %v565
    %v662 = vpop.permute.xlu0 %661
    %663 = vset.pattern.permute.xlu0 0
    %664 = vperm.xlu0 %663, %v566
    %v665 = vpop.permute.xlu0 %664
    %666 = vset.pattern.permute.xlu0 0
    %667 = vperm.xlu0 %666, %v567
    %v668 = vpop.permute.xlu0 %667
    %669 = vset.pattern.permute.xlu0 0
    %670 = vperm.xlu0 %669, %v568
    %v671 = vpop.permute.xlu0 %670
    %672 = vset.pattern.permute.xlu0 0
    %673 = vperm.xlu0 %672, %v569
    %v674 = vpop.permute.xlu0 %673
    %vm675 = vcmp.eq.s32.totalorder %v571, %v581
    %vm676 = vcmp.eq.s32.totalorder %v572, %v581
    %vm677 = vcmp.eq.s32.totalorder %v573, %v581
    %vm678 = vcmp.eq.s32.totalorder %v574, %v581
    %vm679 = vcmp.eq.s32.totalorder %v575, %v581
    %vm680 = vcmp.eq.s32.totalorder %v576, %v581
    %vm681 = vcmp.eq.s32.totalorder %v577, %v581
    %vm682 = vcmp.eq.s32.totalorder %v578, %v581
    %vm683 = vcmp.eq.s32.totalorder %v571, %v584
    %vm684 = vcmp.eq.s32.totalorder %v572, %v584
    %vm685 = vcmp.eq.s32.totalorder %v573, %v584
    %vm686 = vcmp.eq.s32.totalorder %v574, %v584
    %vm687 = vcmp.eq.s32.totalorder %v575, %v584
    %vm688 = vcmp.eq.s32.totalorder %v576, %v584
    %vm689 = vcmp.eq.s32.totalorder %v577, %v584
    %vm690 = vcmp.eq.s32.totalorder %v578, %v584
    %vm691 = vcmp.eq.s32.totalorder %v571, %v587
    %vm692 = vcmp.eq.s32.totalorder %v572, %v587
    %vm693 = vcmp.eq.s32.totalorder %v573, %v587
    %vm694 = vcmp.eq.s32.totalorder %v574, %v587
    %vm695 = vcmp.eq.s32.totalorder %v575, %v587
    %vm696 = vcmp.eq.s32.totalorder %v576, %v587
    %vm697 = vcmp.eq.s32.totalorder %v577, %v587
    %vm698 = vcmp.eq.s32.totalorder %v578, %v587
    %vm699 = vcmp.eq.s32.totalorder %v571, %v590
    %vm700 = vcmp.eq.s32.totalorder %v572, %v590
    %vm701 = vcmp.eq.s32.totalorder %v573, %v590
    %vm702 = vcmp.eq.s32.totalorder %v574, %v590
    %vm703 = vcmp.eq.s32.totalorder %v575, %v590
    %vm704 = vcmp.eq.s32.totalorder %v576, %v590
    %vm705 = vcmp.eq.s32.totalorder %v577, %v590
    %vm706 = vcmp.eq.s32.totalorder %v578, %v590
    %vm707 = vcmp.eq.s32.totalorder %v571, %v593
    %vm708 = vcmp.eq.s32.totalorder %v572, %v593
    %vm709 = vcmp.eq.s32.totalorder %v573, %v593
    %vm710 = vcmp.eq.s32.totalorder %v574, %v593
    %vm711 = vcmp.eq.s32.totalorder %v575, %v593
    %vm712 = vcmp.eq.s32.totalorder %v576, %v593
    %vm713 = vcmp.eq.s32.totalorder %v577, %v593
    %vm714 = vcmp.eq.s32.totalorder %v578, %v593
    %vm715 = vcmp.eq.s32.totalorder %v571, %v596
    %vm716 = vcmp.eq.s32.totalorder %v572, %v596
    %vm717 = vcmp.eq.s32.totalorder %v573, %v596
    %vm718 = vcmp.eq.s32.totalorder %v574, %v596
    %vm719 = vcmp.eq.s32.totalorder %v575, %v596
    %vm720 = vcmp.eq.s32.totalorder %v576, %v596
    %vm721 = vcmp.eq.s32.totalorder %v577, %v596
    %vm722 = vcmp.eq.s32.totalorder %v578, %v596
    %vm723 = vcmp.eq.s32.totalorder %v571, %v599
    %vm724 = vcmp.eq.s32.totalorder %v572, %v599
    %vm725 = vcmp.eq.s32.totalorder %v573, %v599
    %vm726 = vcmp.eq.s32.totalorder %v574, %v599
    %vm727 = vcmp.eq.s32.totalorder %v575, %v599
    %vm728 = vcmp.eq.s32.totalorder %v576, %v599
    %vm729 = vcmp.eq.s32.totalorder %v577, %v599
    %vm730 = vcmp.eq.s32.totalorder %v578, %v599
    %vm731 = vcmp.eq.s32.totalorder %v571, %v602
    %vm732 = vcmp.eq.s32.totalorder %v572, %v602
    %vm733 = vcmp.eq.s32.totalorder %v573, %v602
    %vm734 = vcmp.eq.s32.totalorder %v574, %v602
    %vm735 = vcmp.eq.s32.totalorder %v575, %v602
    %vm736 = vcmp.eq.s32.totalorder %v576, %v602
    %vm737 = vcmp.eq.s32.totalorder %v577, %v602
    %vm738 = vcmp.eq.s32.totalorder %v578, %v602
    %vm739 = vcmp.eq.s32.totalorder %v571, %v605
    %vm740 = vcmp.eq.s32.totalorder %v572, %v605
    %vm741 = vcmp.eq.s32.totalorder %v573, %v605
    %vm742 = vcmp.eq.s32.totalorder %v574, %v605
    %vm743 = vcmp.eq.s32.totalorder %v575, %v605
    %vm744 = vcmp.eq.s32.totalorder %v576, %v605
    %vm745 = vcmp.eq.s32.totalorder %v577, %v605
    %vm746 = vcmp.eq.s32.totalorder %v578, %v605
    %vm747 = vcmp.eq.s32.totalorder %v571, %v608
    %vm748 = vcmp.eq.s32.totalorder %v572, %v608
    %vm749 = vcmp.eq.s32.totalorder %v573, %v608
    %vm750 = vcmp.eq.s32.totalorder %v574, %v608
    %vm751 = vcmp.eq.s32.totalorder %v575, %v608
    %vm752 = vcmp.eq.s32.totalorder %v576, %v608
    %vm753 = vcmp.eq.s32.totalorder %v577, %v608
    %vm754 = vcmp.eq.s32.totalorder %v578, %v608
    %vm755 = vcmp.eq.s32.totalorder %v571, %v611
    %vm756 = vcmp.eq.s32.totalorder %v572, %v611
    %vm757 = vcmp.eq.s32.totalorder %v573, %v611
    %vm758 = vcmp.eq.s32.totalorder %v574, %v611
    %vm759 = vcmp.eq.s32.totalorder %v575, %v611
    %vm760 = vcmp.eq.s32.totalorder %v576, %v611
    %vm761 = vcmp.eq.s32.totalorder %v577, %v611
    %vm762 = vcmp.eq.s32.totalorder %v578, %v611
    %vm763 = vcmp.eq.s32.totalorder %v571, %v614
    %vm764 = vcmp.eq.s32.totalorder %v572, %v614
    %vm765 = vcmp.eq.s32.totalorder %v573, %v614
    %vm766 = vcmp.eq.s32.totalorder %v574, %v614
    %vm767 = vcmp.eq.s32.totalorder %v575, %v614
    %vm768 = vcmp.eq.s32.totalorder %v576, %v614
    %vm769 = vcmp.eq.s32.totalorder %v577, %v614
    %vm770 = vcmp.eq.s32.totalorder %v578, %v614
    %vm771 = vcmp.eq.s32.totalorder %v571, %v617
    %vm772 = vcmp.eq.s32.totalorder %v572, %v617
    %vm773 = vcmp.eq.s32.totalorder %v573, %v617
    %vm774 = vcmp.eq.s32.totalorder %v574, %v617
    %vm775 = vcmp.eq.s32.totalorder %v575, %v617
    %vm776 = vcmp.eq.s32.totalorder %v576, %v617
    %vm777 = vcmp.eq.s32.totalorder %v577, %v617
    %vm778 = vcmp.eq.s32.totalorder %v578, %v617
    %vm779 = vcmp.eq.s32.totalorder %v571, %v620
    %vm780 = vcmp.eq.s32.totalorder %v572, %v620
    %vm781 = vcmp.eq.s32.totalorder %v573, %v620
    %vm782 = vcmp.eq.s32.totalorder %v574, %v620
    %vm783 = vcmp.eq.s32.totalorder %v575, %v620
    %vm784 = vcmp.eq.s32.totalorder %v576, %v620
    %vm785 = vcmp.eq.s32.totalorder %v577, %v620
    %vm786 = vcmp.eq.s32.totalorder %v578, %v620
    %vm787 = vcmp.eq.s32.totalorder %v571, %v623
    %vm788 = vcmp.eq.s32.totalorder %v572, %v623
    %vm789 = vcmp.eq.s32.totalorder %v573, %v623
    %vm790 = vcmp.eq.s32.totalorder %v574, %v623
    %vm791 = vcmp.eq.s32.totalorder %v575, %v623
    %vm792 = vcmp.eq.s32.totalorder %v576, %v623
    %vm793 = vcmp.eq.s32.totalorder %v577, %v623
    %vm794 = vcmp.eq.s32.totalorder %v578, %v623
    %vm795 = vcmp.eq.s32.totalorder %v571, %v626
    %vm796 = vcmp.eq.s32.totalorder %v572, %v626
    %vm797 = vcmp.eq.s32.totalorder %v573, %v626
    %vm798 = vcmp.eq.s32.totalorder %v574, %v626
    %vm799 = vcmp.eq.s32.totalorder %v575, %v626
    %vm800 = vcmp.eq.s32.totalorder %v576, %v626
    %vm801 = vcmp.eq.s32.totalorder %v577, %v626
    %vm802 = vcmp.eq.s32.totalorder %v578, %v626
    %vm803 = vcmp.eq.s32.totalorder %v571, %v629
    %vm804 = vcmp.eq.s32.totalorder %v572, %v629
    %vm805 = vcmp.eq.s32.totalorder %v573, %v629
    %vm806 = vcmp.eq.s32.totalorder %v574, %v629
    %vm807 = vcmp.eq.s32.totalorder %v575, %v629
    %vm808 = vcmp.eq.s32.totalorder %v576, %v629
    %vm809 = vcmp.eq.s32.totalorder %v577, %v629
    %vm810 = vcmp.eq.s32.totalorder %v578, %v629
    %vm811 = vcmp.eq.s32.totalorder %v571, %v632
    %vm812 = vcmp.eq.s32.totalorder %v572, %v632
    %vm813 = vcmp.eq.s32.totalorder %v573, %v632
    %vm814 = vcmp.eq.s32.totalorder %v574, %v632
    %vm815 = vcmp.eq.s32.totalorder %v575, %v632
    %vm816 = vcmp.eq.s32.totalorder %v576, %v632
    %vm817 = vcmp.eq.s32.totalorder %v577, %v632
    %vm818 = vcmp.eq.s32.totalorder %v578, %v632
    %vm819 = vcmp.eq.s32.totalorder %v571, %v635
    %vm820 = vcmp.eq.s32.totalorder %v572, %v635
    %vm821 = vcmp.eq.s32.totalorder %v573, %v635
    %vm822 = vcmp.eq.s32.totalorder %v574, %v635
    %vm823 = vcmp.eq.s32.totalorder %v575, %v635
    %vm824 = vcmp.eq.s32.totalorder %v576, %v635
    %vm825 = vcmp.eq.s32.totalorder %v577, %v635
    %vm826 = vcmp.eq.s32.totalorder %v578, %v635
    %vm827 = vcmp.eq.s32.totalorder %v571, %v638
    %vm828 = vcmp.eq.s32.totalorder %v572, %v638
    %vm829 = vcmp.eq.s32.totalorder %v573, %v638
    %vm830 = vcmp.eq.s32.totalorder %v574, %v638
    %vm831 = vcmp.eq.s32.totalorder %v575, %v638
    %vm832 = vcmp.eq.s32.totalorder %v576, %v638
    %vm833 = vcmp.eq.s32.totalorder %v577, %v638
    %vm834 = vcmp.eq.s32.totalorder %v578, %v638
    %vm835 = vcmp.eq.s32.totalorder %v571, %v641
    %vm836 = vcmp.eq.s32.totalorder %v572, %v641
    %vm837 = vcmp.eq.s32.totalorder %v573, %v641
    %vm838 = vcmp.eq.s32.totalorder %v574, %v641
    %vm839 = vcmp.eq.s32.totalorder %v575, %v641
    %vm840 = vcmp.eq.s32.totalorder %v576, %v641
    %vm841 = vcmp.eq.s32.totalorder %v577, %v641
    %vm842 = vcmp.eq.s32.totalorder %v578, %v641
    %vm843 = vcmp.eq.s32.totalorder %v571, %v644
    %vm844 = vcmp.eq.s32.totalorder %v572, %v644
    %vm845 = vcmp.eq.s32.totalorder %v573, %v644
    %vm846 = vcmp.eq.s32.totalorder %v574, %v644
    %vm847 = vcmp.eq.s32.totalorder %v575, %v644
    %vm848 = vcmp.eq.s32.totalorder %v576, %v644
    %vm849 = vcmp.eq.s32.totalorder %v577, %v644
    %vm850 = vcmp.eq.s32.totalorder %v578, %v644
    %vm851 = vcmp.eq.s32.totalorder %v571, %v647
    %vm852 = vcmp.eq.s32.totalorder %v572, %v647
    %vm853 = vcmp.eq.s32.totalorder %v573, %v647
    %vm854 = vcmp.eq.s32.totalorder %v574, %v647
    %vm855 = vcmp.eq.s32.totalorder %v575, %v647
    %vm856 = vcmp.eq.s32.totalorder %v576, %v647
    %vm857 = vcmp.eq.s32.totalorder %v577, %v647
    %vm858 = vcmp.eq.s32.totalorder %v578, %v647
    %vm859 = vcmp.eq.s32.totalorder %v571, %v650
    %vm860 = vcmp.eq.s32.totalorder %v572, %v650
    %vm861 = vcmp.eq.s32.totalorder %v573, %v650
    %vm862 = vcmp.eq.s32.totalorder %v574, %v650
    %vm863 = vcmp.eq.s32.totalorder %v575, %v650
    %vm864 = vcmp.eq.s32.totalorder %v576, %v650
    %vm865 = vcmp.eq.s32.totalorder %v577, %v650
    %vm866 = vcmp.eq.s32.totalorder %v578, %v650
    %vm867 = vcmp.eq.s32.totalorder %v571, %v653
    %vm868 = vcmp.eq.s32.totalorder %v572, %v653
    %vm869 = vcmp.eq.s32.totalorder %v573, %v653
    %vm870 = vcmp.eq.s32.totalorder %v574, %v653
    %vm871 = vcmp.eq.s32.totalorder %v575, %v653
    %vm872 = vcmp.eq.s32.totalorder %v576, %v653
    %vm873 = vcmp.eq.s32.totalorder %v577, %v653
    %vm874 = vcmp.eq.s32.totalorder %v578, %v653
    %vm875 = vcmp.eq.s32.totalorder %v571, %v656
    %vm876 = vcmp.eq.s32.totalorder %v572, %v656
    %vm877 = vcmp.eq.s32.totalorder %v573, %v656
    %vm878 = vcmp.eq.s32.totalorder %v574, %v656
    %vm879 = vcmp.eq.s32.totalorder %v575, %v656
    %vm880 = vcmp.eq.s32.totalorder %v576, %v656
    %vm881 = vcmp.eq.s32.totalorder %v577, %v656
    %vm882 = vcmp.eq.s32.totalorder %v578, %v656
    %vm883 = vcmp.eq.s32.totalorder %v571, %v659
    %vm884 = vcmp.eq.s32.totalorder %v572, %v659
    %vm885 = vcmp.eq.s32.totalorder %v573, %v659
    %vm886 = vcmp.eq.s32.totalorder %v574, %v659
    %vm887 = vcmp.eq.s32.totalorder %v575, %v659
    %vm888 = vcmp.eq.s32.totalorder %v576, %v659
    %vm889 = vcmp.eq.s32.totalorder %v577, %v659
    %vm890 = vcmp.eq.s32.totalorder %v578, %v659
    %vm891 = vcmp.eq.s32.totalorder %v571, %v662
    %vm892 = vcmp.eq.s32.totalorder %v572, %v662
    %vm893 = vcmp.eq.s32.totalorder %v573, %v662
    %vm894 = vcmp.eq.s32.totalorder %v574, %v662
    %vm895 = vcmp.eq.s32.totalorder %v575, %v662
    %vm896 = vcmp.eq.s32.totalorder %v576, %v662
    %vm897 = vcmp.eq.s32.totalorder %v577, %v662
    %vm898 = vcmp.eq.s32.totalorder %v578, %v662
    %vm899 = vcmp.eq.s32.totalorder %v571, %v665
    %vm900 = vcmp.eq.s32.totalorder %v572, %v665
    %vm901 = vcmp.eq.s32.totalorder %v573, %v665
    %vm902 = vcmp.eq.s32.totalorder %v574, %v665
    %vm903 = vcmp.eq.s32.totalorder %v575, %v665
    %vm904 = vcmp.eq.s32.totalorder %v576, %v665
    %vm905 = vcmp.eq.s32.totalorder %v577, %v665
    %vm906 = vcmp.eq.s32.totalorder %v578, %v665
    %vm907 = vcmp.eq.s32.totalorder %v571, %v668
    %vm908 = vcmp.eq.s32.totalorder %v572, %v668
    %vm909 = vcmp.eq.s32.totalorder %v573, %v668
    %vm910 = vcmp.eq.s32.totalorder %v574, %v668
    %vm911 = vcmp.eq.s32.totalorder %v575, %v668
    %vm912 = vcmp.eq.s32.totalorder %v576, %v668
    %vm913 = vcmp.eq.s32.totalorder %v577, %v668
    %vm914 = vcmp.eq.s32.totalorder %v578, %v668
    %vm915 = vcmp.eq.s32.totalorder %v571, %v671
    %vm916 = vcmp.eq.s32.totalorder %v572, %v671
    %vm917 = vcmp.eq.s32.totalorder %v573, %v671
    %vm918 = vcmp.eq.s32.totalorder %v574, %v671
    %vm919 = vcmp.eq.s32.totalorder %v575, %v671
    %vm920 = vcmp.eq.s32.totalorder %v576, %v671
    %vm921 = vcmp.eq.s32.totalorder %v577, %v671
    %vm922 = vcmp.eq.s32.totalorder %v578, %v671
    %vm923 = vcmp.eq.s32.totalorder %v571, %v674
    %vm924 = vcmp.eq.s32.totalorder %v572, %v674
    %vm925 = vcmp.eq.s32.totalorder %v573, %v674
    %vm926 = vcmp.eq.s32.totalorder %v574, %v674
    %vm927 = vcmp.eq.s32.totalorder %v575, %v674
    %vm928 = vcmp.eq.s32.totalorder %v576, %v674
    %vm929 = vcmp.eq.s32.totalorder %v577, %v674
    %vm930 = vcmp.eq.s32.totalorder %v578, %v674
    %v931 = vsel %vm675, 1.0, 0.0
    %v932 = vsel %vm676, 1.0, 0.0
    %v933 = vsel %vm677, 1.0, 0.0
    %v934 = vsel %vm678, 1.0, 0.0
    %v935 = vsel %vm679, 1.0, 0.0
    %v936 = vsel %vm680, 1.0, 0.0
    %v937 = vsel %vm681, 1.0, 0.0
    %v938 = vsel %vm682, 1.0, 0.0
    %v939 = vsel %vm683, 1.0, 0.0
    %v940 = vsel %vm684, 1.0, 0.0
    %v941 = vsel %vm685, 1.0, 0.0
    %v942 = vsel %vm686, 1.0, 0.0
    %v943 = vsel %vm687, 1.0, 0.0
    %v944 = vsel %vm688, 1.0, 0.0
    %v945 = vsel %vm689, 1.0, 0.0
    %v946 = vsel %vm690, 1.0, 0.0
    %v947 = vsel %vm691, 1.0, 0.0
    %v948 = vsel %vm692, 1.0, 0.0
    %v949 = vsel %vm693, 1.0, 0.0
    %v950 = vsel %vm694, 1.0, 0.0
    %v951 = vsel %vm695, 1.0, 0.0
    %v952 = vsel %vm696, 1.0, 0.0
    %v953 = vsel %vm697, 1.0, 0.0
    %v954 = vsel %vm698, 1.0, 0.0
    %v955 = vsel %vm699, 1.0, 0.0
    %v956 = vsel %vm700, 1.0, 0.0
    %v957 = vsel %vm701, 1.0, 0.0
    %v958 = vsel %vm702, 1.0, 0.0
    %v959 = vsel %vm703, 1.0, 0.0
    %v960 = vsel %vm704, 1.0, 0.0
    %v961 = vsel %vm705, 1.0, 0.0
    %v962 = vsel %vm706, 1.0, 0.0
    %v963 = vsel %vm707, 1.0, 0.0
    %v964 = vsel %vm708, 1.0, 0.0
    %v965 = vsel %vm709, 1.0, 0.0
    %v966 = vsel %vm710, 1.0, 0.0
    %v967 = vsel %vm711, 1.0, 0.0
    %v968 = vsel %vm712, 1.0, 0.0
    %v969 = vsel %vm713, 1.0, 0.0
    %v970 = vsel %vm714, 1.0, 0.0
    %v971 = vsel %vm715, 1.0, 0.0
    %v972 = vsel %vm716, 1.0, 0.0
    %v973 = vsel %vm717, 1.0, 0.0
    %v974 = vsel %vm718, 1.0, 0.0
    %v975 = vsel %vm719, 1.0, 0.0
    %v976 = vsel %vm720, 1.0, 0.0
    %v977 = vsel %vm721, 1.0, 0.0
    %v978 = vsel %vm722, 1.0, 0.0
    %v979 = vsel %vm723, 1.0, 0.0
    %v980 = vsel %vm724, 1.0, 0.0
    %v981 = vsel %vm725, 1.0, 0.0
    %v982 = vsel %vm726, 1.0, 0.0
    %v983 = vsel %vm727, 1.0, 0.0
    %v984 = vsel %vm728, 1.0, 0.0
    %v985 = vsel %vm729, 1.0, 0.0
    %v986 = vsel %vm730, 1.0, 0.0
    %v987 = vsel %vm731, 1.0, 0.0
    %v988 = vsel %vm732, 1.0, 0.0
    %v989 = vsel %vm733, 1.0, 0.0
    %v990 = vsel %vm734, 1.0, 0.0
    %v991 = vsel %vm735, 1.0, 0.0
    %v992 = vsel %vm736, 1.0, 0.0
    %v993 = vsel %vm737, 1.0, 0.0
    %v994 = vsel %vm738, 1.0, 0.0
    %v995 = vsel %vm739, 1.0, 0.0
    %v996 = vsel %vm740, 1.0, 0.0
    %v997 = vsel %vm741, 1.0, 0.0
    %v998 = vsel %vm742, 1.0, 0.0
    %v999 = vsel %vm743, 1.0, 0.0
    %v1000 = vsel %vm744, 1.0, 0.0
    %v1001 = vsel %vm745, 1.0, 0.0
    %v1002 = vsel %vm746, 1.0, 0.0
    %v1003 = vsel %vm747, 1.0, 0.0
    %v1004 = vsel %vm748, 1.0, 0.0
    %v1005 = vsel %vm749, 1.0, 0.0
    %v1006 = vsel %vm750, 1.0, 0.0
    %v1007 = vsel %vm751, 1.0, 0.0
    %v1008 = vsel %vm752, 1.0, 0.0
    %v1009 = vsel %vm753, 1.0, 0.0
    %v1010 = vsel %vm754, 1.0, 0.0
    %v1011 = vsel %vm755, 1.0, 0.0
    %v1012 = vsel %vm756, 1.0, 0.0
    %v1013 = vsel %vm757, 1.0, 0.0
    %v1014 = vsel %vm758, 1.0, 0.0
    %v1015 = vsel %vm759, 1.0, 0.0
    %v1016 = vsel %vm760, 1.0, 0.0
    %v1017 = vsel %vm761, 1.0, 0.0
    %v1018 = vsel %vm762, 1.0, 0.0
    %v1019 = vsel %vm763, 1.0, 0.0
    %v1020 = vsel %vm764, 1.0, 0.0
    %v1021 = vsel %vm765, 1.0, 0.0
    %v1022 = vsel %vm766, 1.0, 0.0
    %v1023 = vsel %vm767, 1.0, 0.0
    %v1024 = vsel %vm768, 1.0, 0.0
    %v1025 = vsel %vm769, 1.0, 0.0
    %v1026 = vsel %vm770, 1.0, 0.0
    %v1027 = vsel %vm771, 1.0, 0.0
    %v1028 = vsel %vm772, 1.0, 0.0
    %v1029 = vsel %vm773, 1.0, 0.0
    %v1030 = vsel %vm774, 1.0, 0.0
    %v1031 = vsel %vm775, 1.0, 0.0
    %v1032 = vsel %vm776, 1.0, 0.0
    %v1033 = vsel %vm777, 1.0, 0.0
    %v1034 = vsel %vm778, 1.0, 0.0
    %v1035 = vsel %vm779, 1.0, 0.0
    %v1036 = vsel %vm780, 1.0, 0.0
    %v1037 = vsel %vm781, 1.0, 0.0
    %v1038 = vsel %vm782, 1.0, 0.0
    %v1039 = vsel %vm783, 1.0, 0.0
    %v1040 = vsel %vm784, 1.0, 0.0
    %v1041 = vsel %vm785, 1.0, 0.0
    %v1042 = vsel %vm786, 1.0, 0.0
    %v1043 = vsel %vm787, 1.0, 0.0
    %v1044 = vsel %vm788, 1.0, 0.0
    %v1045 = vsel %vm789, 1.0, 0.0
    %v1046 = vsel %vm790, 1.0, 0.0
    %v1047 = vsel %vm791, 1.0, 0.0
    %v1048 = vsel %vm792, 1.0, 0.0
    %v1049 = vsel %vm793, 1.0, 0.0
    %v1050 = vsel %vm794, 1.0, 0.0
    %v1051 = vsel %vm795, 1.0, 0.0
    %v1052 = vsel %vm796, 1.0, 0.0
    %v1053 = vsel %vm797, 1.0, 0.0
    %v1054 = vsel %vm798, 1.0, 0.0
    %v1055 = vsel %vm799, 1.0, 0.0
    %v1056 = vsel %vm800, 1.0, 0.0
    %v1057 = vsel %vm801, 1.0, 0.0
    %v1058 = vsel %vm802, 1.0, 0.0
    %v1059 = vsel %vm803, 1.0, 0.0
    %v1060 = vsel %vm804, 1.0, 0.0
    %v1061 = vsel %vm805, 1.0, 0.0
    %v1062 = vsel %vm806, 1.0, 0.0
    %v1063 = vsel %vm807, 1.0, 0.0
    %v1064 = vsel %vm808, 1.0, 0.0
    %v1065 = vsel %vm809, 1.0, 0.0
    %v1066 = vsel %vm810, 1.0, 0.0
    %v1067 = vsel %vm811, 1.0, 0.0
    %v1068 = vsel %vm812, 1.0, 0.0
    %v1069 = vsel %vm813, 1.0, 0.0
    %v1070 = vsel %vm814, 1.0, 0.0
    %v1071 = vsel %vm815, 1.0, 0.0
    %v1072 = vsel %vm816, 1.0, 0.0
    %v1073 = vsel %vm817, 1.0, 0.0
    %v1074 = vsel %vm818, 1.0, 0.0
    %v1075 = vsel %vm819, 1.0, 0.0
    %v1076 = vsel %vm820, 1.0, 0.0
    %v1077 = vsel %vm821, 1.0, 0.0
    %v1078 = vsel %vm822, 1.0, 0.0
    %v1079 = vsel %vm823, 1.0, 0.0
    %v1080 = vsel %vm824, 1.0, 0.0
    %v1081 = vsel %vm825, 1.0, 0.0
    %v1082 = vsel %vm826, 1.0, 0.0
    %v1083 = vsel %vm827, 1.0, 0.0
    %v1084 = vsel %vm828, 1.0, 0.0
    %v1085 = vsel %vm829, 1.0, 0.0
    %v1086 = vsel %vm830, 1.0, 0.0
    %v1087 = vsel %vm831, 1.0, 0.0
    %v1088 = vsel %vm832, 1.0, 0.0
    %v1089 = vsel %vm833, 1.0, 0.0
    %v1090 = vsel %vm834, 1.0, 0.0
    %v1091 = vsel %vm835, 1.0, 0.0
    %v1092 = vsel %vm836, 1.0, 0.0
    %v1093 = vsel %vm837, 1.0, 0.0
    %v1094 = vsel %vm838, 1.0, 0.0
    %v1095 = vsel %vm839, 1.0, 0.0
    %v1096 = vsel %vm840, 1.0, 0.0
    %v1097 = vsel %vm841, 1.0, 0.0
    %v1098 = vsel %vm842, 1.0, 0.0
    %v1099 = vsel %vm843, 1.0, 0.0
    %v1100 = vsel %vm844, 1.0, 0.0
    %v1101 = vsel %vm845, 1.0, 0.0
    %v1102 = vsel %vm846, 1.0, 0.0
    %v1103 = vsel %vm847, 1.0, 0.0
    %v1104 = vsel %vm848, 1.0, 0.0
    %v1105 = vsel %vm849, 1.0, 0.0
    %v1106 = vsel %vm850, 1.0, 0.0
    %v1107 = vsel %vm851, 1.0, 0.0
    %v1108 = vsel %vm852, 1.0, 0.0
    %v1109 = vsel %vm853, 1.0, 0.0
    %v1110 = vsel %vm854, 1.0, 0.0
    %v1111 = vsel %vm855, 1.0, 0.0
    %v1112 = vsel %vm856, 1.0, 0.0
    %v1113 = vsel %vm857, 1.0, 0.0
    %v1114 = vsel %vm858, 1.0, 0.0
    %v1115 = vsel %vm859, 1.0, 0.0
    %v1116 = vsel %vm860, 1.0, 0.0
    %v1117 = vsel %vm861, 1.0, 0.0
    %v1118 = vsel %vm862, 1.0, 0.0
    %v1119 = vsel %vm863, 1.0, 0.0
    %v1120 = vsel %vm864, 1.0, 0.0
    %v1121 = vsel %vm865, 1.0, 0.0
    %v1122 = vsel %vm866, 1.0, 0.0
    %v1123 = vsel %vm867, 1.0, 0.0
    %v1124 = vsel %vm868, 1.0, 0.0
    %v1125 = vsel %vm869, 1.0, 0.0
    %v1126 = vsel %vm870, 1.0, 0.0
    %v1127 = vsel %vm871, 1.0, 0.0
    %v1128 = vsel %vm872, 1.0, 0.0
    %v1129 = vsel %vm873, 1.0, 0.0
    %v1130 = vsel %vm874, 1.0, 0.0
    %v1131 = vsel %vm875, 1.0, 0.0
    %v1132 = vsel %vm876, 1.0, 0.0
    %v1133 = vsel %vm877, 1.0, 0.0
    %v1134 = vsel %vm878, 1.0, 0.0
    %v1135 = vsel %vm879, 1.0, 0.0
    %v1136 = vsel %vm880, 1.0, 0.0
    %v1137 = vsel %vm881, 1.0, 0.0
    %v1138 = vsel %vm882, 1.0, 0.0
    %v1139 = vsel %vm883, 1.0, 0.0
    %v1140 = vsel %vm884, 1.0, 0.0
    %v1141 = vsel %vm885, 1.0, 0.0
    %v1142 = vsel %vm886, 1.0, 0.0
    %v1143 = vsel %vm887, 1.0, 0.0
    %v1144 = vsel %vm888, 1.0, 0.0
    %v1145 = vsel %vm889, 1.0, 0.0
    %v1146 = vsel %vm890, 1.0, 0.0
    %v1147 = vsel %vm891, 1.0, 0.0
    %v1148 = vsel %vm892, 1.0, 0.0
    %v1149 = vsel %vm893, 1.0, 0.0
    %v1150 = vsel %vm894, 1.0, 0.0
    %v1151 = vsel %vm895, 1.0, 0.0
    %v1152 = vsel %vm896, 1.0, 0.0
    %v1153 = vsel %vm897, 1.0, 0.0
    %v1154 = vsel %vm898, 1.0, 0.0
    %v1155 = vsel %vm899, 1.0, 0.0
    %v1156 = vsel %vm900, 1.0, 0.0
    %v1157 = vsel %vm901, 1.0, 0.0
    %v1158 = vsel %vm902, 1.0, 0.0
    %v1159 = vsel %vm903, 1.0, 0.0
    %v1160 = vsel %vm904, 1.0, 0.0
    %v1161 = vsel %vm905, 1.0, 0.0
    %v1162 = vsel %vm906, 1.0, 0.0
    %v1163 = vsel %vm907, 1.0, 0.0
    %v1164 = vsel %vm908, 1.0, 0.0
    %v1165 = vsel %vm909, 1.0, 0.0
    %v1166 = vsel %vm910, 1.0, 0.0
    %v1167 = vsel %vm911, 1.0, 0.0
    %v1168 = vsel %vm912, 1.0, 0.0
    %v1169 = vsel %vm913, 1.0, 0.0
    %v1170 = vsel %vm914, 1.0, 0.0
    %v1171 = vsel %vm915, 1.0, 0.0
    %v1172 = vsel %vm916, 1.0, 0.0
    %v1173 = vsel %vm917, 1.0, 0.0
    %v1174 = vsel %vm918, 1.0, 0.0
    %v1175 = vsel %vm919, 1.0, 0.0
    %v1176 = vsel %vm920, 1.0, 0.0
    %v1177 = vsel %vm921, 1.0, 0.0
    %v1178 = vsel %vm922, 1.0, 0.0
    %v1179 = vsel %vm923, 1.0, 0.0
    %v1180 = vsel %vm924, 1.0, 0.0
    %v1181 = vsel %vm925, 1.0, 0.0
    %v1182 = vsel %vm926, 1.0, 0.0
    %v1183 = vsel %vm927, 1.0, 0.0
    %v1184 = vsel %vm928, 1.0, 0.0
    %v1185 = vsel %vm929, 1.0, 0.0
    %v1186 = vsel %vm930, 1.0, 0.0
    %v1187 = vpack.c.bf16 %v939, %v931
    %v1188 = vpack.c.bf16 %v940, %v932
    %v1189 = vpack.c.bf16 %v941, %v933
    %v1190 = vpack.c.bf16 %v942, %v934
    %v1191 = vpack.c.bf16 %v943, %v935
    %v1192 = vpack.c.bf16 %v944, %v936
    %v1193 = vpack.c.bf16 %v945, %v937
    %v1194 = vpack.c.bf16 %v946, %v938
    %v1195 = vpack.c.bf16 %v955, %v947
    %v1196 = vpack.c.bf16 %v956, %v948
    %v1197 = vpack.c.bf16 %v957, %v949
    %v1198 = vpack.c.bf16 %v958, %v950
    %v1199 = vpack.c.bf16 %v959, %v951
    %v1200 = vpack.c.bf16 %v960, %v952
    %v1201 = vpack.c.bf16 %v961, %v953
    %v1202 = vpack.c.bf16 %v962, %v954
    %v1203 = vpack.c.bf16 %v971, %v963
    %v1204 = vpack.c.bf16 %v972, %v964
    %v1205 = vpack.c.bf16 %v973, %v965
    %v1206 = vpack.c.bf16 %v974, %v966
    %v1207 = vpack.c.bf16 %v975, %v967
    %v1208 = vpack.c.bf16 %v976, %v968
    %v1209 = vpack.c.bf16 %v977, %v969
    %v1210 = vpack.c.bf16 %v978, %v970
    %v1211 = vpack.c.bf16 %v987, %v979
    %v1212 = vpack.c.bf16 %v988, %v980
    %v1213 = vpack.c.bf16 %v989, %v981
    %v1214 = vpack.c.bf16 %v990, %v982
    %v1215 = vpack.c.bf16 %v991, %v983
    %v1216 = vpack.c.bf16 %v992, %v984
    %v1217 = vpack.c.bf16 %v993, %v985
    %v1218 = vpack.c.bf16 %v994, %v986
    %v1219 = vpack.c.bf16 %v1003, %v995
    %v1220 = vpack.c.bf16 %v1004, %v996
    %v1221 = vpack.c.bf16 %v1005, %v997
    %v1222 = vpack.c.bf16 %v1006, %v998
    %v1223 = vpack.c.bf16 %v1007, %v999
    %v1224 = vpack.c.bf16 %v1008, %v1000
    %v1225 = vpack.c.bf16 %v1009, %v1001
    %v1226 = vpack.c.bf16 %v1010, %v1002
    %v1227 = vpack.c.bf16 %v1019, %v1011
    %v1228 = vpack.c.bf16 %v1020, %v1012
    %v1229 = vpack.c.bf16 %v1021, %v1013
    %v1230 = vpack.c.bf16 %v1022, %v1014
    %v1231 = vpack.c.bf16 %v1023, %v1015
    %v1232 = vpack.c.bf16 %v1024, %v1016
    %v1233 = vpack.c.bf16 %v1025, %v1017
    %v1234 = vpack.c.bf16 %v1026, %v1018
    %v1235 = vpack.c.bf16 %v1035, %v1027
    %v1236 = vpack.c.bf16 %v1036, %v1028
    %v1237 = vpack.c.bf16 %v1037, %v1029
    %v1238 = vpack.c.bf16 %v1038, %v1030
    %v1239 = vpack.c.bf16 %v1039, %v1031
    %v1240 = vpack.c.bf16 %v1040, %v1032
    %v1241 = vpack.c.bf16 %v1041, %v1033
    %v1242 = vpack.c.bf16 %v1042, %v1034
    %v1243 = vpack.c.bf16 %v1051, %v1043
    %v1244 = vpack.c.bf16 %v1052, %v1044
    %v1245 = vpack.c.bf16 %v1053, %v1045
    %v1246 = vpack.c.bf16 %v1054, %v1046
    %v1247 = vpack.c.bf16 %v1055, %v1047
    %v1248 = vpack.c.bf16 %v1056, %v1048
    %v1249 = vpack.c.bf16 %v1057, %v1049
    %v1250 = vpack.c.bf16 %v1058, %v1050
    %v1251 = vpack.c.bf16 %v1067, %v1059
    %v1252 = vpack.c.bf16 %v1068, %v1060
    %v1253 = vpack.c.bf16 %v1069, %v1061
    %v1254 = vpack.c.bf16 %v1070, %v1062
    %v1255 = vpack.c.bf16 %v1071, %v1063
    %v1256 = vpack.c.bf16 %v1072, %v1064
    %v1257 = vpack.c.bf16 %v1073, %v1065
    %v1258 = vpack.c.bf16 %v1074, %v1066
    %v1259 = vpack.c.bf16 %v1083, %v1075
    %v1260 = vpack.c.bf16 %v1084, %v1076
    %v1261 = vpack.c.bf16 %v1085, %v1077
    %v1262 = vpack.c.bf16 %v1086, %v1078
    %v1263 = vpack.c.bf16 %v1087, %v1079
    %v1264 = vpack.c.bf16 %v1088, %v1080
    %v1265 = vpack.c.bf16 %v1089, %v1081
    %v1266 = vpack.c.bf16 %v1090, %v1082
    %v1267 = vpack.c.bf16 %v1099, %v1091
    %v1268 = vpack.c.bf16 %v1100, %v1092
    %v1269 = vpack.c.bf16 %v1101, %v1093
    %v1270 = vpack.c.bf16 %v1102, %v1094
    %v1271 = vpack.c.bf16 %v1103, %v1095
    %v1272 = vpack.c.bf16 %v1104, %v1096
    %v1273 = vpack.c.bf16 %v1105, %v1097
    %v1274 = vpack.c.bf16 %v1106, %v1098
    %v1275 = vpack.c.bf16 %v1115, %v1107
    %v1276 = vpack.c.bf16 %v1116, %v1108
    %v1277 = vpack.c.bf16 %v1117, %v1109
    %v1278 = vpack.c.bf16 %v1118, %v1110
    %v1279 = vpack.c.bf16 %v1119, %v1111
    %v1280 = vpack.c.bf16 %v1120, %v1112
    %v1281 = vpack.c.bf16 %v1121, %v1113
    %v1282 = vpack.c.bf16 %v1122, %v1114
    %v1283 = vpack.c.bf16 %v1131, %v1123
    %v1284 = vpack.c.bf16 %v1132, %v1124
    %v1285 = vpack.c.bf16 %v1133, %v1125
    %v1286 = vpack.c.bf16 %v1134, %v1126
    %v1287 = vpack.c.bf16 %v1135, %v1127
    %v1288 = vpack.c.bf16 %v1136, %v1128
    %v1289 = vpack.c.bf16 %v1137, %v1129
    %v1290 = vpack.c.bf16 %v1138, %v1130
    %v1291 = vpack.c.bf16 %v1147, %v1139
    %v1292 = vpack.c.bf16 %v1148, %v1140
    %v1293 = vpack.c.bf16 %v1149, %v1141
    %v1294 = vpack.c.bf16 %v1150, %v1142
    %v1295 = vpack.c.bf16 %v1151, %v1143
    %v1296 = vpack.c.bf16 %v1152, %v1144
    %v1297 = vpack.c.bf16 %v1153, %v1145
    %v1298 = vpack.c.bf16 %v1154, %v1146
    %v1299 = vpack.c.bf16 %v1163, %v1155
    %v1300 = vpack.c.bf16 %v1164, %v1156
    %v1301 = vpack.c.bf16 %v1165, %v1157
    %v1302 = vpack.c.bf16 %v1166, %v1158
    %v1303 = vpack.c.bf16 %v1167, %v1159
    %v1304 = vpack.c.bf16 %v1168, %v1160
    %v1305 = vpack.c.bf16 %v1169, %v1161
    %v1306 = vpack.c.bf16 %v1170, %v1162
    %v1307 = vpack.c.bf16 %v1179, %v1171
    %v1308 = vpack.c.bf16 %v1180, %v1172
    %v1309 = vpack.c.bf16 %v1181, %v1173
    %v1310 = vpack.c.bf16 %v1182, %v1174
    %v1311 = vpack.c.bf16 %v1183, %v1175
    %v1312 = vpack.c.bf16 %v1184, %v1176
    %v1313 = vpack.c.bf16 %v1185, %v1177
    %v1314 = vpack.c.bf16 %v1186, %v1178
    %v1315 = vld [vmem:[%s2] sm:$0xf]
    %v1316 = vld [vmem:[%s2 + $0x4] sm:$0xf]
    %v1317 = vld [vmem:[%s2 + $0x8] sm:$0xf]
    %v1318 = vld [vmem:[%s2 + $0xc] sm:$0xf]
    %v1319 = vld [vmem:[%s2 + $0x10] sm:$0xf]
    %v1320 = vld [vmem:[%s2 + $0x14] sm:$0xf]
    %v1321 = vld [vmem:[%s2 + $0x18] sm:$0xf]
    %v1322 = vld [vmem:[%s2 + $0x1c] sm:$0xf]
    %v1323 = vld [vmem:[%s2 + $0x20] sm:$0xf]
    %v1324 = vld [vmem:[%s2 + $0x24] sm:$0xf]
    %v1325 = vld [vmem:[%s2 + $0x28] sm:$0xf]
    %v1326 = vld [vmem:[%s2 + $0x2c] sm:$0xf]
    %v1327 = vld [vmem:[%s2 + $0x30] sm:$0xf]
    %v1328 = vld [vmem:[%s2 + $0x34] sm:$0xf]
    %v1329 = vld [vmem:[%s2 + $0x38] sm:$0xf]
    %v1330 = vld [vmem:[%s2 + $0x3c] sm:$0xf]
    %v1331 = vld [vmem:[%s2 + $0x40] sm:$0xf]
    %v1332 = vld [vmem:[%s2 + $0x44] sm:$0xf]
    %v1333 = vld [vmem:[%s2 + $0x48] sm:$0xf]
    %v1334 = vld [vmem:[%s2 + $0x4c] sm:$0xf]
    %v1335 = vld [vmem:[%s2 + $0x50] sm:$0xf]
    %v1336 = vld [vmem:[%s2 + $0x54] sm:$0xf]
    %v1337 = vld [vmem:[%s2 + $0x58] sm:$0xf]
    %v1338 = vld [vmem:[%s2 + $0x5c] sm:$0xf]
    %v1339 = vld [vmem:[%s2 + $0x60] sm:$0xf]
    %v1340 = vld [vmem:[%s2 + $0x64] sm:$0xf]
    %v1341 = vld [vmem:[%s2 + $0x68] sm:$0xf]
    %v1342 = vld [vmem:[%s2 + $0x6c] sm:$0xf]
    %v1343 = vld [vmem:[%s2 + $0x70] sm:$0xf]
    %v1344 = vld [vmem:[%s2 + $0x74] sm:$0xf]
    %v1345 = vld [vmem:[%s2 + $0x78] sm:$0xf]
    %v1346 = vld [vmem:[%s2 + $0x7c] sm:$0xf]
    %v1347 = vld [vmem:[%s2 + $0x80] sm:$0xf]
    %v1348 = vld [vmem:[%s2 + $0x84] sm:$0xf]
    %v1349 = vld [vmem:[%s2 + $0x88] sm:$0xf]
    %v1350 = vld [vmem:[%s2 + $0x8c] sm:$0xf]
    %v1351 = vld [vmem:[%s2 + $0x90] sm:$0xf]
    %v1352 = vld [vmem:[%s2 + $0x94] sm:$0xf]
    %v1353 = vld [vmem:[%s2 + $0x98] sm:$0xf]
    %v1354 = vld [vmem:[%s2 + $0x9c] sm:$0xf]
    %v1355 = vld [vmem:[%s2 + $0xa0] sm:$0xf]
    %v1356 = vld [vmem:[%s2 + $0xa4] sm:$0xf]
    %v1357 = vld [vmem:[%s2 + $0xa8] sm:$0xf]
    %v1358 = vld [vmem:[%s2 + $0xac] sm:$0xf]
    %v1359 = vld [vmem:[%s2 + $0xb0] sm:$0xf]
    %v1360 = vld [vmem:[%s2 + $0xb4] sm:$0xf]
    %v1361 = vld [vmem:[%s2 + $0xb8] sm:$0xf]
    %v1362 = vld [vmem:[%s2 + $0xbc] sm:$0xf]
    %v1363 = vld [vmem:[%s2 + $0xc0] sm:$0xf]
    %v1364 = vld [vmem:[%s2 + $0xc4] sm:$0xf]
    %v1365 = vld [vmem:[%s2 + $0xc8] sm:$0xf]
    %v1366 = vld [vmem:[%s2 + $0xcc] sm:$0xf]
    %v1367 = vld [vmem:[%s2 + $0xd0] sm:$0xf]
    %v1368 = vld [vmem:[%s2 + $0xd4] sm:$0xf]
    %v1369 = vld [vmem:[%s2 + $0xd8] sm:$0xf]
    %v1370 = vld [vmem:[%s2 + $0xdc] sm:$0xf]
    %v1371 = vld [vmem:[%s2 + $0xe0] sm:$0xf]
    %v1372 = vld [vmem:[%s2 + $0xe4] sm:$0xf]
    %v1373 = vld [vmem:[%s2 + $0xe8] sm:$0xf]
    %v1374 = vld [vmem:[%s2 + $0xec] sm:$0xf]
    %v1375 = vld [vmem:[%s2 + $0xf0] sm:$0xf]
    %v1376 = vld [vmem:[%s2 + $0xf4] sm:$0xf]
    %v1377 = vld [vmem:[%s2 + $0xf8] sm:$0xf]
    %v1378 = vld [vmem:[%s2 + $0xfc] sm:$0xf]
    %v1379 = vld [vmem:[%s2 + $0x100] sm:$0xf]
    %v1380 = vld [vmem:[%s2 + $0x104] sm:$0xf]
    %v1381 = vld [vmem:[%s2 + $0x108] sm:$0xf]
    %v1382 = vld [vmem:[%s2 + $0x10c] sm:$0xf]
    %v1383 = vld [vmem:[%s2 + $0x110] sm:$0xf]
    %v1384 = vld [vmem:[%s2 + $0x114] sm:$0xf]
    %v1385 = vld [vmem:[%s2 + $0x118] sm:$0xf]
    %v1386 = vld [vmem:[%s2 + $0x11c] sm:$0xf]
    %v1387 = vld [vmem:[%s2 + $0x120] sm:$0xf]
    %v1388 = vld [vmem:[%s2 + $0x124] sm:$0xf]
    %v1389 = vld [vmem:[%s2 + $0x128] sm:$0xf]
    %v1390 = vld [vmem:[%s2 + $0x12c] sm:$0xf]
    %v1391 = vld [vmem:[%s2 + $0x130] sm:$0xf]
    %v1392 = vld [vmem:[%s2 + $0x134] sm:$0xf]
    %v1393 = vld [vmem:[%s2 + $0x138] sm:$0xf]
    %v1394 = vld [vmem:[%s2 + $0x13c] sm:$0xf]
    %v1395 = vld [vmem:[%s2 + $0x140] sm:$0xf]
    %v1396 = vld [vmem:[%s2 + $0x144] sm:$0xf]
    %v1397 = vld [vmem:[%s2 + $0x148] sm:$0xf]
    %v1398 = vld [vmem:[%s2 + $0x14c] sm:$0xf]
    %v1399 = vld [vmem:[%s2 + $0x150] sm:$0xf]
    %v1400 = vld [vmem:[%s2 + $0x154] sm:$0xf]
    %v1401 = vld [vmem:[%s2 + $0x158] sm:$0xf]
    %v1402 = vld [vmem:[%s2 + $0x15c] sm:$0xf]
    %v1403 = vld [vmem:[%s2 + $0x160] sm:$0xf]
    %v1404 = vld [vmem:[%s2 + $0x164] sm:$0xf]
    %v1405 = vld [vmem:[%s2 + $0x168] sm:$0xf]
    %v1406 = vld [vmem:[%s2 + $0x16c] sm:$0xf]
    %v1407 = vld [vmem:[%s2 + $0x170] sm:$0xf]
    %v1408 = vld [vmem:[%s2 + $0x174] sm:$0xf]
    %v1409 = vld [vmem:[%s2 + $0x178] sm:$0xf]
    %v1410 = vld [vmem:[%s2 + $0x17c] sm:$0xf]
    %v1411 = vld [vmem:[%s2 + $0x180] sm:$0xf]
    %v1412 = vld [vmem:[%s2 + $0x184] sm:$0xf]
    %v1413 = vld [vmem:[%s2 + $0x188] sm:$0xf]
    %v1414 = vld [vmem:[%s2 + $0x18c] sm:$0xf]
    %v1415 = vld [vmem:[%s2 + $0x190] sm:$0xf]
    %v1416 = vld [vmem:[%s2 + $0x194] sm:$0xf]
    %v1417 = vld [vmem:[%s2 + $0x198] sm:$0xf]
    %v1418 = vld [vmem:[%s2 + $0x19c] sm:$0xf]
    %v1419 = vld [vmem:[%s2 + $0x1a0] sm:$0xf]
    %v1420 = vld [vmem:[%s2 + $0x1a4] sm:$0xf]
    %v1421 = vld [vmem:[%s2 + $0x1a8] sm:$0xf]
    %v1422 = vld [vmem:[%s2 + $0x1ac] sm:$0xf]
    %v1423 = vld [vmem:[%s2 + $0x1b0] sm:$0xf]
    %v1424 = vld [vmem:[%s2 + $0x1b4] sm:$0xf]
    %v1425 = vld [vmem:[%s2 + $0x1b8] sm:$0xf]
    %v1426 = vld [vmem:[%s2 + $0x1bc] sm:$0xf]
    %v1427 = vld [vmem:[%s2 + $0x1c0] sm:$0xf]
    %v1428 = vld [vmem:[%s2 + $0x1c4] sm:$0xf]
    %v1429 = vld [vmem:[%s2 + $0x1c8] sm:$0xf]
    %v1430 = vld [vmem:[%s2 + $0x1cc] sm:$0xf]
    %v1431 = vld [vmem:[%s2 + $0x1d0] sm:$0xf]
    %v1432 = vld [vmem:[%s2 + $0x1d4] sm:$0xf]
    %v1433 = vld [vmem:[%s2 + $0x1d8] sm:$0xf]
    %v1434 = vld [vmem:[%s2 + $0x1dc] sm:$0xf]
    %v1435 = vld [vmem:[%s2 + $0x1e0] sm:$0xf]
    %v1436 = vld [vmem:[%s2 + $0x1e4] sm:$0xf]
    %v1437 = vld [vmem:[%s2 + $0x1e8] sm:$0xf]
    %v1438 = vld [vmem:[%s2 + $0x1ec] sm:$0xf]
    %v1439 = vld [vmem:[%s2 + $0x1f0] sm:$0xf]
    %v1440 = vld [vmem:[%s2 + $0x1f4] sm:$0xf]
    %v1441 = vld [vmem:[%s2 + $0x1f8] sm:$0xf]
    %v1442 = vld [vmem:[%s2 + $0x1fc] sm:$0xf]
    %v1571 = vunpack.c.l.b16 %v1315
    %v1572 = vunpack.c.l.b16 %v1316
    %v1573 = vunpack.c.l.b16 %v1317
    %v1574 = vunpack.c.l.b16 %v1318
    %v1575 = vunpack.c.l.b16 %v1319
    %v1576 = vunpack.c.l.b16 %v1320
    %v1577 = vunpack.c.l.b16 %v1321
    %v1578 = vunpack.c.l.b16 %v1322
    %v1579 = vunpack.c.l.b16 %v1323
    %v1580 = vunpack.c.l.b16 %v1324
    %v1581 = vunpack.c.l.b16 %v1325
    %v1582 = vunpack.c.l.b16 %v1326
    %v1583 = vunpack.c.l.b16 %v1327
    %v1584 = vunpack.c.l.b16 %v1328
    %v1585 = vunpack.c.l.b16 %v1329
    %v1586 = vunpack.c.l.b16 %v1330
    %v1587 = vunpack.c.l.b16 %v1331
    %v1588 = vunpack.c.l.b16 %v1332
    %v1589 = vunpack.c.l.b16 %v1333
    %v1590 = vunpack.c.l.b16 %v1334
    %v1591 = vunpack.c.l.b16 %v1335
    %v1592 = vunpack.c.l.b16 %v1336
    %v1593 = vunpack.c.l.b16 %v1337
    %v1594 = vunpack.c.l.b16 %v1338
    %v1595 = vunpack.c.l.b16 %v1339
    %v1596 = vunpack.c.l.b16 %v1340
    %v1597 = vunpack.c.l.b16 %v1341
    %v1598 = vunpack.c.l.b16 %v1342
    %v1599 = vunpack.c.l.b16 %v1343
    %v1600 = vunpack.c.l.b16 %v1344
    %v1601 = vunpack.c.l.b16 %v1345
    %v1602 = vunpack.c.l.b16 %v1346
    %v1603 = vunpack.c.l.b16 %v1347
    %v1604 = vunpack.c.l.b16 %v1348
    %v1605 = vunpack.c.l.b16 %v1349
    %v1606 = vunpack.c.l.b16 %v1350
    %v1607 = vunpack.c.l.b16 %v1351
    %v1608 = vunpack.c.l.b16 %v1352
    %v1609 = vunpack.c.l.b16 %v1353
    %v1610 = vunpack.c.l.b16 %v1354
    %v1611 = vunpack.c.l.b16 %v1355
    %v1612 = vunpack.c.l.b16 %v1356
    %v1613 = vunpack.c.l.b16 %v1357
    %v1614 = vunpack.c.l.b16 %v1358
    %v1615 = vunpack.c.l.b16 %v1359
    %v1616 = vunpack.c.l.b16 %v1360
    %v1617 = vunpack.c.l.b16 %v1361
    %v1618 = vunpack.c.l.b16 %v1362
    %v1619 = vunpack.c.l.b16 %v1363
    %v1620 = vunpack.c.l.b16 %v1364
    %v1621 = vunpack.c.l.b16 %v1365
    %v1622 = vunpack.c.l.b16 %v1366
    %v1623 = vunpack.c.l.b16 %v1367
    %v1624 = vunpack.c.l.b16 %v1368
    %v1625 = vunpack.c.l.b16 %v1369
    %v1626 = vunpack.c.l.b16 %v1370
    %v1627 = vunpack.c.l.b16 %v1371
    %v1628 = vunpack.c.l.b16 %v1372
    %v1629 = vunpack.c.l.b16 %v1373
    %v1630 = vunpack.c.l.b16 %v1374
    %v1631 = vunpack.c.l.b16 %v1375
    %v1632 = vunpack.c.l.b16 %v1376
    %v1633 = vunpack.c.l.b16 %v1377
    %v1634 = vunpack.c.l.b16 %v1378
    %v1635 = vunpack.c.l.b16 %v1379
    %v1636 = vunpack.c.l.b16 %v1380
    %v1637 = vunpack.c.l.b16 %v1381
    %v1638 = vunpack.c.l.b16 %v1382
    %v1639 = vunpack.c.l.b16 %v1383
    %v1640 = vunpack.c.l.b16 %v1384
    %v1641 = vunpack.c.l.b16 %v1385
    %v1642 = vunpack.c.l.b16 %v1386
    %v1643 = vunpack.c.l.b16 %v1387
    %v1644 = vunpack.c.l.b16 %v1388
    %v1645 = vunpack.c.l.b16 %v1389
    %v1646 = vunpack.c.l.b16 %v1390
    %v1647 = vunpack.c.l.b16 %v1391
    %v1648 = vunpack.c.l.b16 %v1392
    %v1649 = vunpack.c.l.b16 %v1393
    %v1650 = vunpack.c.l.b16 %v1394
    %v1651 = vunpack.c.l.b16 %v1395
    %v1652 = vunpack.c.l.b16 %v1396
    %v1653 = vunpack.c.l.b16 %v1397
    %v1654 = vunpack.c.l.b16 %v1398
    %v1655 = vunpack.c.l.b16 %v1399
    %v1656 = vunpack.c.l.b16 %v1400
    %v1657 = vunpack.c.l.b16 %v1401
    %v1658 = vunpack.c.l.b16 %v1402
    %v1659 = vunpack.c.l.b16 %v1403
    %v1660 = vunpack.c.l.b16 %v1404
    %v1661 = vunpack.c.l.b16 %v1405
    %v1662 = vunpack.c.l.b16 %v1406
    %v1663 = vunpack.c.l.b16 %v1407
    %v1664 = vunpack.c.l.b16 %v1408
    %v1665 = vunpack.c.l.b16 %v1409
    %v1666 = vunpack.c.l.b16 %v1410
    %v1667 = vunpack.c.l.b16 %v1411
    %v1668 = vunpack.c.l.b16 %v1412
    %v1669 = vunpack.c.l.b16 %v1413
    %v1670 = vunpack.c.l.b16 %v1414
    %v1671 = vunpack.c.l.b16 %v1415
    %v1672 = vunpack.c.l.b16 %v1416
    %v1673 = vunpack.c.l.b16 %v1417
    %v1674 = vunpack.c.l.b16 %v1418
    %v1675 = vunpack.c.l.b16 %v1419
    %v1676 = vunpack.c.l.b16 %v1420
    %v1677 = vunpack.c.l.b16 %v1421
    %v1678 = vunpack.c.l.b16 %v1422
    %v1679 = vunpack.c.l.b16 %v1423
    %v1680 = vunpack.c.l.b16 %v1424
    %v1681 = vunpack.c.l.b16 %v1425
    %v1682 = vunpack.c.l.b16 %v1426
    %v1683 = vunpack.c.l.b16 %v1427
    %v1684 = vunpack.c.l.b16 %v1428
    %v1685 = vunpack.c.l.b16 %v1429
    %v1686 = vunpack.c.l.b16 %v1430
    %v1687 = vunpack.c.l.b16 %v1431
    %v1688 = vunpack.c.l.b16 %v1432
    %v1689 = vunpack.c.l.b16 %v1433
    %v1690 = vunpack.c.l.b16 %v1434
    %v1691 = vunpack.c.l.b16 %v1435
    %v1692 = vunpack.c.l.b16 %v1436
    %v1693 = vunpack.c.l.b16 %v1437
    %v1694 = vunpack.c.l.b16 %v1438
    %v1695 = vunpack.c.l.b16 %v1439
    %v1696 = vunpack.c.l.b16 %v1440
    %v1697 = vunpack.c.l.b16 %v1441
    %v1698 = vunpack.c.l.b16 %v1442
    %v1699 = vpack.c.b16 %v1572, %v1571
    %v1700 = vpack.c.b16 %v1574, %v1573
    %v1701 = vpack.c.b16 %v1576, %v1575
    %v1702 = vpack.c.b16 %v1578, %v1577
    %v1703 = vpack.c.b16 %v1580, %v1579
    %v1704 = vpack.c.b16 %v1582, %v1581
    %v1705 = vpack.c.b16 %v1584, %v1583
    %v1706 = vpack.c.b16 %v1586, %v1585
    %v1707 = vpack.c.b16 %v1588, %v1587
    %v1708 = vpack.c.b16 %v1590, %v1589
    %v1709 = vpack.c.b16 %v1592, %v1591
    %v1710 = vpack.c.b16 %v1594, %v1593
    %v1711 = vpack.c.b16 %v1596, %v1595
    %v1712 = vpack.c.b16 %v1598, %v1597
    %v1713 = vpack.c.b16 %v1600, %v1599
    %v1714 = vpack.c.b16 %v1602, %v1601
    %v1715 = vpack.c.b16 %v1604, %v1603
    %v1716 = vpack.c.b16 %v1606, %v1605
    %v1717 = vpack.c.b16 %v1608, %v1607
    %v1718 = vpack.c.b16 %v1610, %v1609
    %v1719 = vpack.c.b16 %v1612, %v1611
    %v1720 = vpack.c.b16 %v1614, %v1613
    %v1721 = vpack.c.b16 %v1616, %v1615
    %v1722 = vpack.c.b16 %v1618, %v1617
    %v1723 = vpack.c.b16 %v1620, %v1619
    %v1724 = vpack.c.b16 %v1622, %v1621
    %v1725 = vpack.c.b16 %v1624, %v1623
    %v1726 = vpack.c.b16 %v1626, %v1625
    %v1727 = vpack.c.b16 %v1628, %v1627
    %v1728 = vpack.c.b16 %v1630, %v1629
    %v1729 = vpack.c.b16 %v1632, %v1631
    %v1730 = vpack.c.b16 %v1634, %v1633
    %v1731 = vpack.c.b16 %v1636, %v1635
    %v1732 = vpack.c.b16 %v1638, %v1637
    %v1733 = vpack.c.b16 %v1640, %v1639
    %v1734 = vpack.c.b16 %v1642, %v1641
    %v1735 = vpack.c.b16 %v1644, %v1643
    %v1736 = vpack.c.b16 %v1646, %v1645
    %v1737 = vpack.c.b16 %v1648, %v1647
    %v1738 = vpack.c.b16 %v1650, %v1649
    %v1739 = vpack.c.b16 %v1652, %v1651
    %v1740 = vpack.c.b16 %v1654, %v1653
    %v1741 = vpack.c.b16 %v1656, %v1655
    %v1742 = vpack.c.b16 %v1658, %v1657
    %v1743 = vpack.c.b16 %v1660, %v1659
    %v1744 = vpack.c.b16 %v1662, %v1661
    %v1745 = vpack.c.b16 %v1664, %v1663
    %v1746 = vpack.c.b16 %v1666, %v1665
    %v1747 = vpack.c.b16 %v1668, %v1667
    %v1748 = vpack.c.b16 %v1670, %v1669
    %v1749 = vpack.c.b16 %v1672, %v1671
    %v1750 = vpack.c.b16 %v1674, %v1673
    %v1751 = vpack.c.b16 %v1676, %v1675
    %v1752 = vpack.c.b16 %v1678, %v1677
    %v1753 = vpack.c.b16 %v1680, %v1679
    %v1754 = vpack.c.b16 %v1682, %v1681
    %v1755 = vpack.c.b16 %v1684, %v1683
    %v1756 = vpack.c.b16 %v1686, %v1685
    %v1757 = vpack.c.b16 %v1688, %v1687
    %v1758 = vpack.c.b16 %v1690, %v1689
    %v1759 = vpack.c.b16 %v1692, %v1691
    %v1760 = vpack.c.b16 %v1694, %v1693
    %v1761 = vpack.c.b16 %v1696, %v1695
    %v1762 = vpack.c.b16 %v1698, %v1697
    %1827 = vmatprep.subr.bf16.mxu0 0
    %1828 = vmatpush1.bf16.msra.mxu0 %v1706
    %1829 = vmatprep.subr.bf16.mxu0 0
    %1830 = vmatpush1.bf16.msra.mxu0 %v1705
    %1831 = vmatprep.subr.bf16.mxu0 0
    %1832 = vmatpush1.bf16.msra.mxu0 %v1704
    %1833 = vmatprep.subr.bf16.mxu0 0
    %1834 = vmatpush1.bf16.msra.mxu0 %v1703
    %1835 = vmatprep.subr.bf16.mxu0 0
    %1836 = vmatpush1.bf16.msra.mxu0 %v1702
    %1837 = vmatprep.subr.bf16.mxu0 0
    %1838 = vmatpush1.bf16.msra.mxu0 %v1701
    %1839 = vmatprep.subr.bf16.mxu0 0
    %1840 = vmatpush1.bf16.msra.mxu0 %v1700
    %1841 = vmatprep.subr.bf16.mxu0 0
    %1842 = vmatpush1.bf16.msra.mxu0 %v1699
    %1843 = vmatprep.subr.bf16.mxu0 0
    %1844 = vmatpush2.bf16.msra.mxu0 %v1714
    %1845 = vmatprep.subr.bf16.mxu0 0
    %1846 = vmatpush2.bf16.msra.mxu0 %v1713
    %1847 = vmatprep.subr.bf16.mxu0 0
    %1848 = vmatpush2.bf16.msra.mxu0 %v1712
    %1849 = vmatprep.subr.bf16.mxu0 0
    %1850 = vmatpush2.bf16.msra.mxu0 %v1711
    %1851 = vmatprep.subr.bf16.mxu0 0
    %1852 = vmatpush2.bf16.msra.mxu0 %v1710
    %1853 = vmatprep.subr.bf16.mxu0 0
    %1854 = vmatpush2.bf16.msra.mxu0 %v1709
    %1855 = vmatprep.subr.bf16.mxu0 0
    %1856 = vmatpush2.bf16.msra.mxu0 %v1708
    %1857 = vmatprep.subr.bf16.mxu0 0
    %1858 = vmatpush2.bf16.msra.mxu0 %v1707
    %1859 = vmatprep.mubr.bf16.mxu0 %v1188
    %1860 = vmatmul.mubr.bf16.gmra.mxu0 %v1187
    %v1861 = vpop.f32.mrf.mxu0
    %v1862 = vadd.f32 0.0, %v1861
    %v1863 = vpop.f32.mrf.mxu0
    %v1864 = vpop.f32.mrf.mxu0
    %v1865 = vadd.f32 0.0, %v1864
    %v1866 = vpop.f32.mrf.mxu0
    %1867 = vmatprep.mubr.bf16.mxu0 %v1196
    %1868 = vmatmul.mubr.bf16.gmra.mxu0 %v1195
    %v1869 = vpop.f32.mrf.mxu0
    %v1870 = vadd.f32 0.0, %v1869
    %v1871 = vpop.f32.mrf.mxu0
    %v1872 = vpop.f32.mrf.mxu0
    %v1873 = vadd.f32 0.0, %v1872
    %v1874 = vpop.f32.mrf.mxu0
    %1875 = vmatprep.mubr.bf16.mxu0 %v1204
    %1876 = vmatmul.mubr.bf16.gmra.mxu0 %v1203
    %v1877 = vpop.f32.mrf.mxu0
    %v1878 = vadd.f32 0.0, %v1877
    %v1879 = vpop.f32.mrf.mxu0
    %v1880 = vpop.f32.mrf.mxu0
    %v1881 = vadd.f32 0.0, %v1880
    %v1882 = vpop.f32.mrf.mxu0
    %1883 = vmatprep.mubr.bf16.mxu0 %v1212
    %1884 = vmatmul.mubr.bf16.gmra.mxu0 %v1211
    %v1885 = vpop.f32.mrf.mxu0
    %v1886 = vadd.f32 0.0, %v1885
    %v1887 = vpop.f32.mrf.mxu0
    %v1888 = vpop.f32.mrf.mxu0
    %v1889 = vadd.f32 0.0, %v1888
    %v1890 = vpop.f32.mrf.mxu0
    %1891 = vmatprep.mubr.bf16.mxu0 %v1220
    %1892 = vmatmul.mubr.bf16.gmra.mxu0 %v1219
    %v1893 = vpop.f32.mrf.mxu0
    %v1894 = vadd.f32 0.0, %v1893
    %v1895 = vpop.f32.mrf.mxu0
    %v1896 = vpop.f32.mrf.mxu0
    %v1897 = vadd.f32 0.0, %v1896
    %v1898 = vpop.f32.mrf.mxu0
    %1899 = vmatprep.mubr.bf16.mxu0 %v1228
    %1900 = vmatmul.mubr.bf16.gmra.mxu0 %v1227
    %v1901 = vpop.f32.mrf.mxu0
    %v1902 = vadd.f32 0.0, %v1901
    %v1903 = vpop.f32.mrf.mxu0
    %v1904 = vpop.f32.mrf.mxu0
    %v1905 = vadd.f32 0.0, %v1904
    %v1906 = vpop.f32.mrf.mxu0
    %1907 = vmatprep.mubr.bf16.mxu0 %v1236
    %1908 = vmatmul.mubr.bf16.gmra.mxu0 %v1235
    %v1909 = vpop.f32.mrf.mxu0
    %v1910 = vadd.f32 0.0, %v1909
    %v1911 = vpop.f32.mrf.mxu0
    %v1912 = vpop.f32.mrf.mxu0
    %v1913 = vadd.f32 0.0, %v1912
    %v1914 = vpop.f32.mrf.mxu0
    %1915 = vmatprep.mubr.bf16.mxu0 %v1244
    %1916 = vmatmul.mubr.bf16.gmra.mxu0 %v1243
    %v1917 = vpop.f32.mrf.mxu0
    %v1918 = vadd.f32 0.0, %v1917
    %v1919 = vpop.f32.mrf.mxu0
    %v1920 = vpop.f32.mrf.mxu0
    %v1921 = vadd.f32 0.0, %v1920
    %v1922 = vpop.f32.mrf.mxu0
    %1923 = vmatprep.mubr.bf16.mxu0 %v1252
    %1924 = vmatmul.mubr.bf16.gmra.mxu0 %v1251
    %v1925 = vpop.f32.mrf.mxu0
    %v1926 = vadd.f32 0.0, %v1925
    %v1927 = vpop.f32.mrf.mxu0
    %v1928 = vpop.f32.mrf.mxu0
    %v1929 = vadd.f32 0.0, %v1928
    %v1930 = vpop.f32.mrf.mxu0
    %1931 = vmatprep.mubr.bf16.mxu0 %v1260
    %1932 = vmatmul.mubr.bf16.gmra.mxu0 %v1259
    %v1933 = vpop.f32.mrf.mxu0
    %v1934 = vadd.f32 0.0, %v1933
    %v1935 = vpop.f32.mrf.mxu0
    %v1936 = vpop.f32.mrf.mxu0
    %v1937 = vadd.f32 0.0, %v1936
    %v1938 = vpop.f32.mrf.mxu0
    %1939 = vmatprep.mubr.bf16.mxu0 %v1268
    %1940 = vmatmul.mubr.bf16.gmra.mxu0 %v1267
    %v1941 = vpop.f32.mrf.mxu0
    %v1942 = vadd.f32 0.0, %v1941
    %v1943 = vpop.f32.mrf.mxu0
    %v1944 = vpop.f32.mrf.mxu0
    %v1945 = vadd.f32 0.0, %v1944
    %v1946 = vpop.f32.mrf.mxu0
    %1947 = vmatprep.mubr.bf16.mxu0 %v1276
    %1948 = vmatmul.mubr.bf16.gmra.mxu0 %v1275
    %v1949 = vpop.f32.mrf.mxu0
    %v1950 = vadd.f32 0.0, %v1949
    %v1951 = vpop.f32.mrf.mxu0
    %v1952 = vpop.f32.mrf.mxu0
    %v1953 = vadd.f32 0.0, %v1952
    %v1954 = vpop.f32.mrf.mxu0
    %1955 = vmatprep.mubr.bf16.mxu0 %v1284
    %1956 = vmatmul.mubr.bf16.gmra.mxu0 %v1283
    %v1957 = vpop.f32.mrf.mxu0
    %v1958 = vadd.f32 0.0, %v1957
    %v1959 = vpop.f32.mrf.mxu0
    %v1960 = vpop.f32.mrf.mxu0
    %v1961 = vadd.f32 0.0, %v1960
    %v1962 = vpop.f32.mrf.mxu0
    %1963 = vmatprep.mubr.bf16.mxu0 %v1292
    %1964 = vmatmul.mubr.bf16.gmra.mxu0 %v1291
    %v1965 = vpop.f32.mrf.mxu0
    %v1966 = vadd.f32 0.0, %v1965
    %v1967 = vpop.f32.mrf.mxu0
    %v1968 = vpop.f32.mrf.mxu0
    %v1969 = vadd.f32 0.0, %v1968
    %v1970 = vpop.f32.mrf.mxu0
    %1971 = vmatprep.mubr.bf16.mxu0 %v1300
    %1972 = vmatmul.mubr.bf16.gmra.mxu0 %v1299
    %v1973 = vpop.f32.mrf.mxu0
    %v1974 = vadd.f32 0.0, %v1973
    %v1975 = vpop.f32.mrf.mxu0
    %v1976 = vpop.f32.mrf.mxu0
    %v1977 = vadd.f32 0.0, %v1976
    %v1978 = vpop.f32.mrf.mxu0
    %1979 = vmatprep.mubr.bf16.mxu0 %v1308
    %1980 = vmatmul.mubr.bf16.gmra.mxu0 %v1307
    %v1981 = vpop.f32.mrf.mxu0
    %v1982 = vadd.f32 0.0, %v1981
    %v1983 = vpop.f32.mrf.mxu0
    %v1984 = vpop.f32.mrf.mxu0
    %v1985 = vadd.f32 0.0, %v1984
    %v1986 = vpop.f32.mrf.mxu0
    %1987 = vdwg.mxu0
    %1988 = vmatprep.subr.bf16.mxu0 0
    %1989 = vmatpush1.bf16.msra.mxu0 %v1722
    %1990 = vmatprep.subr.bf16.mxu0 0
    %1991 = vmatpush1.bf16.msra.mxu0 %v1721
    %1992 = vmatprep.subr.bf16.mxu0 0
    %1993 = vmatpush1.bf16.msra.mxu0 %v1720
    %1994 = vmatprep.subr.bf16.mxu0 0
    %1995 = vmatpush1.bf16.msra.mxu0 %v1719
    %1996 = vmatprep.subr.bf16.mxu0 0
    %1997 = vmatpush1.bf16.msra.mxu0 %v1718
    %1998 = vmatprep.subr.bf16.mxu0 0
    %1999 = vmatpush1.bf16.msra.mxu0 %v1717
    %2000 = vmatprep.subr.bf16.mxu0 0
    %2001 = vmatpush1.bf16.msra.mxu0 %v1716
    %2002 = vmatprep.subr.bf16.mxu0 0
    %2003 = vmatpush1.bf16.msra.mxu0 %v1715
    %2004 = vmatprep.subr.bf16.mxu0 0
    %2005 = vmatpush2.bf16.msra.mxu0 %v1730
    %2006 = vmatprep.subr.bf16.mxu0 0
    %2007 = vmatpush2.bf16.msra.mxu0 %v1729
    %2008 = vmatprep.subr.bf16.mxu0 0
    %2009 = vmatpush2.bf16.msra.mxu0 %v1728
    %2010 = vmatprep.subr.bf16.mxu0 0
    %2011 = vmatpush2.bf16.msra.mxu0 %v1727
    %2012 = vmatprep.subr.bf16.mxu0 0
    %2013 = vmatpush2.bf16.msra.mxu0 %v1726
    %2014 = vmatprep.subr.bf16.mxu0 0
    %2015 = vmatpush2.bf16.msra.mxu0 %v1725
    %2016 = vmatprep.subr.bf16.mxu0 0
    %2017 = vmatpush2.bf16.msra.mxu0 %v1724
    %2018 = vmatprep.subr.bf16.mxu0 0
    %2019 = vmatpush2.bf16.msra.mxu0 %v1723
    %2020 = vmatprep.mubr.bf16.mxu0 %v1190
    %2021 = vmatmul.mubr.bf16.gmra.mxu0 %v1189
    %v2022 = vpop.f32.mrf.mxu0
    %v2023 = vadd.f32 %v1862, %v2022
    %v2024 = vpop.f32.mrf.mxu0
    %v2025 = vpop.f32.mrf.mxu0
    %v2026 = vadd.f32 %v1865, %v2025
    %v2027 = vpop.f32.mrf.mxu0
    %2028 = vmatprep.mubr.bf16.mxu0 %v1198
    %2029 = vmatmul.mubr.bf16.gmra.mxu0 %v1197
    %v2030 = vpop.f32.mrf.mxu0
    %v2031 = vadd.f32 %v1870, %v2030
    %v2032 = vpop.f32.mrf.mxu0
    %v2033 = vpop.f32.mrf.mxu0
    %v2034 = vadd.f32 %v1873, %v2033
    %v2035 = vpop.f32.mrf.mxu0
    %2036 = vmatprep.mubr.bf16.mxu0 %v1206
    %2037 = vmatmul.mubr.bf16.gmra.mxu0 %v1205
    %v2038 = vpop.f32.mrf.mxu0
    %v2039 = vadd.f32 %v1878, %v2038
    %v2040 = vpop.f32.mrf.mxu0
    %v2041 = vpop.f32.mrf.mxu0
    %v2042 = vadd.f32 %v1881, %v2041
    %v2043 = vpop.f32.mrf.mxu0
    %2044 = vmatprep.mubr.bf16.mxu0 %v1214
    %2045 = vmatmul.mubr.bf16.gmra.mxu0 %v1213
    %v2046 = vpop.f32.mrf.mxu0
    %v2047 = vadd.f32 %v1886, %v2046
    %v2048 = vpop.f32.mrf.mxu0
    %v2049 = vpop.f32.mrf.mxu0
    %v2050 = vadd.f32 %v1889, %v2049
    %v2051 = vpop.f32.mrf.mxu0
    %2052 = vmatprep.mubr.bf16.mxu0 %v1222
    %2053 = vmatmul.mubr.bf16.gmra.mxu0 %v1221
    %v2054 = vpop.f32.mrf.mxu0
    %v2055 = vadd.f32 %v1894, %v2054
    %v2056 = vpop.f32.mrf.mxu0
    %v2057 = vpop.f32.mrf.mxu0
    %v2058 = vadd.f32 %v1897, %v2057
    %v2059 = vpop.f32.mrf.mxu0
    %2060 = vmatprep.mubr.bf16.mxu0 %v1230
    %2061 = vmatmul.mubr.bf16.gmra.mxu0 %v1229
    %v2062 = vpop.f32.mrf.mxu0
    %v2063 = vadd.f32 %v1902, %v2062
    %v2064 = vpop.f32.mrf.mxu0
    %v2065 = vpop.f32.mrf.mxu0
    %v2066 = vadd.f32 %v1905, %v2065
    %v2067 = vpop.f32.mrf.mxu0
    %2068 = vmatprep.mubr.bf16.mxu0 %v1238
    %2069 = vmatmul.mubr.bf16.gmra.mxu0 %v1237
    %v2070 = vpop.f32.mrf.mxu0
    %v2071 = vadd.f32 %v1910, %v2070
    %v2072 = vpop.f32.mrf.mxu0
    %v2073 = vpop.f32.mrf.mxu0
    %v2074 = vadd.f32 %v1913, %v2073
    %v2075 = vpop.f32.mrf.mxu0
    %2076 = vmatprep.mubr.bf16.mxu0 %v1246
    %2077 = vmatmul.mubr.bf16.gmra.mxu0 %v1245
    %v2078 = vpop.f32.mrf.mxu0
    %v2079 = vadd.f32 %v1918, %v2078
    %v2080 = vpop.f32.mrf.mxu0
    %v2081 = vpop.f32.mrf.mxu0
    %v2082 = vadd.f32 %v1921, %v2081
    %v2083 = vpop.f32.mrf.mxu0
    %2084 = vmatprep.mubr.bf16.mxu0 %v1254
    %2085 = vmatmul.mubr.bf16.gmra.mxu0 %v1253
    %v2086 = vpop.f32.mrf.mxu0
    %v2087 = vadd.f32 %v1926, %v2086
    %v2088 = vpop.f32.mrf.mxu0
    %v2089 = vpop.f32.mrf.mxu0
    %v2090 = vadd.f32 %v1929, %v2089
    %v2091 = vpop.f32.mrf.mxu0
    %2092 = vmatprep.mubr.bf16.mxu0 %v1262
    %2093 = vmatmul.mubr.bf16.gmra.mxu0 %v1261
    %v2094 = vpop.f32.mrf.mxu0
    %v2095 = vadd.f32 %v1934, %v2094
    %v2096 = vpop.f32.mrf.mxu0
    %v2097 = vpop.f32.mrf.mxu0
    %v2098 = vadd.f32 %v1937, %v2097
    %v2099 = vpop.f32.mrf.mxu0
    %2100 = vmatprep.mubr.bf16.mxu0 %v1270
    %2101 = vmatmul.mubr.bf16.gmra.mxu0 %v1269
    %v2102 = vpop.f32.mrf.mxu0
    %v2103 = vadd.f32 %v1942, %v2102
    %v2104 = vpop.f32.mrf.mxu0
    %v2105 = vpop.f32.mrf.mxu0
    %v2106 = vadd.f32 %v1945, %v2105
    %v2107 = vpop.f32.mrf.mxu0
    %2108 = vmatprep.mubr.bf16.mxu0 %v1278
    %2109 = vmatmul.mubr.bf16.gmra.mxu0 %v1277
    %v2110 = vpop.f32.mrf.mxu0
    %v2111 = vadd.f32 %v1950, %v2110
    %v2112 = vpop.f32.mrf.mxu0
    %v2113 = vpop.f32.mrf.mxu0
    %v2114 = vadd.f32 %v1953, %v2113
    %v2115 = vpop.f32.mrf.mxu0
    %2116 = vmatprep.mubr.bf16.mxu0 %v1286
    %2117 = vmatmul.mubr.bf16.gmra.mxu0 %v1285
    %v2118 = vpop.f32.mrf.mxu0
    %v2119 = vadd.f32 %v1958, %v2118
    %v2120 = vpop.f32.mrf.mxu0
    %v2121 = vpop.f32.mrf.mxu0
    %v2122 = vadd.f32 %v1961, %v2121
    %v2123 = vpop.f32.mrf.mxu0
    %2124 = vmatprep.mubr.bf16.mxu0 %v1294
    %2125 = vmatmul.mubr.bf16.gmra.mxu0 %v1293
    %v2126 = vpop.f32.mrf.mxu0
    %v2127 = vadd.f32 %v1966, %v2126
    %v2128 = vpop.f32.mrf.mxu0
    %v2129 = vpop.f32.mrf.mxu0
    %v2130 = vadd.f32 %v1969, %v2129
    %v2131 = vpop.f32.mrf.mxu0
    %2132 = vmatprep.mubr.bf16.mxu0 %v1302
    %2133 = vmatmul.mubr.bf16.gmra.mxu0 %v1301
    %v2134 = vpop.f32.mrf.mxu0
    %v2135 = vadd.f32 %v1974, %v2134
    %v2136 = vpop.f32.mrf.mxu0
    %v2137 = vpop.f32.mrf.mxu0
    %v2138 = vadd.f32 %v1977, %v2137
    %v2139 = vpop.f32.mrf.mxu0
    %2140 = vmatprep.mubr.bf16.mxu0 %v1310
    %2141 = vmatmul.mubr.bf16.gmra.mxu0 %v1309
    %v2142 = vpop.f32.mrf.mxu0
    %v2143 = vadd.f32 %v1982, %v2142
    %v2144 = vpop.f32.mrf.mxu0
    %v2145 = vpop.f32.mrf.mxu0
    %v2146 = vadd.f32 %v1985, %v2145
    %v2147 = vpop.f32.mrf.mxu0
    %2148 = vdwg.mxu0
    %2149 = vmatprep.subr.bf16.mxu0 0
    %2150 = vmatpush1.bf16.msra.mxu0 %v1738
    %2151 = vmatprep.subr.bf16.mxu0 0
    %2152 = vmatpush1.bf16.msra.mxu0 %v1737
    %2153 = vmatprep.subr.bf16.mxu0 0
    %2154 = vmatpush1.bf16.msra.mxu0 %v1736
    %2155 = vmatprep.subr.bf16.mxu0 0
    %2156 = vmatpush1.bf16.msra.mxu0 %v1735
    %2157 = vmatprep.subr.bf16.mxu0 0
    %2158 = vmatpush1.bf16.msra.mxu0 %v1734
    %2159 = vmatprep.subr.bf16.mxu0 0
    %2160 = vmatpush1.bf16.msra.mxu0 %v1733
    %2161 = vmatprep.subr.bf16.mxu0 0
    %2162 = vmatpush1.bf16.msra.mxu0 %v1732
    %2163 = vmatprep.subr.bf16.mxu0 0
    %2164 = vmatpush1.bf16.msra.mxu0 %v1731
    %2165 = vmatprep.subr.bf16.mxu0 0
    %2166 = vmatpush2.bf16.msra.mxu0 %v1746
    %2167 = vmatprep.subr.bf16.mxu0 0
    %2168 = vmatpush2.bf16.msra.mxu0 %v1745
    %2169 = vmatprep.subr.bf16.mxu0 0
    %2170 = vmatpush2.bf16.msra.mxu0 %v1744
    %2171 = vmatprep.subr.bf16.mxu0 0
    %2172 = vmatpush2.bf16.msra.mxu0 %v1743
    %2173 = vmatprep.subr.bf16.mxu0 0
    %2174 = vmatpush2.bf16.msra.mxu0 %v1742
    %2175 = vmatprep.subr.bf16.mxu0 0
    %2176 = vmatpush2.bf16.msra.mxu0 %v1741
    %2177 = vmatprep.subr.bf16.mxu0 0
    %2178 = vmatpush2.bf16.msra.mxu0 %v1740
    %2179 = vmatprep.subr.bf16.mxu0 0
    %2180 = vmatpush2.bf16.msra.mxu0 %v1739
    %2181 = vmatprep.mubr.bf16.mxu0 %v1192
    %2182 = vmatmul.mubr.bf16.gmra.mxu0 %v1191
    %v2183 = vpop.f32.mrf.mxu0
    %v2184 = vadd.f32 %v2023, %v2183
    %v2185 = vpop.f32.mrf.mxu0
    %v2186 = vpop.f32.mrf.mxu0
    %v2187 = vadd.f32 %v2026, %v2186
    %v2188 = vpop.f32.mrf.mxu0
    %2189 = vmatprep.mubr.bf16.mxu0 %v1200
    %2190 = vmatmul.mubr.bf16.gmra.mxu0 %v1199
    %v2191 = vpop.f32.mrf.mxu0
    %v2192 = vadd.f32 %v2031, %v2191
    %v2193 = vpop.f32.mrf.mxu0
    %v2194 = vpop.f32.mrf.mxu0
    %v2195 = vadd.f32 %v2034, %v2194
    %v2196 = vpop.f32.mrf.mxu0
    %2197 = vmatprep.mubr.bf16.mxu0 %v1208
    %2198 = vmatmul.mubr.bf16.gmra.mxu0 %v1207
    %v2199 = vpop.f32.mrf.mxu0
    %v2200 = vadd.f32 %v2039, %v2199
    %v2201 = vpop.f32.mrf.mxu0
    %v2202 = vpop.f32.mrf.mxu0
    %v2203 = vadd.f32 %v2042, %v2202
    %v2204 = vpop.f32.mrf.mxu0
    %2205 = vmatprep.mubr.bf16.mxu0 %v1216
    %2206 = vmatmul.mubr.bf16.gmra.mxu0 %v1215
    %v2207 = vpop.f32.mrf.mxu0
    %v2208 = vadd.f32 %v2047, %v2207
    %v2209 = vpop.f32.mrf.mxu0
    %v2210 = vpop.f32.mrf.mxu0
    %v2211 = vadd.f32 %v2050, %v2210
    %v2212 = vpop.f32.mrf.mxu0
    %2213 = vmatprep.mubr.bf16.mxu0 %v1224
    %2214 = vmatmul.mubr.bf16.gmra.mxu0 %v1223
    %v2215 = vpop.f32.mrf.mxu0
    %v2216 = vadd.f32 %v2055, %v2215
    %v2217 = vpop.f32.mrf.mxu0
    %v2218 = vpop.f32.mrf.mxu0
    %v2219 = vadd.f32 %v2058, %v2218
    %v2220 = vpop.f32.mrf.mxu0
    %2221 = vmatprep.mubr.bf16.mxu0 %v1232
    %2222 = vmatmul.mubr.bf16.gmra.mxu0 %v1231
    %v2223 = vpop.f32.mrf.mxu0
    %v2224 = vadd.f32 %v2063, %v2223
    %v2225 = vpop.f32.mrf.mxu0
    %v2226 = vpop.f32.mrf.mxu0
    %v2227 = vadd.f32 %v2066, %v2226
    %v2228 = vpop.f32.mrf.mxu0
    %2229 = vmatprep.mubr.bf16.mxu0 %v1240
    %2230 = vmatmul.mubr.bf16.gmra.mxu0 %v1239
    %v2231 = vpop.f32.mrf.mxu0
    %v2232 = vadd.f32 %v2071, %v2231
    %v2233 = vpop.f32.mrf.mxu0
    %v2234 = vpop.f32.mrf.mxu0
    %v2235 = vadd.f32 %v2074, %v2234
    %v2236 = vpop.f32.mrf.mxu0
    %2237 = vmatprep.mubr.bf16.mxu0 %v1248
    %2238 = vmatmul.mubr.bf16.gmra.mxu0 %v1247
    %v2239 = vpop.f32.mrf.mxu0
    %v2240 = vadd.f32 %v2079, %v2239
    %v2241 = vpop.f32.mrf.mxu0
    %v2242 = vpop.f32.mrf.mxu0
    %v2243 = vadd.f32 %v2082, %v2242
    %v2244 = vpop.f32.mrf.mxu0
    %2245 = vmatprep.mubr.bf16.mxu0 %v1256
    %2246 = vmatmul.mubr.bf16.gmra.mxu0 %v1255
    %v2247 = vpop.f32.mrf.mxu0
    %v2248 = vadd.f32 %v2087, %v2247
    %v2249 = vpop.f32.mrf.mxu0
    %v2250 = vpop.f32.mrf.mxu0
    %v2251 = vadd.f32 %v2090, %v2250
    %v2252 = vpop.f32.mrf.mxu0
    %2253 = vmatprep.mubr.bf16.mxu0 %v1264
    %2254 = vmatmul.mubr.bf16.gmra.mxu0 %v1263
    %v2255 = vpop.f32.mrf.mxu0
    %v2256 = vadd.f32 %v2095, %v2255
    %v2257 = vpop.f32.mrf.mxu0
    %v2258 = vpop.f32.mrf.mxu0
    %v2259 = vadd.f32 %v2098, %v2258
    %v2260 = vpop.f32.mrf.mxu0
    %2261 = vmatprep.mubr.bf16.mxu0 %v1272
    %2262 = vmatmul.mubr.bf16.gmra.mxu0 %v1271
    %v2263 = vpop.f32.mrf.mxu0
    %v2264 = vadd.f32 %v2103, %v2263
    %v2265 = vpop.f32.mrf.mxu0
    %v2266 = vpop.f32.mrf.mxu0
    %v2267 = vadd.f32 %v2106, %v2266
    %v2268 = vpop.f32.mrf.mxu0
    %2269 = vmatprep.mubr.bf16.mxu0 %v1280
    %2270 = vmatmul.mubr.bf16.gmra.mxu0 %v1279
    %v2271 = vpop.f32.mrf.mxu0
    %v2272 = vadd.f32 %v2111, %v2271
    %v2273 = vpop.f32.mrf.mxu0
    %v2274 = vpop.f32.mrf.mxu0
    %v2275 = vadd.f32 %v2114, %v2274
    %v2276 = vpop.f32.mrf.mxu0
    %2277 = vmatprep.mubr.bf16.mxu0 %v1288
    %2278 = vmatmul.mubr.bf16.gmra.mxu0 %v1287
    %v2279 = vpop.f32.mrf.mxu0
    %v2280 = vadd.f32 %v2119, %v2279
    %v2281 = vpop.f32.mrf.mxu0
    %v2282 = vpop.f32.mrf.mxu0
    %v2283 = vadd.f32 %v2122, %v2282
    %v2284 = vpop.f32.mrf.mxu0
    %2285 = vmatprep.mubr.bf16.mxu0 %v1296
    %2286 = vmatmul.mubr.bf16.gmra.mxu0 %v1295
    %v2287 = vpop.f32.mrf.mxu0
    %v2288 = vadd.f32 %v2127, %v2287
    %v2289 = vpop.f32.mrf.mxu0
    %v2290 = vpop.f32.mrf.mxu0
    %v2291 = vadd.f32 %v2130, %v2290
    %v2292 = vpop.f32.mrf.mxu0
    %2293 = vmatprep.mubr.bf16.mxu0 %v1304
    %2294 = vmatmul.mubr.bf16.gmra.mxu0 %v1303
    %v2295 = vpop.f32.mrf.mxu0
    %v2296 = vadd.f32 %v2135, %v2295
    %v2297 = vpop.f32.mrf.mxu0
    %v2298 = vpop.f32.mrf.mxu0
    %v2299 = vadd.f32 %v2138, %v2298
    %v2300 = vpop.f32.mrf.mxu0
    %2301 = vmatprep.mubr.bf16.mxu0 %v1312
    %2302 = vmatmul.mubr.bf16.gmra.mxu0 %v1311
    %v2303 = vpop.f32.mrf.mxu0
    %v2304 = vadd.f32 %v2143, %v2303
    %v2305 = vpop.f32.mrf.mxu0
    %v2306 = vpop.f32.mrf.mxu0
    %v2307 = vadd.f32 %v2146, %v2306
    %v2308 = vpop.f32.mrf.mxu0
    %2309 = vdwg.mxu0
    %2310 = vmatprep.subr.bf16.mxu0 0
    %2311 = vmatpush1.bf16.msra.mxu0 %v1754
    %2312 = vmatprep.subr.bf16.mxu0 0
    %2313 = vmatpush1.bf16.msra.mxu0 %v1753
    %2314 = vmatprep.subr.bf16.mxu0 0
    %2315 = vmatpush1.bf16.msra.mxu0 %v1752
    %2316 = vmatprep.subr.bf16.mxu0 0
    %2317 = vmatpush1.bf16.msra.mxu0 %v1751
    %2318 = vmatprep.subr.bf16.mxu0 0
    %2319 = vmatpush1.bf16.msra.mxu0 %v1750
    %2320 = vmatprep.subr.bf16.mxu0 0
    %2321 = vmatpush1.bf16.msra.mxu0 %v1749
    %2322 = vmatprep.subr.bf16.mxu0 0
    %2323 = vmatpush1.bf16.msra.mxu0 %v1748
    %2324 = vmatprep.subr.bf16.mxu0 0
    %2325 = vmatpush1.bf16.msra.mxu0 %v1747
    %2326 = vmatprep.subr.bf16.mxu0 0
    %2327 = vmatpush2.bf16.msra.mxu0 %v1762
    %2328 = vmatprep.subr.bf16.mxu0 0
    %2329 = vmatpush2.bf16.msra.mxu0 %v1761
    %2330 = vmatprep.subr.bf16.mxu0 0
    %2331 = vmatpush2.bf16.msra.mxu0 %v1760
    %2332 = vmatprep.subr.bf16.mxu0 0
    %2333 = vmatpush2.bf16.msra.mxu0 %v1759
    %2334 = vmatprep.subr.bf16.mxu0 0
    %2335 = vmatpush2.bf16.msra.mxu0 %v1758
    %2336 = vmatprep.subr.bf16.mxu0 0
    %2337 = vmatpush2.bf16.msra.mxu0 %v1757
    %2338 = vmatprep.subr.bf16.mxu0 0
    %2339 = vmatpush2.bf16.msra.mxu0 %v1756
    %2340 = vmatprep.subr.bf16.mxu0 0
    %2341 = vmatpush2.bf16.msra.mxu0 %v1755
    %2342 = vmatprep.mubr.bf16.mxu0 %v1194
    %2343 = vmatmul.mubr.bf16.gmra.mxu0 %v1193
    %v2344 = vpop.f32.mrf.mxu0
    %v2345 = vadd.f32 %v2184, %v2344
    %v2346 = vpop.f32.mrf.mxu0
    %v2347 = vpop.f32.mrf.mxu0
    %v2348 = vadd.f32 %v2187, %v2347
    %v2349 = vpop.f32.mrf.mxu0
    %2350 = vmatprep.mubr.bf16.mxu0 %v1202
    %2351 = vmatmul.mubr.bf16.gmra.mxu0 %v1201
    %v2352 = vpop.f32.mrf.mxu0
    %v2353 = vadd.f32 %v2192, %v2352
    %v2354 = vpop.f32.mrf.mxu0
    %v2355 = vpop.f32.mrf.mxu0
    %v2356 = vadd.f32 %v2195, %v2355
    %v2357 = vpop.f32.mrf.mxu0
    %2358 = vmatprep.mubr.bf16.mxu0 %v1210
    %2359 = vmatmul.mubr.bf16.gmra.mxu0 %v1209
    %v2360 = vpop.f32.mrf.mxu0
    %v2361 = vadd.f32 %v2200, %v2360
    %v2362 = vpop.f32.mrf.mxu0
    %v2363 = vpop.f32.mrf.mxu0
    %v2364 = vadd.f32 %v2203, %v2363
    %v2365 = vpop.f32.mrf.mxu0
    %2366 = vmatprep.mubr.bf16.mxu0 %v1218
    %2367 = vmatmul.mubr.bf16.gmra.mxu0 %v1217
    %v2368 = vpop.f32.mrf.mxu0
    %v2369 = vadd.f32 %v2208, %v2368
    %v2370 = vpop.f32.mrf.mxu0
    %v2371 = vpop.f32.mrf.mxu0
    %v2372 = vadd.f32 %v2211, %v2371
    %v2373 = vpop.f32.mrf.mxu0
    %2374 = vmatprep.mubr.bf16.mxu0 %v1226
    %2375 = vmatmul.mubr.bf16.gmra.mxu0 %v1225
    %v2376 = vpop.f32.mrf.mxu0
    %v2377 = vadd.f32 %v2216, %v2376
    %v2378 = vpop.f32.mrf.mxu0
    %v2379 = vpop.f32.mrf.mxu0
    %v2380 = vadd.f32 %v2219, %v2379
    %v2381 = vpop.f32.mrf.mxu0
    %2382 = vmatprep.mubr.bf16.mxu0 %v1234
    %2383 = vmatmul.mubr.bf16.gmra.mxu0 %v1233
    %v2384 = vpop.f32.mrf.mxu0
    %v2385 = vadd.f32 %v2224, %v2384
    %v2386 = vpop.f32.mrf.mxu0
    %v2387 = vpop.f32.mrf.mxu0
    %v2388 = vadd.f32 %v2227, %v2387
    %v2389 = vpop.f32.mrf.mxu0
    %2390 = vmatprep.mubr.bf16.mxu0 %v1242
    %2391 = vmatmul.mubr.bf16.gmra.mxu0 %v1241
    %v2392 = vpop.f32.mrf.mxu0
    %v2393 = vadd.f32 %v2232, %v2392
    %v2394 = vpop.f32.mrf.mxu0
    %v2395 = vpop.f32.mrf.mxu0
    %v2396 = vadd.f32 %v2235, %v2395
    %v2397 = vpop.f32.mrf.mxu0
    %2398 = vmatprep.mubr.bf16.mxu0 %v1250
    %2399 = vmatmul.mubr.bf16.gmra.mxu0 %v1249
    %v2400 = vpop.f32.mrf.mxu0
    %v2401 = vadd.f32 %v2240, %v2400
    %v2402 = vpop.f32.mrf.mxu0
    %v2403 = vpop.f32.mrf.mxu0
    %v2404 = vadd.f32 %v2243, %v2403
    %v2405 = vpop.f32.mrf.mxu0
    %2406 = vmatprep.mubr.bf16.mxu0 %v1258
    %2407 = vmatmul.mubr.bf16.gmra.mxu0 %v1257
    %v2408 = vpop.f32.mrf.mxu0
    %v2409 = vadd.f32 %v2248, %v2408
    %v2410 = vpop.f32.mrf.mxu0
    %v2411 = vpop.f32.mrf.mxu0
    %v2412 = vadd.f32 %v2251, %v2411
    %v2413 = vpop.f32.mrf.mxu0
    %2414 = vmatprep.mubr.bf16.mxu0 %v1266
    %2415 = vmatmul.mubr.bf16.gmra.mxu0 %v1265
    %v2416 = vpop.f32.mrf.mxu0
    %v2417 = vadd.f32 %v2256, %v2416
    %v2418 = vpop.f32.mrf.mxu0
    %v2419 = vpop.f32.mrf.mxu0
    %v2420 = vadd.f32 %v2259, %v2419
    %v2421 = vpop.f32.mrf.mxu0
    %2422 = vmatprep.mubr.bf16.mxu0 %v1274
    %2423 = vmatmul.mubr.bf16.gmra.mxu0 %v1273
    %v2424 = vpop.f32.mrf.mxu0
    %v2425 = vadd.f32 %v2264, %v2424
    %v2426 = vpop.f32.mrf.mxu0
    %v2427 = vpop.f32.mrf.mxu0
    %v2428 = vadd.f32 %v2267, %v2427
    %v2429 = vpop.f32.mrf.mxu0
    %2430 = vmatprep.mubr.bf16.mxu0 %v1282
    %2431 = vmatmul.mubr.bf16.gmra.mxu0 %v1281
    %v2432 = vpop.f32.mrf.mxu0
    %v2433 = vadd.f32 %v2272, %v2432
    %v2434 = vpop.f32.mrf.mxu0
    %v2435 = vpop.f32.mrf.mxu0
    %v2436 = vadd.f32 %v2275, %v2435
    %v2437 = vpop.f32.mrf.mxu0
    %2438 = vmatprep.mubr.bf16.mxu0 %v1290
    %2439 = vmatmul.mubr.bf16.gmra.mxu0 %v1289
    %v2440 = vpop.f32.mrf.mxu0
    %v2441 = vadd.f32 %v2280, %v2440
    %v2442 = vpop.f32.mrf.mxu0
    %v2443 = vpop.f32.mrf.mxu0
    %v2444 = vadd.f32 %v2283, %v2443
    %v2445 = vpop.f32.mrf.mxu0
    %2446 = vmatprep.mubr.bf16.mxu0 %v1298
    %2447 = vmatmul.mubr.bf16.gmra.mxu0 %v1297
    %v2448 = vpop.f32.mrf.mxu0
    %v2449 = vadd.f32 %v2288, %v2448
    %v2450 = vpop.f32.mrf.mxu0
    %v2451 = vpop.f32.mrf.mxu0
    %v2452 = vadd.f32 %v2291, %v2451
    %v2453 = vpop.f32.mrf.mxu0
    %2454 = vmatprep.mubr.bf16.mxu0 %v1306
    %2455 = vmatmul.mubr.bf16.gmra.mxu0 %v1305
    %v2456 = vpop.f32.mrf.mxu0
    %v2457 = vadd.f32 %v2296, %v2456
    %v2458 = vpop.f32.mrf.mxu0
    %v2459 = vpop.f32.mrf.mxu0
    %v2460 = vadd.f32 %v2299, %v2459
    %v2461 = vpop.f32.mrf.mxu0
    %2462 = vmatprep.mubr.bf16.mxu0 %v1314
    %2463 = vmatmul.mubr.bf16.gmra.mxu0 %v1313
    %v2464 = vpop.f32.mrf.mxu0
    %v2465 = vadd.f32 %v2304, %v2464
    %v2466 = vpop.f32.mrf.mxu0
    %v2467 = vpop.f32.mrf.mxu0
    %v2468 = vadd.f32 %v2307, %v2467
    %v2469 = vpop.f32.mrf.mxu0
    %2470 = vdwg.mxu0
    %v2471 = vadd.f32 %v506, %v2345
    %v2472 = vadd.f32 %v507, %v2348
    %v2473 = vadd.f32 %v508, %v2353
    %v2474 = vadd.f32 %v509, %v2356
    %v2475 = vadd.f32 %v510, %v2361
    %v2476 = vadd.f32 %v511, %v2364
    %v2477 = vadd.f32 %v512, %v2369
    %v2478 = vadd.f32 %v513, %v2372
    %v2479 = vadd.f32 %v514, %v2377
    %v2480 = vadd.f32 %v515, %v2380
    %v2481 = vadd.f32 %v516, %v2385
    %v2482 = vadd.f32 %v517, %v2388
    %v2483 = vadd.f32 %v518, %v2393
    %v2484 = vadd.f32 %v519, %v2396
    %v2485 = vadd.f32 %v520, %v2401
    %v2486 = vadd.f32 %v521, %v2404
    %v2487 = vadd.f32 %v522, %v2409
    %v2488 = vadd.f32 %v523, %v2412
    %v2489 = vadd.f32 %v524, %v2417
    %v2490 = vadd.f32 %v525, %v2420
    %v2491 = vadd.f32 %v526, %v2425
    %v2492 = vadd.f32 %v527, %v2428
    %v2493 = vadd.f32 %v528, %v2433
    %v2494 = vadd.f32 %v529, %v2436
    %v2495 = vadd.f32 %v530, %v2441
    %v2496 = vadd.f32 %v531, %v2444
    %v2497 = vadd.f32 %v532, %v2449
    %v2498 = vadd.f32 %v533, %v2452
    %v2499 = vadd.f32 %v534, %v2457
    %v2500 = vadd.f32 %v535, %v2460
    %v2501 = vadd.f32 %v536, %v2465
    %v2502 = vadd.f32 %v537, %v2468
    %v2503 = vpack.c.bf16 %v2472, %v2471
    %v2504 = vpack.c.bf16 %v2474, %v2473
    %v2505 = vpack.c.bf16 %v2476, %v2475
    %v2506 = vpack.c.bf16 %v2478, %v2477
    %v2507 = vpack.c.bf16 %v2480, %v2479
    %v2508 = vpack.c.bf16 %v2482, %v2481
    %v2509 = vpack.c.bf16 %v2484, %v2483
    %v2510 = vpack.c.bf16 %v2486, %v2485
    %v2511 = vpack.c.bf16 %v2488, %v2487
    %v2512 = vpack.c.bf16 %v2490, %v2489
    %v2513 = vpack.c.bf16 %v2492, %v2491
    %v2514 = vpack.c.bf16 %v2494, %v2493
    %v2515 = vpack.c.bf16 %v2496, %v2495
    %v2516 = vpack.c.bf16 %v2498, %v2497
    %v2517 = vpack.c.bf16 %v2500, %v2499
    %v2518 = vpack.c.bf16 %v2502, %v2501
    %v2519 = vld [vmem:[#allocation2] sm:$0xf]
    %v2520 = vld [vmem:[#allocation2 + $0x4] sm:$0xf]
    %v2521 = vld [vmem:[#allocation2 + $0x8] sm:$0xf]
    %v2522 = vld [vmem:[#allocation2 + $0xc] sm:$0xf]
    %v2523 = vld [vmem:[#allocation2 + $0x10] sm:$0xf]
    %v2524 = vld [vmem:[#allocation2 + $0x14] sm:$0xf]
    %v2525 = vld [vmem:[#allocation2 + $0x18] sm:$0xf]
    %v2526 = vld [vmem:[#allocation2 + $0x1c] sm:$0xf]
    %v2527 = vld [vmem:[#allocation2 + $0x20] sm:$0xf]
    %v2528 = vld [vmem:[#allocation2 + $0x24] sm:$0xf]
    %v2529 = vld [vmem:[#allocation2 + $0x28] sm:$0xf]
    %v2530 = vld [vmem:[#allocation2 + $0x2c] sm:$0xf]
    %v2531 = vld [vmem:[#allocation2 + $0x30] sm:$0xf]
    %v2532 = vld [vmem:[#allocation2 + $0x34] sm:$0xf]
    %v2533 = vld [vmem:[#allocation2 + $0x38] sm:$0xf]
    %v2534 = vld [vmem:[#allocation2 + $0x3c] sm:$0xf]
    %v2535 = vld [vmem:[%s6] sm:$0x1]
    %v2537 = vlaneseq
    %v2538 = vshrl.u32 %v2537, 7
    %v2539 = vsub.s32 0, %v2538
    %v2540 = vrot.slane %v2535, %v2539
    %v2558 = vunpack.c.l.b16 %v2519
    %v2559 = vunpack.c.l.b16 %v2520
    %v2560 = vunpack.c.l.b16 %v2521
    %v2561 = vunpack.c.l.b16 %v2522
    %v2562 = vunpack.c.l.b16 %v2523
    %v2563 = vunpack.c.l.b16 %v2524
    %v2564 = vunpack.c.l.b16 %v2525
    %v2565 = vunpack.c.l.b16 %v2526
    %v2566 = vunpack.c.l.b16 %v2527
    %v2567 = vunpack.c.l.b16 %v2528
    %v2568 = vunpack.c.l.b16 %v2529
    %v2569 = vunpack.c.l.b16 %v2530
    %v2570 = vunpack.c.l.b16 %v2531
    %v2571 = vunpack.c.l.b16 %v2532
    %v2572 = vunpack.c.l.b16 %v2533
    %v2573 = vunpack.c.l.b16 %v2534
    %v2574 = vpack.c.b16 %v2559, %v2558
    %v2575 = vpack.c.b16 %v2561, %v2560
    %v2576 = vpack.c.b16 %v2563, %v2562
    %v2577 = vpack.c.b16 %v2565, %v2564
    %v2578 = vpack.c.b16 %v2567, %v2566
    %v2579 = vpack.c.b16 %v2569, %v2568
    %v2580 = vpack.c.b16 %v2571, %v2570
    %v2581 = vpack.c.b16 %v2573, %v2572
    %2590 = vmatprep.subr.bf16.mxu0 0
    %2591 = vmatpush1.bf16.msra.mxu0 %v2581
    %2592 = vmatprep.subr.bf16.mxu0 0
    %2593 = vmatpush1.bf16.msra.mxu0 %v2580
    %2594 = vmatprep.subr.bf16.mxu0 0
    %2595 = vmatpush1.bf16.msra.mxu0 %v2579
    %2596 = vmatprep.subr.bf16.mxu0 0
    %2597 = vmatpush1.bf16.msra.mxu0 %v2578
    %2598 = vmatprep.subr.bf16.mxu0 0
    %2599 = vmatpush1.bf16.msra.mxu0 %v2577
    %2600 = vmatprep.subr.bf16.mxu0 0
    %2601 = vmatpush1.bf16.msra.mxu0 %v2576
    %2602 = vmatprep.subr.bf16.mxu0 0
    %2603 = vmatpush1.bf16.msra.mxu0 %v2575
    %2604 = vmatprep.subr.bf16.mxu0 0
    %2605 = vmatpush1.bf16.msra.mxu0 %v2574
    %2606 = vmatprep.subr.bf16.mxu0 0
    %2607 = vmatpush2.bf16.msra.mxu0 0
    %2608 = vmatprep.subr.bf16.mxu0 0
    %2609 = vmatpush2.bf16.msra.mxu0 0
    %2610 = vmatprep.subr.bf16.mxu0 0
    %2611 = vmatpush2.bf16.msra.mxu0 0
    %2612 = vmatprep.subr.bf16.mxu0 0
    %2613 = vmatpush2.bf16.msra.mxu0 0
    %2614 = vmatprep.subr.bf16.mxu0 0
    %2615 = vmatpush2.bf16.msra.mxu0 0
    %2616 = vmatprep.subr.bf16.mxu0 0
    %2617 = vmatpush2.bf16.msra.mxu0 0
    %2618 = vmatprep.subr.bf16.mxu0 0
    %2619 = vmatpush2.bf16.msra.mxu0 0
    %2620 = vmatprep.subr.bf16.mxu0 0
    %2621 = vmatpush2.bf16.msra.mxu0 0
    %2622 = vmatprep.mubr.bf16.mxu0 0
    %2623 = vmatmul.mubr.bf16.gmra.mxu0 %v2503
    %v2624 = vpop.f32.mrf.mxu0
    %v2625 = vadd.f32 %v2540, %v2624
    %v2626 = vpop.f32.mrf.mxu0
    %v2627 = vpop.f32.mrf.mxu0
    %v2628 = vadd.f32 %v2540, %v2627
    %v2629 = vpop.f32.mrf.mxu0
    %2630 = vmatprep.mubr.bf16.mxu0 0
    %2631 = vmatmul.mubr.bf16.gmra.mxu0 %v2504
    %v2632 = vpop.f32.mrf.mxu0
    %v2633 = vadd.f32 %v2540, %v2632
    %v2634 = vpop.f32.mrf.mxu0
    %v2635 = vpop.f32.mrf.mxu0
    %v2636 = vadd.f32 %v2540, %v2635
    %v2637 = vpop.f32.mrf.mxu0
    %2638 = vmatprep.mubr.bf16.mxu0 0
    %2639 = vmatmul.mubr.bf16.gmra.mxu0 %v2505
    %v2640 = vpop.f32.mrf.mxu0
    %v2641 = vadd.f32 %v2540, %v2640
    %v2642 = vpop.f32.mrf.mxu0
    %v2643 = vpop.f32.mrf.mxu0
    %v2644 = vadd.f32 %v2540, %v2643
    %v2645 = vpop.f32.mrf.mxu0
    %2646 = vmatprep.mubr.bf16.mxu0 0
    %2647 = vmatmul.mubr.bf16.gmra.mxu0 %v2506
    %v2648 = vpop.f32.mrf.mxu0
    %v2649 = vadd.f32 %v2540, %v2648
    %v2650 = vpop.f32.mrf.mxu0
    %v2651 = vpop.f32.mrf.mxu0
    %v2652 = vadd.f32 %v2540, %v2651
    %v2653 = vpop.f32.mrf.mxu0
    %2654 = vmatprep.mubr.bf16.mxu0 0
    %2655 = vmatmul.mubr.bf16.gmra.mxu0 %v2507
    %v2656 = vpop.f32.mrf.mxu0
    %v2657 = vadd.f32 %v2540, %v2656
    %v2658 = vpop.f32.mrf.mxu0
    %v2659 = vpop.f32.mrf.mxu0
    %v2660 = vadd.f32 %v2540, %v2659
    %v2661 = vpop.f32.mrf.mxu0
    %2662 = vmatprep.mubr.bf16.mxu0 0
    %2663 = vmatmul.mubr.bf16.gmra.mxu0 %v2508
    %v2664 = vpop.f32.mrf.mxu0
    %v2665 = vadd.f32 %v2540, %v2664
    %v2666 = vpop.f32.mrf.mxu0
    %v2667 = vpop.f32.mrf.mxu0
    %v2668 = vadd.f32 %v2540, %v2667
    %v2669 = vpop.f32.mrf.mxu0
    %2670 = vmatprep.mubr.bf16.mxu0 0
    %2671 = vmatmul.mubr.bf16.gmra.mxu0 %v2509
    %v2672 = vpop.f32.mrf.mxu0
    %v2673 = vadd.f32 %v2540, %v2672
    %v2674 = vpop.f32.mrf.mxu0
    %v2675 = vpop.f32.mrf.mxu0
    %v2676 = vadd.f32 %v2540, %v2675
    %v2677 = vpop.f32.mrf.mxu0
    %2678 = vmatprep.mubr.bf16.mxu0 0
    %2679 = vmatmul.mubr.bf16.gmra.mxu0 %v2510
    %v2680 = vpop.f32.mrf.mxu0
    %v2681 = vadd.f32 %v2540, %v2680
    %v2682 = vpop.f32.mrf.mxu0
    %v2683 = vpop.f32.mrf.mxu0
    %v2684 = vadd.f32 %v2540, %v2683
    %v2685 = vpop.f32.mrf.mxu0
    %2686 = vmatprep.mubr.bf16.mxu0 0
    %2687 = vmatmul.mubr.bf16.gmra.mxu0 %v2511
    %v2688 = vpop.f32.mrf.mxu0
    %v2689 = vadd.f32 %v2540, %v2688
    %v2690 = vpop.f32.mrf.mxu0
    %v2691 = vpop.f32.mrf.mxu0
    %v2692 = vadd.f32 %v2540, %v2691
    %v2693 = vpop.f32.mrf.mxu0
    %2694 = vmatprep.mubr.bf16.mxu0 0
    %2695 = vmatmul.mubr.bf16.gmra.mxu0 %v2512
    %v2696 = vpop.f32.mrf.mxu0
    %v2697 = vadd.f32 %v2540, %v2696
    %v2698 = vpop.f32.mrf.mxu0
    %v2699 = vpop.f32.mrf.mxu0
    %v2700 = vadd.f32 %v2540, %v2699
    %v2701 = vpop.f32.mrf.mxu0
    %2702 = vmatprep.mubr.bf16.mxu0 0
    %2703 = vmatmul.mubr.bf16.gmra.mxu0 %v2513
    %v2704 = vpop.f32.mrf.mxu0
    %v2705 = vadd.f32 %v2540, %v2704
    %v2706 = vpop.f32.mrf.mxu0
    %v2707 = vpop.f32.mrf.mxu0
    %v2708 = vadd.f32 %v2540, %v2707
    %v2709 = vpop.f32.mrf.mxu0
    %2710 = vmatprep.mubr.bf16.mxu0 0
    %2711 = vmatmul.mubr.bf16.gmra.mxu0 %v2514
    %v2712 = vpop.f32.mrf.mxu0
    %v2713 = vadd.f32 %v2540, %v2712
    %v2714 = vpop.f32.mrf.mxu0
    %v2715 = vpop.f32.mrf.mxu0
    %v2716 = vadd.f32 %v2540, %v2715
    %v2717 = vpop.f32.mrf.mxu0
    %2718 = vmatprep.mubr.bf16.mxu0 0
    %2719 = vmatmul.mubr.bf16.gmra.mxu0 %v2515
    %v2720 = vpop.f32.mrf.mxu0
    %v2721 = vadd.f32 %v2540, %v2720
    %v2722 = vpop.f32.mrf.mxu0
    %v2723 = vpop.f32.mrf.mxu0
    %v2724 = vadd.f32 %v2540, %v2723
    %v2725 = vpop.f32.mrf.mxu0
    %2726 = vmatprep.mubr.bf16.mxu0 0
    %2727 = vmatmul.mubr.bf16.gmra.mxu0 %v2516
    %v2728 = vpop.f32.mrf.mxu0
    %v2729 = vadd.f32 %v2540, %v2728
    %v2730 = vpop.f32.mrf.mxu0
    %v2731 = vpop.f32.mrf.mxu0
    %v2732 = vadd.f32 %v2540, %v2731
    %v2733 = vpop.f32.mrf.mxu0
    %2734 = vmatprep.mubr.bf16.mxu0 0
    %2735 = vmatmul.mubr.bf16.gmra.mxu0 %v2517
    %v2736 = vpop.f32.mrf.mxu0
    %v2737 = vadd.f32 %v2540, %v2736
    %v2738 = vpop.f32.mrf.mxu0
    %v2739 = vpop.f32.mrf.mxu0
    %v2740 = vadd.f32 %v2540, %v2739
    %v2741 = vpop.f32.mrf.mxu0
    %2742 = vmatprep.mubr.bf16.mxu0 0
    %2743 = vmatmul.mubr.bf16.gmra.mxu0 %v2518
    %v2744 = vpop.f32.mrf.mxu0
    %v2745 = vadd.f32 %v2540, %v2744
    %v2746 = vpop.f32.mrf.mxu0
    %v2747 = vpop.f32.mrf.mxu0
    %v2748 = vadd.f32 %v2540, %v2747
    %v2749 = vpop.f32.mrf.mxu0
    %2750 = vdwg.mxu0
    %v2751 = vmul.f32 %v2625, 0.5
    %v2752 = vmul.f32 %v2628, 0.5
    %v2753 = vmul.f32 %v2633, 0.5
    %v2754 = vmul.f32 %v2636, 0.5
    %v2755 = vmul.f32 %v2641, 0.5
    %v2756 = vmul.f32 %v2644, 0.5
    %v2757 = vmul.f32 %v2649, 0.5
    %v2758 = vmul.f32 %v2652, 0.5
    %v2759 = vmul.f32 %v2657, 0.5
    %v2760 = vmul.f32 %v2660, 0.5
    %v2761 = vmul.f32 %v2665, 0.5
    %v2762 = vmul.f32 %v2668, 0.5
    %v2763 = vmul.f32 %v2673, 0.5
    %v2764 = vmul.f32 %v2676, 0.5
    %v2765 = vmul.f32 %v2681, 0.5
    %v2766 = vmul.f32 %v2684, 0.5
    %v2767 = vmul.f32 %v2689, 0.5
    %v2768 = vmul.f32 %v2692, 0.5
    %v2769 = vmul.f32 %v2697, 0.5
    %v2770 = vmul.f32 %v2700, 0.5
    %v2771 = vmul.f32 %v2705, 0.5
    %v2772 = vmul.f32 %v2708, 0.5
    %v2773 = vmul.f32 %v2713, 0.5
    %v2774 = vmul.f32 %v2716, 0.5
    %v2775 = vmul.f32 %v2721, 0.5
    %v2776 = vmul.f32 %v2724, 0.5
    %v2777 = vmul.f32 %v2729, 0.5
    %v2778 = vmul.f32 %v2732, 0.5
    %v2779 = vmul.f32 %v2737, 0.5
    %v2780 = vmul.f32 %v2740, 0.5
    %v2781 = vmul.f32 %v2745, 0.5
    %v2782 = vmul.f32 %v2748, 0.5
    %v2783 = vmul.f32 %v2625, 0.044715
    %v2784 = vmul.f32 %v2628, 0.044715
    %v2785 = vmul.f32 %v2633, 0.044715
    %v2786 = vmul.f32 %v2636, 0.044715
    %v2787 = vmul.f32 %v2641, 0.044715
    %v2788 = vmul.f32 %v2644, 0.044715
    %v2789 = vmul.f32 %v2649, 0.044715
    %v2790 = vmul.f32 %v2652, 0.044715
    %v2791 = vmul.f32 %v2657, 0.044715
    %v2792 = vmul.f32 %v2660, 0.044715
    %v2793 = vmul.f32 %v2665, 0.044715
    %v2794 = vmul.f32 %v2668, 0.044715
    %v2795 = vmul.f32 %v2673, 0.044715
    %v2796 = vmul.f32 %v2676, 0.044715
    %v2797 = vmul.f32 %v2681, 0.044715
    %v2798 = vmul.f32 %v2684, 0.044715
    %v2799 = vmul.f32 %v2689, 0.044715
    %v2800 = vmul.f32 %v2692, 0.044715
    %v2801 = vmul.f32 %v2697, 0.044715
    %v2802 = vmul.f32 %v2700, 0.044715
    %v2803 = vmul.f32 %v2705, 0.044715
    %v2804 = vmul.f32 %v2708, 0.044715
    %v2805 = vmul.f32 %v2713, 0.044715
    %v2806 = vmul.f32 %v2716, 0.044715
    %v2807 = vmul.f32 %v2721, 0.044715
    %v2808 = vmul.f32 %v2724, 0.044715
    %v2809 = vmul.f32 %v2729, 0.044715
    %v2810 = vmul.f32 %v2732, 0.044715
    %v2811 = vmul.f32 %v2737, 0.044715
    %v2812 = vmul.f32 %v2740, 0.044715
    %v2813 = vmul.f32 %v2745, 0.044715
    %v2814 = vmul.f32 %v2748, 0.044715
    %v2815 = vmul.f32 %v2783, %v2625
    %v2816 = vmul.f32 %v2784, %v2628
    %v2817 = vmul.f32 %v2785, %v2633
    %v2818 = vmul.f32 %v2786, %v2636
    %v2819 = vmul.f32 %v2787, %v2641
    %v2820 = vmul.f32 %v2788, %v2644
    %v2821 = vmul.f32 %v2789, %v2649
    %v2822 = vmul.f32 %v2790, %v2652
    %v2823 = vmul.f32 %v2791, %v2657
    %v2824 = vmul.f32 %v2792, %v2660
    %v2825 = vmul.f32 %v2793, %v2665
    %v2826 = vmul.f32 %v2794, %v2668
    %v2827 = vmul.f32 %v2795, %v2673
    %v2828 = vmul.f32 %v2796, %v2676
    %v2829 = vmul.f32 %v2797, %v2681
    %v2830 = vmul.f32 %v2798, %v2684
    %v2831 = vmul.f32 %v2799, %v2689
    %v2832 = vmul.f32 %v2800, %v2692
    %v2833 = vmul.f32 %v2801, %v2697
    %v2834 = vmul.f32 %v2802, %v2700
    %v2835 = vmul.f32 %v2803, %v2705
    %v2836 = vmul.f32 %v2804, %v2708
    %v2837 = vmul.f32 %v2805, %v2713
    %v2838 = vmul.f32 %v2806, %v2716
    %v2839 = vmul.f32 %v2807, %v2721
    %v2840 = vmul.f32 %v2808, %v2724
    %v2841 = vmul.f32 %v2809, %v2729
    %v2842 = vmul.f32 %v2810, %v2732
    %v2843 = vmul.f32 %v2811, %v2737
    %v2844 = vmul.f32 %v2812, %v2740
    %v2845 = vmul.f32 %v2813, %v2745
    %v2846 = vmul.f32 %v2814, %v2748
    %v2847 = vmul.f32 %v2815, %v2625
    %v2848 = vmul.f32 %v2816, %v2628
    %v2849 = vmul.f32 %v2817, %v2633
    %v2850 = vmul.f32 %v2818, %v2636
    %v2851 = vmul.f32 %v2819, %v2641
    %v2852 = vmul.f32 %v2820, %v2644
    %v2853 = vmul.f32 %v2821, %v2649
    %v2854 = vmul.f32 %v2822, %v2652
    %v2855 = vmul.f32 %v2823, %v2657
    %v2856 = vmul.f32 %v2824, %v2660
    %v2857 = vmul.f32 %v2825, %v2665
    %v2858 = vmul.f32 %v2826, %v2668
    %v2859 = vmul.f32 %v2827, %v2673
    %v2860 = vmul.f32 %v2828, %v2676
    %v2861 = vmul.f32 %v2829, %v2681
    %v2862 = vmul.f32 %v2830, %v2684
    %v2863 = vmul.f32 %v2831, %v2689
    %v2864 = vmul.f32 %v2832, %v2692
    %v2865 = vmul.f32 %v2833, %v2697
    %v2866 = vmul.f32 %v2834, %v2700
    %v2867 = vmul.f32 %v2835, %v2705
    %v2868 = vmul.f32 %v2836, %v2708
    %v2869 = vmul.f32 %v2837, %v2713
    %v2870 = vmul.f32 %v2838, %v2716
    %v2871 = vmul.f32 %v2839, %v2721
    %v2872 = vmul.f32 %v2840, %v2724
    %v2873 = vmul.f32 %v2841, %v2729
    %v2874 = vmul.f32 %v2842, %v2732
    %v2875 = vmul.f32 %v2843, %v2737
    %v2876 = vmul.f32 %v2844, %v2740
    %v2877 = vmul.f32 %v2845, %v2745
    %v2878 = vmul.f32 %v2846, %v2748
    %v2879 = vadd.f32 %v2625, %v2847
    %v2880 = vadd.f32 %v2628, %v2848
    %v2881 = vadd.f32 %v2633, %v2849
    %v2882 = vadd.f32 %v2636, %v2850
    %v2883 = vadd.f32 %v2641, %v2851
    %v2884 = vadd.f32 %v2644, %v2852
    %v2885 = vadd.f32 %v2649, %v2853
    %v2886 = vadd.f32 %v2652, %v2854
    %v2887 = vadd.f32 %v2657, %v2855
    %v2888 = vadd.f32 %v2660, %v2856
    %v2889 = vadd.f32 %v2665, %v2857
    %v2890 = vadd.f32 %v2668, %v2858
    %v2891 = vadd.f32 %v2673, %v2859
    %v2892 = vadd.f32 %v2676, %v2860
    %v2893 = vadd.f32 %v2681, %v2861
    %v2894 = vadd.f32 %v2684, %v2862
    %v2895 = vadd.f32 %v2689, %v2863
    %v2896 = vadd.f32 %v2692, %v2864
    %v2897 = vadd.f32 %v2697, %v2865
    %v2898 = vadd.f32 %v2700, %v2866
    %v2899 = vadd.f32 %v2705, %v2867
    %v2900 = vadd.f32 %v2708, %v2868
    %v2901 = vadd.f32 %v2713, %v2869
    %v2902 = vadd.f32 %v2716, %v2870
    %v2903 = vadd.f32 %v2721, %v2871
    %v2904 = vadd.f32 %v2724, %v2872
    %v2905 = vadd.f32 %v2729, %v2873
    %v2906 = vadd.f32 %v2732, %v2874
    %v2907 = vadd.f32 %v2737, %v2875
    %v2908 = vadd.f32 %v2740, %v2876
    %v2909 = vadd.f32 %v2745, %v2877
    %v2910 = vadd.f32 %v2748, %v2878
    %v2911 = vmul.f32 %v2879, 0.7978846
    %v2912 = vmul.f32 %v2880, 0.7978846
    %v2913 = vmul.f32 %v2881, 0.7978846
    %v2914 = vmul.f32 %v2882, 0.7978846
    %v2915 = vmul.f32 %v2883, 0.7978846
    %v2916 = vmul.f32 %v2884, 0.7978846
    %v2917 = vmul.f32 %v2885, 0.7978846
    %v2918 = vmul.f32 %v2886, 0.7978846
    %v2919 = vmul.f32 %v2887, 0.7978846
    %v2920 = vmul.f32 %v2888, 0.7978846
    %v2921 = vmul.f32 %v2889, 0.7978846
    %v2922 = vmul.f32 %v2890, 0.7978846
    %v2923 = vmul.f32 %v2891, 0.7978846
    %v2924 = vmul.f32 %v2892, 0.7978846
    %v2925 = vmul.f32 %v2893, 0.7978846
    %v2926 = vmul.f32 %v2894, 0.7978846
    %v2927 = vmul.f32 %v2895, 0.7978846
    %v2928 = vmul.f32 %v2896, 0.7978846
    %v2929 = vmul.f32 %v2897, 0.7978846
    %v2930 = vmul.f32 %v2898, 0.7978846
    %v2931 = vmul.f32 %v2899, 0.7978846
    %v2932 = vmul.f32 %v2900, 0.7978846
    %v2933 = vmul.f32 %v2901, 0.7978846
    %v2934 = vmul.f32 %v2902, 0.7978846
    %v2935 = vmul.f32 %v2903, 0.7978846
    %v2936 = vmul.f32 %v2904, 0.7978846
    %v2937 = vmul.f32 %v2905, 0.7978846
    %v2938 = vmul.f32 %v2906, 0.7978846
    %v2939 = vmul.f32 %v2907, 0.7978846
    %v2940 = vmul.f32 %v2908, 0.7978846
    %v2941 = vmul.f32 %v2909, 0.7978846
    %v2942 = vmul.f32 %v2910, 0.7978846
    %v2943 = vtanh.pop %v2911
    %v2944 = vtanh.pop %v2912
    %v2945 = vtanh.pop %v2913
    %v2946 = vtanh.pop %v2914
    %v2947 = vtanh.pop %v2915
    %v2948 = vtanh.pop %v2916
    %v2949 = vtanh.pop %v2917
    %v2950 = vtanh.pop %v2918
    %v2951 = vtanh.pop %v2919
    %v2952 = vtanh.pop %v2920
    %v2953 = vtanh.pop %v2921
    %v2954 = vtanh.pop %v2922
    %v2955 = vtanh.pop %v2923
    %v2956 = vtanh.pop %v2924
    %v2957 = vtanh.pop %v2925
    %v2958 = vtanh.pop %v2926
    %v2959 = vtanh.pop %v2927
    %v2960 = vtanh.pop %v2928
    %v2961 = vtanh.pop %v2929
    %v2962 = vtanh.pop %v2930
    %v2963 = vtanh.pop %v2931
    %v2964 = vtanh.pop %v2932
    %v2965 = vtanh.pop %v2933
    %v2966 = vtanh.pop %v2934
    %v2967 = vtanh.pop %v2935
    %v2968 = vtanh.pop %v2936
    %v2969 = vtanh.pop %v2937
    %v2970 = vtanh.pop %v2938
    %v2971 = vtanh.pop %v2939
    %v2972 = vtanh.pop %v2940
    %v2973 = vtanh.pop %v2941
    %v2974 = vtanh.pop %v2942
    %v2975 = vadd.f32 %v2943, 1.0
    %v2976 = vadd.f32 %v2944, 1.0
    %v2977 = vadd.f32 %v2945, 1.0
    %v2978 = vadd.f32 %v2946, 1.0
    %v2979 = vadd.f32 %v2947, 1.0
    %v2980 = vadd.f32 %v2948, 1.0
    %v2981 = vadd.f32 %v2949, 1.0
    %v2982 = vadd.f32 %v2950, 1.0
    %v2983 = vadd.f32 %v2951, 1.0
    %v2984 = vadd.f32 %v2952, 1.0
    %v2985 = vadd.f32 %v2953, 1.0
    %v2986 = vadd.f32 %v2954, 1.0
    %v2987 = vadd.f32 %v2955, 1.0
    %v2988 = vadd.f32 %v2956, 1.0
    %v2989 = vadd.f32 %v2957, 1.0
    %v2990 = vadd.f32 %v2958, 1.0
    %v2991 = vadd.f32 %v2959, 1.0
    %v2992 = vadd.f32 %v2960, 1.0
    %v2993 = vadd.f32 %v2961, 1.0
    %v2994 = vadd.f32 %v2962, 1.0
    %v2995 = vadd.f32 %v2963, 1.0
    %v2996 = vadd.f32 %v2964, 1.0
    %v2997 = vadd.f32 %v2965, 1.0
    %v2998 = vadd.f32 %v2966, 1.0
    %v2999 = vadd.f32 %v2967, 1.0
    %v3000 = vadd.f32 %v2968, 1.0
    %v3001 = vadd.f32 %v2969, 1.0
    %v3002 = vadd.f32 %v2970, 1.0
    %v3003 = vadd.f32 %v2971, 1.0
    %v3004 = vadd.f32 %v2972, 1.0
    %v3005 = vadd.f32 %v2973, 1.0
    %v3006 = vadd.f32 %v2974, 1.0
    %v3007 = vmul.f32 %v2751, %v2975
    %v3008 = vmul.f32 %v2752, %v2976
    %v3009 = vmul.f32 %v2753, %v2977
    %v3010 = vmul.f32 %v2754, %v2978
    %v3011 = vmul.f32 %v2755, %v2979
    %v3012 = vmul.f32 %v2756, %v2980
    %v3013 = vmul.f32 %v2757, %v2981
    %v3014 = vmul.f32 %v2758, %v2982
    %v3015 = vmul.f32 %v2759, %v2983
    %v3016 = vmul.f32 %v2760, %v2984
    %v3017 = vmul.f32 %v2761, %v2985
    %v3018 = vmul.f32 %v2762, %v2986
    %v3019 = vmul.f32 %v2763, %v2987
    %v3020 = vmul.f32 %v2764, %v2988
    %v3021 = vmul.f32 %v2765, %v2989
    %v3022 = vmul.f32 %v2766, %v2990
    %v3023 = vmul.f32 %v2767, %v2991
    %v3024 = vmul.f32 %v2768, %v2992
    %v3025 = vmul.f32 %v2769, %v2993
    %v3026 = vmul.f32 %v2770, %v2994
    %v3027 = vmul.f32 %v2771, %v2995
    %v3028 = vmul.f32 %v2772, %v2996
    %v3029 = vmul.f32 %v2773, %v2997
    %v3030 = vmul.f32 %v2774, %v2998
    %v3031 = vmul.f32 %v2775, %v2999
    %v3032 = vmul.f32 %v2776, %v3000
    %v3033 = vmul.f32 %v2777, %v3001
    %v3034 = vmul.f32 %v2778, %v3002
    %v3035 = vmul.f32 %v2779, %v3003
    %v3036 = vmul.f32 %v2780, %v3004
    %v3037 = vmul.f32 %v2781, %v3005
    %v3038 = vmul.f32 %v2782, %v3006
    %v3039 = vpack.c.bf16 %v3008, %v3007
    %v3040 = vpack.c.bf16 %v3010, %v3009
    %v3041 = vpack.c.bf16 %v3012, %v3011
    %v3042 = vpack.c.bf16 %v3014, %v3013
    %v3043 = vpack.c.bf16 %v3016, %v3015
    %v3044 = vpack.c.bf16 %v3018, %v3017
    %v3045 = vpack.c.bf16 %v3020, %v3019
    %v3046 = vpack.c.bf16 %v3022, %v3021
    %v3047 = vpack.c.bf16 %v3024, %v3023
    %v3048 = vpack.c.bf16 %v3026, %v3025
    %v3049 = vpack.c.bf16 %v3028, %v3027
    %v3050 = vpack.c.bf16 %v3030, %v3029
    %v3051 = vpack.c.bf16 %v3032, %v3031
    %v3052 = vpack.c.bf16 %v3034, %v3033
    %v3053 = vpack.c.bf16 %v3036, %v3035
    %v3054 = vpack.c.bf16 %v3038, %v3037
    %v3055 = vld [vmem:[#allocation4] sm:$0xf]
    %v3056 = vld [vmem:[#allocation4 + $0x4] sm:$0xf]
    %v3057 = vld [vmem:[#allocation4 + $0x8] sm:$0xf]
    %v3058 = vld [vmem:[#allocation4 + $0xc] sm:$0xf]
    %v3059 = vld [vmem:[#allocation4 + $0x10] sm:$0xf]
    %v3060 = vld [vmem:[#allocation4 + $0x14] sm:$0xf]
    %v3061 = vld [vmem:[#allocation4 + $0x18] sm:$0xf]
    %v3062 = vld [vmem:[#allocation4 + $0x1c] sm:$0xf]
    %v3063 = vld [vmem:[#allocation4 + $0x20] sm:$0xf]
    %v3064 = vld [vmem:[#allocation4 + $0x24] sm:$0xf]
    %v3065 = vld [vmem:[#allocation4 + $0x28] sm:$0xf]
    %v3066 = vld [vmem:[#allocation4 + $0x2c] sm:$0xf]
    %v3067 = vld [vmem:[#allocation4 + $0x30] sm:$0xf]
    %v3068 = vld [vmem:[#allocation4 + $0x34] sm:$0xf]
    %v3069 = vld [vmem:[#allocation4 + $0x38] sm:$0xf]
    %v3070 = vld [vmem:[#allocation4 + $0x3c] sm:$0xf]
    %v3071 = vld [vmem:[%s8] sm:$0x1]
    %v3073 = vlaneseq
    %v3074 = vshrl.u32 %v3073, 7
    %v3075 = vsub.s32 0, %v3074
    %v3076 = vrot.slane %v3071, %v3075
    %v3094 = vunpack.c.l.b16 %v3055
    %v3095 = vunpack.c.l.b16 %v3056
    %v3096 = vunpack.c.l.b16 %v3057
    %v3097 = vunpack.c.l.b16 %v3058
    %v3098 = vunpack.c.l.b16 %v3059
    %v3099 = vunpack.c.l.b16 %v3060
    %v3100 = vunpack.c.l.b16 %v3061
    %v3101 = vunpack.c.l.b16 %v3062
    %v3102 = vunpack.c.l.b16 %v3063
    %v3103 = vunpack.c.l.b16 %v3064
    %v3104 = vunpack.c.l.b16 %v3065
    %v3105 = vunpack.c.l.b16 %v3066
    %v3106 = vunpack.c.l.b16 %v3067
    %v3107 = vunpack.c.l.b16 %v3068
    %v3108 = vunpack.c.l.b16 %v3069
    %v3109 = vunpack.c.l.b16 %v3070
    %v3110 = vpack.c.b16 %v3095, %v3094
    %v3111 = vpack.c.b16 %v3097, %v3096
    %v3112 = vpack.c.b16 %v3099, %v3098
    %v3113 = vpack.c.b16 %v3101, %v3100
    %v3114 = vpack.c.b16 %v3103, %v3102
    %v3115 = vpack.c.b16 %v3105, %v3104
    %v3116 = vpack.c.b16 %v3107, %v3106
    %v3117 = vpack.c.b16 %v3109, %v3108
    %3126 = vmatprep.subr.bf16.mxu0 0
    %3127 = vmatpush1.bf16.msra.mxu0 %v3117
    %3128 = vmatprep.subr.bf16.mxu0 0
    %3129 = vmatpush1.bf16.msra.mxu0 %v3116
    %3130 = vmatprep.subr.bf16.mxu0 0
    %3131 = vmatpush1.bf16.msra.mxu0 %v3115
    %3132 = vmatprep.subr.bf16.mxu0 0
    %3133 = vmatpush1.bf16.msra.mxu0 %v3114
    %3134 = vmatprep.subr.bf16.mxu0 0
    %3135 = vmatpush1.bf16.msra.mxu0 %v3113
    %3136 = vmatprep.subr.bf16.mxu0 0
    %3137 = vmatpush1.bf16.msra.mxu0 %v3112
    %3138 = vmatprep.subr.bf16.mxu0 0
    %3139 = vmatpush1.bf16.msra.mxu0 %v3111
    %3140 = vmatprep.subr.bf16.mxu0 0
    %3141 = vmatpush1.bf16.msra.mxu0 %v3110
    %3142 = vmatprep.subr.bf16.mxu0 0
    %3143 = vmatpush2.bf16.msra.mxu0 0
    %3144 = vmatprep.subr.bf16.mxu0 0
    %3145 = vmatpush2.bf16.msra.mxu0 0
    %3146 = vmatprep.subr.bf16.mxu0 0
    %3147 = vmatpush2.bf16.msra.mxu0 0
    %3148 = vmatprep.subr.bf16.mxu0 0
    %3149 = vmatpush2.bf16.msra.mxu0 0
    %3150 = vmatprep.subr.bf16.mxu0 0
    %3151 = vmatpush2.bf16.msra.mxu0 0
    %3152 = vmatprep.subr.bf16.mxu0 0
    %3153 = vmatpush2.bf16.msra.mxu0 0
    %3154 = vmatprep.subr.bf16.mxu0 0
    %3155 = vmatpush2.bf16.msra.mxu0 0
    %3156 = vmatprep.subr.bf16.mxu0 0
    %3157 = vmatpush2.bf16.msra.mxu0 0
    %3158 = vmatprep.mubr.bf16.mxu0 0
    %3159 = vmatmul.mubr.bf16.gmra.mxu0 %v3039
    %v3160 = vpop.f32.mrf.mxu0
    %v3161 = vadd.f32 %v3076, %v3160
    %v3162 = vpop.f32.mrf.mxu0
    %v3163 = vpop.f32.mrf.mxu0
    %v3164 = vadd.f32 %v3076, %v3163
    %v3165 = vpop.f32.mrf.mxu0
    %3166 = vmatprep.mubr.bf16.mxu0 0
    %3167 = vmatmul.mubr.bf16.gmra.mxu0 %v3040
    %v3168 = vpop.f32.mrf.mxu0
    %v3169 = vadd.f32 %v3076, %v3168
    %v3170 = vpop.f32.mrf.mxu0
    %v3171 = vpop.f32.mrf.mxu0
    %v3172 = vadd.f32 %v3076, %v3171
    %v3173 = vpop.f32.mrf.mxu0
    %3174 = vmatprep.mubr.bf16.mxu0 0
    %3175 = vmatmul.mubr.bf16.gmra.mxu0 %v3041
    %v3176 = vpop.f32.mrf.mxu0
    %v3177 = vadd.f32 %v3076, %v3176
    %v3178 = vpop.f32.mrf.mxu0
    %v3179 = vpop.f32.mrf.mxu0
    %v3180 = vadd.f32 %v3076, %v3179
    %v3181 = vpop.f32.mrf.mxu0
    %3182 = vmatprep.mubr.bf16.mxu0 0
    %3183 = vmatmul.mubr.bf16.gmra.mxu0 %v3042
    %v3184 = vpop.f32.mrf.mxu0
    %v3185 = vadd.f32 %v3076, %v3184
    %v3186 = vpop.f32.mrf.mxu0
    %v3187 = vpop.f32.mrf.mxu0
    %v3188 = vadd.f32 %v3076, %v3187
    %v3189 = vpop.f32.mrf.mxu0
    %3190 = vmatprep.mubr.bf16.mxu0 0
    %3191 = vmatmul.mubr.bf16.gmra.mxu0 %v3043
    %v3192 = vpop.f32.mrf.mxu0
    %v3193 = vadd.f32 %v3076, %v3192
    %v3194 = vpop.f32.mrf.mxu0
    %v3195 = vpop.f32.mrf.mxu0
    %v3196 = vadd.f32 %v3076, %v3195
    %v3197 = vpop.f32.mrf.mxu0
    %3198 = vmatprep.mubr.bf16.mxu0 0
    %3199 = vmatmul.mubr.bf16.gmra.mxu0 %v3044
    %v3200 = vpop.f32.mrf.mxu0
    %v3201 = vadd.f32 %v3076, %v3200
    %v3202 = vpop.f32.mrf.mxu0
    %v3203 = vpop.f32.mrf.mxu0
    %v3204 = vadd.f32 %v3076, %v3203
    %v3205 = vpop.f32.mrf.mxu0
    %3206 = vmatprep.mubr.bf16.mxu0 0
    %3207 = vmatmul.mubr.bf16.gmra.mxu0 %v3045
    %v3208 = vpop.f32.mrf.mxu0
    %v3209 = vadd.f32 %v3076, %v3208
    %v3210 = vpop.f32.mrf.mxu0
    %v3211 = vpop.f32.mrf.mxu0
    %v3212 = vadd.f32 %v3076, %v3211
    %v3213 = vpop.f32.mrf.mxu0
    %3214 = vmatprep.mubr.bf16.mxu0 0
    %3215 = vmatmul.mubr.bf16.gmra.mxu0 %v3046
    %v3216 = vpop.f32.mrf.mxu0
    %v3217 = vadd.f32 %v3076, %v3216
    %v3218 = vpop.f32.mrf.mxu0
    %v3219 = vpop.f32.mrf.mxu0
    %v3220 = vadd.f32 %v3076, %v3219
    %v3221 = vpop.f32.mrf.mxu0
    %3222 = vmatprep.mubr.bf16.mxu0 0
    %3223 = vmatmul.mubr.bf16.gmra.mxu0 %v3047
    %v3224 = vpop.f32.mrf.mxu0
    %v3225 = vadd.f32 %v3076, %v3224
    %v3226 = vpop.f32.mrf.mxu0
    %v3227 = vpop.f32.mrf.mxu0
    %v3228 = vadd.f32 %v3076, %v3227
    %v3229 = vpop.f32.mrf.mxu0
    %3230 = vmatprep.mubr.bf16.mxu0 0
    %3231 = vmatmul.mubr.bf16.gmra.mxu0 %v3048
    %v3232 = vpop.f32.mrf.mxu0
    %v3233 = vadd.f32 %v3076, %v3232
    %v3234 = vpop.f32.mrf.mxu0
    %v3235 = vpop.f32.mrf.mxu0
    %v3236 = vadd.f32 %v3076, %v3235
    %v3237 = vpop.f32.mrf.mxu0
    %3238 = vmatprep.mubr.bf16.mxu0 0
    %3239 = vmatmul.mubr.bf16.gmra.mxu0 %v3049
    %v3240 = vpop.f32.mrf.mxu0
    %v3241 = vadd.f32 %v3076, %v3240
    %v3242 = vpop.f32.mrf.mxu0
    %v3243 = vpop.f32.mrf.mxu0
    %v3244 = vadd.f32 %v3076, %v3243
    %v3245 = vpop.f32.mrf.mxu0
    %3246 = vmatprep.mubr.bf16.mxu0 0
    %3247 = vmatmul.mubr.bf16.gmra.mxu0 %v3050
    %v3248 = vpop.f32.mrf.mxu0
    %v3249 = vadd.f32 %v3076, %v3248
    %v3250 = vpop.f32.mrf.mxu0
    %v3251 = vpop.f32.mrf.mxu0
    %v3252 = vadd.f32 %v3076, %v3251
    %v3253 = vpop.f32.mrf.mxu0
    %3254 = vmatprep.mubr.bf16.mxu0 0
    %3255 = vmatmul.mubr.bf16.gmra.mxu0 %v3051
    %v3256 = vpop.f32.mrf.mxu0
    %v3257 = vadd.f32 %v3076, %v3256
    %v3258 = vpop.f32.mrf.mxu0
    %v3259 = vpop.f32.mrf.mxu0
    %v3260 = vadd.f32 %v3076, %v3259
    %v3261 = vpop.f32.mrf.mxu0
    %3262 = vmatprep.mubr.bf16.mxu0 0
    %3263 = vmatmul.mubr.bf16.gmra.mxu0 %v3052
    %v3264 = vpop.f32.mrf.mxu0
    %v3265 = vadd.f32 %v3076, %v3264
    %v3266 = vpop.f32.mrf.mxu0
    %v3267 = vpop.f32.mrf.mxu0
    %v3268 = vadd.f32 %v3076, %v3267
    %v3269 = vpop.f32.mrf.mxu0
    %3270 = vmatprep.mubr.bf16.mxu0 0
    %3271 = vmatmul.mubr.bf16.gmra.mxu0 %v3053
    %v3272 = vpop.f32.mrf.mxu0
    %v3273 = vadd.f32 %v3076, %v3272
    %v3274 = vpop.f32.mrf.mxu0
    %v3275 = vpop.f32.mrf.mxu0
    %v3276 = vadd.f32 %v3076, %v3275
    %v3277 = vpop.f32.mrf.mxu0
    %3278 = vmatprep.mubr.bf16.mxu0 0
    %3279 = vmatmul.mubr.bf16.gmra.mxu0 %v3054
    %v3280 = vpop.f32.mrf.mxu0
    %v3281 = vadd.f32 %v3076, %v3280
    %v3282 = vpop.f32.mrf.mxu0
    %v3283 = vpop.f32.mrf.mxu0
    %v3284 = vadd.f32 %v3076, %v3283
    %v3285 = vpop.f32.mrf.mxu0
    %3286 = vdwg.mxu0
    %v3287 = vadd.f32 %v506, %v3161
    %v3288 = vadd.f32 %v507, %v3164
    %v3289 = vadd.f32 %v508, %v3169
    %v3290 = vadd.f32 %v509, %v3172
    %v3291 = vadd.f32 %v510, %v3177
    %v3292 = vadd.f32 %v511, %v3180
    %v3293 = vadd.f32 %v512, %v3185
    %v3294 = vadd.f32 %v513, %v3188
    %v3295 = vadd.f32 %v514, %v3193
    %v3296 = vadd.f32 %v515, %v3196
    %v3297 = vadd.f32 %v516, %v3201
    %v3298 = vadd.f32 %v517, %v3204
    %v3299 = vadd.f32 %v518, %v3209
    %v3300 = vadd.f32 %v519, %v3212
    %v3301 = vadd.f32 %v520, %v3217
    %v3302 = vadd.f32 %v521, %v3220
    %v3303 = vadd.f32 %v522, %v3225
    %v3304 = vadd.f32 %v523, %v3228
    %v3305 = vadd.f32 %v524, %v3233
    %v3306 = vadd.f32 %v525, %v3236
    %v3307 = vadd.f32 %v526, %v3241
    %v3308 = vadd.f32 %v527, %v3244
    %v3309 = vadd.f32 %v528, %v3249
    %v3310 = vadd.f32 %v529, %v3252
    %v3311 = vadd.f32 %v530, %v3257
    %v3312 = vadd.f32 %v531, %v3260
    %v3313 = vadd.f32 %v532, %v3265
    %v3314 = vadd.f32 %v533, %v3268
    %v3315 = vadd.f32 %v534, %v3273
    %v3316 = vadd.f32 %v535, %v3276
    %v3317 = vadd.f32 %v536, %v3281
    %v3318 = vadd.f32 %v537, %v3284
    %v3319 = vld [vmem:[%s9] sm:$0x1]
    %v3320 = vld [vmem:[%s10] sm:$0x1]
    %3321 = vadd.xlane.f32.xlu0 %v3287
    %v3322 = vpop.xlane.xlu0 %3321
    %3323 = vadd.xlane.f32.xlu0 %v3288
    %v3324 = vpop.xlane.xlu0 %3323
    %3325 = vadd.xlane.f32.xlu0 %v3289
    %v3326 = vpop.xlane.xlu0 %3325
    %3327 = vadd.xlane.f32.xlu0 %v3290
    %v3328 = vpop.xlane.xlu0 %3327
    %3329 = vadd.xlane.f32.xlu0 %v3291
    %v3330 = vpop.xlane.xlu0 %3329
    %3331 = vadd.xlane.f32.xlu0 %v3292
    %v3332 = vpop.xlane.xlu0 %3331
    %3333 = vadd.xlane.f32.xlu0 %v3293
    %v3334 = vpop.xlane.xlu0 %3333
    %3335 = vadd.xlane.f32.xlu0 %v3294
    %v3336 = vpop.xlane.xlu0 %3335
    %3337 = vadd.xlane.f32.xlu0 %v3295
    %v3338 = vpop.xlane.xlu0 %3337
    %3339 = vadd.xlane.f32.xlu0 %v3296
    %v3340 = vpop.xlane.xlu0 %3339
    %3341 = vadd.xlane.f32.xlu0 %v3297
    %v3342 = vpop.xlane.xlu0 %3341
    %3343 = vadd.xlane.f32.xlu0 %v3298
    %v3344 = vpop.xlane.xlu0 %3343
    %3345 = vadd.xlane.f32.xlu0 %v3299
    %v3346 = vpop.xlane.xlu0 %3345
    %3347 = vadd.xlane.f32.xlu0 %v3300
    %v3348 = vpop.xlane.xlu0 %3347
    %3349 = vadd.xlane.f32.xlu0 %v3301
    %v3350 = vpop.xlane.xlu0 %3349
    %3351 = vadd.xlane.f32.xlu0 %v3302
    %v3352 = vpop.xlane.xlu0 %3351
    %3353 = vadd.xlane.f32.xlu0 %v3303
    %v3354 = vpop.xlane.xlu0 %3353
    %3355 = vadd.xlane.f32.xlu0 %v3304
    %v3356 = vpop.xlane.xlu0 %3355
    %3357 = vadd.xlane.f32.xlu0 %v3305
    %v3358 = vpop.xlane.xlu0 %3357
    %3359 = vadd.xlane.f32.xlu0 %v3306
    %v3360 = vpop.xlane.xlu0 %3359
    %3361 = vadd.xlane.f32.xlu0 %v3307
    %v3362 = vpop.xlane.xlu0 %3361
    %3363 = vadd.xlane.f32.xlu0 %v3308
    %v3364 = vpop.xlane.xlu0 %3363
    %3365 = vadd.xlane.f32.xlu0 %v3309
    %v3366 = vpop.xlane.xlu0 %3365
    %3367 = vadd.xlane.f32.xlu0 %v3310
    %v3368 = vpop.xlane.xlu0 %3367
    %3369 = vadd.xlane.f32.xlu0 %v3311
    %v3370 = vpop.xlane.xlu0 %3369
    %3371 = vadd.xlane.f32.xlu0 %v3312
    %v3372 = vpop.xlane.xlu0 %3371
    %3373 = vadd.xlane.f32.xlu0 %v3313
    %v3374 = vpop.xlane.xlu0 %3373
    %3375 = vadd.xlane.f32.xlu0 %v3314
    %v3376 = vpop.xlane.xlu0 %3375
    %3377 = vadd.xlane.f32.xlu0 %v3315
    %v3378 = vpop.xlane.xlu0 %3377
    %3379 = vadd.xlane.f32.xlu0 %v3316
    %v3380 = vpop.xlane.xlu0 %3379
    %3381 = vadd.xlane.f32.xlu0 %v3317
    %v3382 = vpop.xlane.xlu0 %3381
    %3383 = vadd.xlane.f32.xlu0 %v3318
    %v3384 = vpop.xlane.xlu0 %3383
    %v3385 = vrcp.pop 128.0
    %v3386 = vmul.f32 %v3322, %v3385
    %v3387 = vmul.f32 %v3324, %v3385
    %v3388 = vmul.f32 %v3326, %v3385
    %v3389 = vmul.f32 %v3328, %v3385
    %v3390 = vmul.f32 %v3330, %v3385
    %v3391 = vmul.f32 %v3332, %v3385
    %v3392 = vmul.f32 %v3334, %v3385
    %v3393 = vmul.f32 %v3336, %v3385
    %v3394 = vmul.f32 %v3338, %v3385
    %v3395 = vmul.f32 %v3340, %v3385
    %v3396 = vmul.f32 %v3342, %v3385
    %v3397 = vmul.f32 %v3344, %v3385
    %v3398 = vmul.f32 %v3346, %v3385
    %v3399 = vmul.f32 %v3348, %v3385
    %v3400 = vmul.f32 %v3350, %v3385
    %v3401 = vmul.f32 %v3352, %v3385
    %v3402 = vmul.f32 %v3354, %v3385
    %v3403 = vmul.f32 %v3356, %v3385
    %v3404 = vmul.f32 %v3358, %v3385
    %v3405 = vmul.f32 %v3360, %v3385
    %v3406 = vmul.f32 %v3362, %v3385
    %v3407 = vmul.f32 %v3364, %v3385
    %v3408 = vmul.f32 %v3366, %v3385
    %v3409 = vmul.f32 %v3368, %v3385
    %v3410 = vmul.f32 %v3370, %v3385
    %v3411 = vmul.f32 %v3372, %v3385
    %v3412 = vmul.f32 %v3374, %v3385
    %v3413 = vmul.f32 %v3376, %v3385
    %v3414 = vmul.f32 %v3378, %v3385
    %v3415 = vmul.f32 %v3380, %v3385
    %v3416 = vmul.f32 %v3382, %v3385
    %v3417 = vmul.f32 %v3384, %v3385
    %v3418 = vsub.f32 %v3287, %v3386
    %v3419 = vsub.f32 %v3288, %v3387
    %v3420 = vsub.f32 %v3289, %v3388
    %v3421 = vsub.f32 %v3290, %v3389
    %v3422 = vsub.f32 %v3291, %v3390
    %v3423 = vsub.f32 %v3292, %v3391
    %v3424 = vsub.f32 %v3293, %v3392
    %v3425 = vsub.f32 %v3294, %v3393
    %v3426 = vsub.f32 %v3295, %v3394
    %v3427 = vsub.f32 %v3296, %v3395
    %v3428 = vsub.f32 %v3297, %v3396
    %v3429 = vsub.f32 %v3298, %v3397
    %v3430 = vsub.f32 %v3299, %v3398
    %v3431 = vsub.f32 %v3300, %v3399
    %v3432 = vsub.f32 %v3301, %v3400
    %v3433 = vsub.f32 %v3302, %v3401
    %v3434 = vsub.f32 %v3303, %v3402
    %v3435 = vsub.f32 %v3304, %v3403
    %v3436 = vsub.f32 %v3305, %v3404
    %v3437 = vsub.f32 %v3306, %v3405
    %v3438 = vsub.f32 %v3307, %v3406
    %v3439 = vsub.f32 %v3308, %v3407
    %v3440 = vsub.f32 %v3309, %v3408
    %v3441 = vsub.f32 %v3310, %v3409
    %v3442 = vsub.f32 %v3311, %v3410
    %v3443 = vsub.f32 %v3312, %v3411
    %v3444 = vsub.f32 %v3313, %v3412
    %v3445 = vsub.f32 %v3314, %v3413
    %v3446 = vsub.f32 %v3315, %v3414
    %v3447 = vsub.f32 %v3316, %v3415
    %v3448 = vsub.f32 %v3317, %v3416
    %v3449 = vsub.f32 %v3318, %v3417
    %v3450 = vmul.f32 %v3418, %v3418
    %v3451 = vmul.f32 %v3419, %v3419
    %v3452 = vmul.f32 %v3420, %v3420
    %v3453 = vmul.f32 %v3421, %v3421
    %v3454 = vmul.f32 %v3422, %v3422
    %v3455 = vmul.f32 %v3423, %v3423
    %v3456 = vmul.f32 %v3424, %v3424
    %v3457 = vmul.f32 %v3425, %v3425
    %v3458 = vmul.f32 %v3426, %v3426
    %v3459 = vmul.f32 %v3427, %v3427
    %v3460 = vmul.f32 %v3428, %v3428
    %v3461 = vmul.f32 %v3429, %v3429
    %v3462 = vmul.f32 %v3430, %v3430
    %v3463 = vmul.f32 %v3431, %v3431
    %v3464 = vmul.f32 %v3432, %v3432
    %v3465 = vmul.f32 %v3433, %v3433
    %v3466 = vmul.f32 %v3434, %v3434
    %v3467 = vmul.f32 %v3435, %v3435
    %v3468 = vmul.f32 %v3436, %v3436
    %v3469 = vmul.f32 %v3437, %v3437
    %v3470 = vmul.f32 %v3438, %v3438
    %v3471 = vmul.f32 %v3439, %v3439
    %v3472 = vmul.f32 %v3440, %v3440
    %v3473 = vmul.f32 %v3441, %v3441
    %v3474 = vmul.f32 %v3442, %v3442
    %v3475 = vmul.f32 %v3443, %v3443
    %v3476 = vmul.f32 %v3444, %v3444
    %v3477 = vmul.f32 %v3445, %v3445
    %v3478 = vmul.f32 %v3446, %v3446
    %v3479 = vmul.f32 %v3447, %v3447
    %v3480 = vmul.f32 %v3448, %v3448
    %v3481 = vmul.f32 %v3449, %v3449
    %3482 = vadd.xlane.f32.xlu0 %v3450
    %v3483 = vpop.xlane.xlu0 %3482
    %3484 = vadd.xlane.f32.xlu0 %v3451
    %v3485 = vpop.xlane.xlu0 %3484
    %3486 = vadd.xlane.f32.xlu0 %v3452
    %v3487 = vpop.xlane.xlu0 %3486
    %3488 = vadd.xlane.f32.xlu0 %v3453
    %v3489 = vpop.xlane.xlu0 %3488
    %3490 = vadd.xlane.f32.xlu0 %v3454
    %v3491 = vpop.xlane.xlu0 %3490
    %3492 = vadd.xlane.f32.xlu0 %v3455
    %v3493 = vpop.xlane.xlu0 %3492
    %3494 = vadd.xlane.f32.xlu0 %v3456
    %v3495 = vpop.xlane.xlu0 %3494
    %3496 = vadd.xlane.f32.xlu0 %v3457
    %v3497 = vpop.xlane.xlu0 %3496
    %3498 = vadd.xlane.f32.xlu0 %v3458
    %v3499 = vpop.xlane.xlu0 %3498
    %3500 = vadd.xlane.f32.xlu0 %v3459
    %v3501 = vpop.xlane.xlu0 %3500
    %3502 = vadd.xlane.f32.xlu0 %v3460
    %v3503 = vpop.xlane.xlu0 %3502
    %3504 = vadd.xlane.f32.xlu0 %v3461
    %v3505 = vpop.xlane.xlu0 %3504
    %3506 = vadd.xlane.f32.xlu0 %v3462
    %v3507 = vpop.xlane.xlu0 %3506
    %3508 = vadd.xlane.f32.xlu0 %v3463
    %v3509 = vpop.xlane.xlu0 %3508
    %3510 = vadd.xlane.f32.xlu0 %v3464
    %v3511 = vpop.xlane.xlu0 %3510
    %3512 = vadd.xlane.f32.xlu0 %v3465
    %v3513 = vpop.xlane.xlu0 %3512
    %3514 = vadd.xlane.f32.xlu0 %v3466
    %v3515 = vpop.xlane.xlu0 %3514
    %3516 = vadd.xlane.f32.xlu0 %v3467
    %v3517 = vpop.xlane.xlu0 %3516
    %3518 = vadd.xlane.f32.xlu0 %v3468
    %v3519 = vpop.xlane.xlu0 %3518
    %3520 = vadd.xlane.f32.xlu0 %v3469
    %v3521 = vpop.xlane.xlu0 %3520
    %3522 = vadd.xlane.f32.xlu0 %v3470
    %v3523 = vpop.xlane.xlu0 %3522
    %3524 = vadd.xlane.f32.xlu0 %v3471
    %v3525 = vpop.xlane.xlu0 %3524
    %3526 = vadd.xlane.f32.xlu0 %v3472
    %v3527 = vpop.xlane.xlu0 %3526
    %3528 = vadd.xlane.f32.xlu0 %v3473
    %v3529 = vpop.xlane.xlu0 %3528
    %3530 = vadd.xlane.f32.xlu0 %v3474
    %v3531 = vpop.xlane.xlu0 %3530
    %3532 = vadd.xlane.f32.xlu0 %v3475
    %v3533 = vpop.xlane.xlu0 %3532
    %3534 = vadd.xlane.f32.xlu0 %v3476
    %v3535 = vpop.xlane.xlu0 %3534
    %3536 = vadd.xlane.f32.xlu0 %v3477
    %v3537 = vpop.xlane.xlu0 %3536
    %3538 = vadd.xlane.f32.xlu0 %v3478
    %v3539 = vpop.xlane.xlu0 %3538
    %3540 = vadd.xlane.f32.xlu0 %v3479
    %v3541 = vpop.xlane.xlu0 %3540
    %3542 = vadd.xlane.f32.xlu0 %v3480
    %v3543 = vpop.xlane.xlu0 %3542
    %3544 = vadd.xlane.f32.xlu0 %v3481
    %v3545 = vpop.xlane.xlu0 %3544
    %v3546 = vmul.f32 %v3483, %v3385
    %v3547 = vmul.f32 %v3485, %v3385
    %v3548 = vmul.f32 %v3487, %v3385
    %v3549 = vmul.f32 %v3489, %v3385
    %v3550 = vmul.f32 %v3491, %v3385
    %v3551 = vmul.f32 %v3493, %v3385
    %v3552 = vmul.f32 %v3495, %v3385
    %v3553 = vmul.f32 %v3497, %v3385
    %v3554 = vmul.f32 %v3499, %v3385
    %v3555 = vmul.f32 %v3501, %v3385
    %v3556 = vmul.f32 %v3503, %v3385
    %v3557 = vmul.f32 %v3505, %v3385
    %v3558 = vmul.f32 %v3507, %v3385
    %v3559 = vmul.f32 %v3509, %v3385
    %v3560 = vmul.f32 %v3511, %v3385
    %v3561 = vmul.f32 %v3513, %v3385
    %v3562 = vmul.f32 %v3515, %v3385
    %v3563 = vmul.f32 %v3517, %v3385
    %v3564 = vmul.f32 %v3519, %v3385
    %v3565 = vmul.f32 %v3521, %v3385
    %v3566 = vmul.f32 %v3523, %v3385
    %v3567 = vmul.f32 %v3525, %v3385
    %v3568 = vmul.f32 %v3527, %v3385
    %v3569 = vmul.f32 %v3529, %v3385
    %v3570 = vmul.f32 %v3531, %v3385
    %v3571 = vmul.f32 %v3533, %v3385
    %v3572 = vmul.f32 %v3535, %v3385
    %v3573 = vmul.f32 %v3537, %v3385
    %v3574 = vmul.f32 %v3539, %v3385
    %v3575 = vmul.f32 %v3541, %v3385
    %v3576 = vmul.f32 %v3543, %v3385
    %v3577 = vmul.f32 %v3545, %v3385
    %v3578 = vadd.f32 %v3546, 1e-05
    %v3579 = vadd.f32 %v3547, 1e-05
    %v3580 = vadd.f32 %v3548, 1e-05
    %v3581 = vadd.f32 %v3549, 1e-05
    %v3582 = vadd.f32 %v3550, 1e-05
    %v3583 = vadd.f32 %v3551, 1e-05
    %v3584 = vadd.f32 %v3552, 1e-05
    %v3585 = vadd.f32 %v3553, 1e-05
    %v3586 = vadd.f32 %v3554, 1e-05
    %v3587 = vadd.f32 %v3555, 1e-05
    %v3588 = vadd.f32 %v3556, 1e-05
    %v3589 = vadd.f32 %v3557, 1e-05
    %v3590 = vadd.f32 %v3558, 1e-05
    %v3591 = vadd.f32 %v3559, 1e-05
    %v3592 = vadd.f32 %v3560, 1e-05
    %v3593 = vadd.f32 %v3561, 1e-05
    %v3594 = vadd.f32 %v3562, 1e-05
    %v3595 = vadd.f32 %v3563, 1e-05
    %v3596 = vadd.f32 %v3564, 1e-05
    %v3597 = vadd.f32 %v3565, 1e-05
    %v3598 = vadd.f32 %v3566, 1e-05
    %v3599 = vadd.f32 %v3567, 1e-05
    %v3600 = vadd.f32 %v3568, 1e-05
    %v3601 = vadd.f32 %v3569, 1e-05
    %v3602 = vadd.f32 %v3570, 1e-05
    %v3603 = vadd.f32 %v3571, 1e-05
    %v3604 = vadd.f32 %v3572, 1e-05
    %v3605 = vadd.f32 %v3573, 1e-05
    %v3606 = vadd.f32 %v3574, 1e-05
    %v3607 = vadd.f32 %v3575, 1e-05
    %v3608 = vadd.f32 %v3576, 1e-05
    %v3609 = vadd.f32 %v3577, 1e-05
    %v3610 = vrsqrt.pop %v3578
    %v3611 = vrsqrt.pop %v3579
    %v3612 = vrsqrt.pop %v3580
    %v3613 = vrsqrt.pop %v3581
    %v3614 = vrsqrt.pop %v3582
    %v3615 = vrsqrt.pop %v3583
    %v3616 = vrsqrt.pop %v3584
    %v3617 = vrsqrt.pop %v3585
    %v3618 = vrsqrt.pop %v3586
    %v3619 = vrsqrt.pop %v3587
    %v3620 = vrsqrt.pop %v3588
    %v3621 = vrsqrt.pop %v3589
    %v3622 = vrsqrt.pop %v3590
    %v3623 = vrsqrt.pop %v3591
    %v3624 = vrsqrt.pop %v3592
    %v3625 = vrsqrt.pop %v3593
    %v3626 = vrsqrt.pop %v3594
    %v3627 = vrsqrt.pop %v3595
    %v3628 = vrsqrt.pop %v3596
    %v3629 = vrsqrt.pop %v3597
    %v3630 = vrsqrt.pop %v3598
    %v3631 = vrsqrt.pop %v3599
    %v3632 = vrsqrt.pop %v3600
    %v3633 = vrsqrt.pop %v3601
    %v3634 = vrsqrt.pop %v3602
    %v3635 = vrsqrt.pop %v3603
    %v3636 = vrsqrt.pop %v3604
    %v3637 = vrsqrt.pop %v3605
    %v3638 = vrsqrt.pop %v3606
    %v3639 = vrsqrt.pop %v3607
    %v3640 = vrsqrt.pop %v3608
    %v3641 = vrsqrt.pop %v3609
    %v3642 = vmul.f32 %v3418, %v3610
    %v3643 = vmul.f32 %v3419, %v3611
    %v3644 = vmul.f32 %v3420, %v3612
    %v3645 = vmul.f32 %v3421, %v3613
    %v3646 = vmul.f32 %v3422, %v3614
    %v3647 = vmul.f32 %v3423, %v3615
    %v3648 = vmul.f32 %v3424, %v3616
    %v3649 = vmul.f32 %v3425, %v3617
    %v3650 = vmul.f32 %v3426, %v3618
    %v3651 = vmul.f32 %v3427, %v3619
    %v3652 = vmul.f32 %v3428, %v3620
    %v3653 = vmul.f32 %v3429, %v3621
    %v3654 = vmul.f32 %v3430, %v3622
    %v3655 = vmul.f32 %v3431, %v3623
    %v3656 = vmul.f32 %v3432, %v3624
    %v3657 = vmul.f32 %v3433, %v3625
    %v3658 = vmul.f32 %v3434, %v3626
    %v3659 = vmul.f32 %v3435, %v3627
    %v3660 = vmul.f32 %v3436, %v3628
    %v3661 = vmul.f32 %v3437, %v3629
    %v3662 = vmul.f32 %v3438, %v3630
    %v3663 = vmul.f32 %v3439, %v3631
    %v3664 = vmul.f32 %v3440, %v3632
    %v3665 = vmul.f32 %v3441, %v3633
    %v3666 = vmul.f32 %v3442, %v3634
    %v3667 = vmul.f32 %v3443, %v3635
    %v3668 = vmul.f32 %v3444, %v3636
    %v3669 = vmul.f32 %v3445, %v3637
    %v3670 = vmul.f32 %v3446, %v3638
    %v3671 = vmul.f32 %v3447, %v3639
    %v3672 = vmul.f32 %v3448, %v3640
    %v3673 = vmul.f32 %v3449, %v3641
    %v3675 = vlaneseq
    %v3676 = vshrl.u32 %v3675, 7
    %v3677 = vsub.s32 0, %v3676
    %v3678 = vrot.slane %v3319, %v3677
    %v3680 = vmul.f32 %v3642, %v3678
    %v3681 = vmul.f32 %v3643, %v3678
    %v3682 = vmul.f32 %v3644, %v3678
    %v3683 = vmul.f32 %v3645, %v3678
    %v3684 = vmul.f32 %v3646, %v3678
    %v3685 = vmul.f32 %v3647, %v3678
    %v3686 = vmul.f32 %v3648, %v3678
    %v3687 = vmul.f32 %v3649, %v3678
    %v3688 = vmul.f32 %v3650, %v3678
    %v3689 = vmul.f32 %v3651, %v3678
    %v3690 = vmul.f32 %v3652, %v3678
    %v3691 = vmul.f32 %v3653, %v3678
    %v3692 = vmul.f32 %v3654, %v3678
    %v3693 = vmul.f32 %v3655, %v3678
    %v3694 = vmul.f32 %v3656, %v3678
    %v3695 = vmul.f32 %v3657, %v3678
    %v3696 = vmul.f32 %v3658, %v3678
    %v3697 = vmul.f32 %v3659, %v3678
    %v3698 = vmul.f32 %v3660, %v3678
    %v3699 = vmul.f32 %v3661, %v3678
    %v3700 = vmul.f32 %v3662, %v3678
    %v3701 = vmul.f32 %v3663, %v3678
    %v3702 = vmul.f32 %v3664, %v3678
    %v3703 = vmul.f32 %v3665, %v3678
    %v3704 = vmul.f32 %v3666, %v3678
    %v3705 = vmul.f32 %v3667, %v3678
    %v3706 = vmul.f32 %v3668, %v3678
    %v3707 = vmul.f32 %v3669, %v3678
    %v3708 = vmul.f32 %v3670, %v3678
    %v3709 = vmul.f32 %v3671, %v3678
    %v3710 = vmul.f32 %v3672, %v3678
    %v3711 = vmul.f32 %v3673, %v3678
    %v3713 = vlaneseq
    %v3714 = vshrl.u32 %v3713, 7
    %v3715 = vsub.s32 0, %v3714
    %v3716 = vrot.slane %v3320, %v3715
    %v3718 = vadd.f32 %v3680, %v3716
    %v3719 = vadd.f32 %v3681, %v3716
    %v3720 = vadd.f32 %v3682, %v3716
    %v3721 = vadd.f32 %v3683, %v3716
    %v3722 = vadd.f32 %v3684, %v3716
    %v3723 = vadd.f32 %v3685, %v3716
    %v3724 = vadd.f32 %v3686, %v3716
    %v3725 = vadd.f32 %v3687, %v3716
    %v3726 = vadd.f32 %v3688, %v3716
    %v3727 = vadd.f32 %v3689, %v3716
    %v3728 = vadd.f32 %v3690, %v3716
    %v3729 = vadd.f32 %v3691, %v3716
    %v3730 = vadd.f32 %v3692, %v3716
    %v3731 = vadd.f32 %v3693, %v3716
    %v3732 = vadd.f32 %v3694, %v3716
    %v3733 = vadd.f32 %v3695, %v3716
    %v3734 = vadd.f32 %v3696, %v3716
    %v3735 = vadd.f32 %v3697, %v3716
    %v3736 = vadd.f32 %v3698, %v3716
    %v3737 = vadd.f32 %v3699, %v3716
    %v3738 = vadd.f32 %v3700, %v3716
    %v3739 = vadd.f32 %v3701, %v3716
    %v3740 = vadd.f32 %v3702, %v3716
    %v3741 = vadd.f32 %v3703, %v3716
    %v3742 = vadd.f32 %v3704, %v3716
    %v3743 = vadd.f32 %v3705, %v3716
    %v3744 = vadd.f32 %v3706, %v3716
    %v3745 = vadd.f32 %v3707, %v3716
    %v3746 = vadd.f32 %v3708, %v3716
    %v3747 = vadd.f32 %v3709, %v3716
    %v3748 = vadd.f32 %v3710, %v3716
    %v3749 = vadd.f32 %v3711, %v3716
    %v3750 = vadd.f32 %v3718, %v2345
    %v3751 = vadd.f32 %v3719, %v2348
    %v3752 = vadd.f32 %v3720, %v2353
    %v3753 = vadd.f32 %v3721, %v2356
    %v3754 = vadd.f32 %v3722, %v2361
    %v3755 = vadd.f32 %v3723, %v2364
    %v3756 = vadd.f32 %v3724, %v2369
    %v3757 = vadd.f32 %v3725, %v2372
    %v3758 = vadd.f32 %v3726, %v2377
    %v3759 = vadd.f32 %v3727, %v2380
    %v3760 = vadd.f32 %v3728, %v2385
    %v3761 = vadd.f32 %v3729, %v2388
    %v3762 = vadd.f32 %v3730, %v2393
    %v3763 = vadd.f32 %v3731, %v2396
    %v3764 = vadd.f32 %v3732, %v2401
    %v3765 = vadd.f32 %v3733, %v2404
    %v3766 = vadd.f32 %v3734, %v2409
    %v3767 = vadd.f32 %v3735, %v2412
    %v3768 = vadd.f32 %v3736, %v2417
    %v3769 = vadd.f32 %v3737, %v2420
    %v3770 = vadd.f32 %v3738, %v2425
    %v3771 = vadd.f32 %v3739, %v2428
    %v3772 = vadd.f32 %v3740, %v2433
    %v3773 = vadd.f32 %v3741, %v2436
    %v3774 = vadd.f32 %v3742, %v2441
    %v3775 = vadd.f32 %v3743, %v2444
    %v3776 = vadd.f32 %v3744, %v2449
    %v3777 = vadd.f32 %v3745, %v2452
    %v3778 = vadd.f32 %v3746, %v2457
    %v3779 = vadd.f32 %v3747, %v2460
    %v3780 = vadd.f32 %v3748, %v2465
    %v3781 = vadd.f32 %v3749, %v2468
    %v3782 = vpack.c.bf16 %v3751, %v3750
    %v3783 = vpack.c.bf16 %v3753, %v3752
    %v3784 = vpack.c.bf16 %v3755, %v3754
    %v3785 = vpack.c.bf16 %v3757, %v3756
    %v3786 = vpack.c.bf16 %v3759, %v3758
    %v3787 = vpack.c.bf16 %v3761, %v3760
    %v3788 = vpack.c.bf16 %v3763, %v3762
    %v3789 = vpack.c.bf16 %v3765, %v3764
    %v3790 = vpack.c.bf16 %v3767, %v3766
    %v3791 = vpack.c.bf16 %v3769, %v3768
    %v3792 = vpack.c.bf16 %v3771, %v3770
    %v3793 = vpack.c.bf16 %v3773, %v3772
    %v3794 = vpack.c.bf16 %v3775, %v3774
    %v3795 = vpack.c.bf16 %v3777, %v3776
    %v3796 = vpack.c.bf16 %v3779, %v3778
    %v3797 = vpack.c.bf16 %v3781, %v3780
    %s3798 = scalar_lea.vmem [#allocation2], 64
    %v3799 = vld [vmem:[%s3798] sm:$0xf]
    %v3800 = vld [vmem:[%s3798 + $0x4] sm:$0xf]
    %v3801 = vld [vmem:[%s3798 + $0x8] sm:$0xf]
    %v3802 = vld [vmem:[%s3798 + $0xc] sm:$0xf]
    %v3803 = vld [vmem:[%s3798 + $0x10] sm:$0xf]
    %v3804 = vld [vmem:[%s3798 + $0x14] sm:$0xf]
    %v3805 = vld [vmem:[%s3798 + $0x18] sm:$0xf]
    %v3806 = vld [vmem:[%s3798 + $0x1c] sm:$0xf]
    %v3807 = vld [vmem:[%s3798 + $0x20] sm:$0xf]
    %v3808 = vld [vmem:[%s3798 + $0x24] sm:$0xf]
    %v3809 = vld [vmem:[%s3798 + $0x28] sm:$0xf]
    %v3810 = vld [vmem:[%s3798 + $0x2c] sm:$0xf]
    %v3811 = vld [vmem:[%s3798 + $0x30] sm:$0xf]
    %v3812 = vld [vmem:[%s3798 + $0x34] sm:$0xf]
    %v3813 = vld [vmem:[%s3798 + $0x38] sm:$0xf]
    %v3814 = vld [vmem:[%s3798 + $0x3c] sm:$0xf]
    %s3815 = scalar_lea.vmem %s6, 1
    %v3816 = vld [vmem:[%s3815] sm:$0x1]
    %v3818 = vlaneseq
    %v3819 = vshrl.u32 %v3818, 7
    %v3820 = vsub.s32 0, %v3819
    %v3821 = vrot.slane %v3816, %v3820
    %v3839 = vunpack.c.l.b16 %v3799
    %v3840 = vunpack.c.l.b16 %v3800
    %v3841 = vunpack.c.l.b16 %v3801
    %v3842 = vunpack.c.l.b16 %v3802
    %v3843 = vunpack.c.l.b16 %v3803
    %v3844 = vunpack.c.l.b16 %v3804
    %v3845 = vunpack.c.l.b16 %v3805
    %v3846 = vunpack.c.l.b16 %v3806
    %v3847 = vunpack.c.l.b16 %v3807
    %v3848 = vunpack.c.l.b16 %v3808
    %v3849 = vunpack.c.l.b16 %v3809
    %v3850 = vunpack.c.l.b16 %v3810
    %v3851 = vunpack.c.l.b16 %v3811
    %v3852 = vunpack.c.l.b16 %v3812
    %v3853 = vunpack.c.l.b16 %v3813
    %v3854 = vunpack.c.l.b16 %v3814
    %v3855 = vpack.c.b16 %v3840, %v3839
    %v3856 = vpack.c.b16 %v3842, %v3841
    %v3857 = vpack.c.b16 %v3844, %v3843
    %v3858 = vpack.c.b16 %v3846, %v3845
    %v3859 = vpack.c.b16 %v3848, %v3847
    %v3860 = vpack.c.b16 %v3850, %v3849
    %v3861 = vpack.c.b16 %v3852, %v3851
    %v3862 = vpack.c.b16 %v3854, %v3853
    %3871 = vmatprep.subr.bf16.mxu0 0
    %3872 = vmatpush1.bf16.msra.mxu0 %v3862
    %3873 = vmatprep.subr.bf16.mxu0 0
    %3874 = vmatpush1.bf16.msra.mxu0 %v3861
    %3875 = vmatprep.subr.bf16.mxu0 0
    %3876 = vmatpush1.bf16.msra.mxu0 %v3860
    %3877 = vmatprep.subr.bf16.mxu0 0
    %3878 = vmatpush1.bf16.msra.mxu0 %v3859
    %3879 = vmatprep.subr.bf16.mxu0 0
    %3880 = vmatpush1.bf16.msra.mxu0 %v3858
    %3881 = vmatprep.subr.bf16.mxu0 0
    %3882 = vmatpush1.bf16.msra.mxu0 %v3857
    %3883 = vmatprep.subr.bf16.mxu0 0
    %3884 = vmatpush1.bf16.msra.mxu0 %v3856
    %3885 = vmatprep.subr.bf16.mxu0 0
    %3886 = vmatpush1.bf16.msra.mxu0 %v3855
    %3887 = vmatprep.subr.bf16.mxu0 0
    %3888 = vmatpush2.bf16.msra.mxu0 0
    %3889 = vmatprep.subr.bf16.mxu0 0
    %3890 = vmatpush2.bf16.msra.mxu0 0
    %3891 = vmatprep.subr.bf16.mxu0 0
    %3892 = vmatpush2.bf16.msra.mxu0 0
    %3893 = vmatprep.subr.bf16.mxu0 0
    %3894 = vmatpush2.bf16.msra.mxu0 0
    %3895 = vmatprep.subr.bf16.mxu0 0
    %3896 = vmatpush2.bf16.msra.mxu0 0
    %3897 = vmatprep.subr.bf16.mxu0 0
    %3898 = vmatpush2.bf16.msra.mxu0 0
    %3899 = vmatprep.subr.bf16.mxu0 0
    %3900 = vmatpush2.bf16.msra.mxu0 0
    %3901 = vmatprep.subr.bf16.mxu0 0
    %3902 = vmatpush2.bf16.msra.mxu0 0
    %3903 = vmatprep.mubr.bf16.mxu0 0
    %3904 = vmatmul.mubr.bf16.gmra.mxu0 %v3782
    %v3905 = vpop.f32.mrf.mxu0
    %v3906 = vadd.f32 %v3821, %v3905
    %v3907 = vpop.f32.mrf.mxu0
    %v3908 = vpop.f32.mrf.mxu0
    %v3909 = vadd.f32 %v3821, %v3908
    %v3910 = vpop.f32.mrf.mxu0
    %3911 = vmatprep.mubr.bf16.mxu0 0
    %3912 = vmatmul.mubr.bf16.gmra.mxu0 %v3783
    %v3913 = vpop.f32.mrf.mxu0
    %v3914 = vadd.f32 %v3821, %v3913
    %v3915 = vpop.f32.mrf.mxu0
    %v3916 = vpop.f32.mrf.mxu0
    %v3917 = vadd.f32 %v3821, %v3916
    %v3918 = vpop.f32.mrf.mxu0
    %3919 = vmatprep.mubr.bf16.mxu0 0
    %3920 = vmatmul.mubr.bf16.gmra.mxu0 %v3784
    %v3921 = vpop.f32.mrf.mxu0
    %v3922 = vadd.f32 %v3821, %v3921
    %v3923 = vpop.f32.mrf.mxu0
    %v3924 = vpop.f32.mrf.mxu0
    %v3925 = vadd.f32 %v3821, %v3924
    %v3926 = vpop.f32.mrf.mxu0
    %3927 = vmatprep.mubr.bf16.mxu0 0
    %3928 = vmatmul.mubr.bf16.gmra.mxu0 %v3785
    %v3929 = vpop.f32.mrf.mxu0
    %v3930 = vadd.f32 %v3821, %v3929
    %v3931 = vpop.f32.mrf.mxu0
    %v3932 = vpop.f32.mrf.mxu0
    %v3933 = vadd.f32 %v3821, %v3932
    %v3934 = vpop.f32.mrf.mxu0
    %3935 = vmatprep.mubr.bf16.mxu0 0
    %3936 = vmatmul.mubr.bf16.gmra.mxu0 %v3786
    %v3937 = vpop.f32.mrf.mxu0
    %v3938 = vadd.f32 %v3821, %v3937
    %v3939 = vpop.f32.mrf.mxu0
    %v3940 = vpop.f32.mrf.mxu0
    %v3941 = vadd.f32 %v3821, %v3940
    %v3942 = vpop.f32.mrf.mxu0
    %3943 = vmatprep.mubr.bf16.mxu0 0
    %3944 = vmatmul.mubr.bf16.gmra.mxu0 %v3787
    %v3945 = vpop.f32.mrf.mxu0
    %v3946 = vadd.f32 %v3821, %v3945
    %v3947 = vpop.f32.mrf.mxu0
    %v3948 = vpop.f32.mrf.mxu0
    %v3949 = vadd.f32 %v3821, %v3948
    %v3950 = vpop.f32.mrf.mxu0
    %3951 = vmatprep.mubr.bf16.mxu0 0
    %3952 = vmatmul.mubr.bf16.gmra.mxu0 %v3788
    %v3953 = vpop.f32.mrf.mxu0
    %v3954 = vadd.f32 %v3821, %v3953
    %v3955 = vpop.f32.mrf.mxu0
    %v3956 = vpop.f32.mrf.mxu0
    %v3957 = vadd.f32 %v3821, %v3956
    %v3958 = vpop.f32.mrf.mxu0
    %3959 = vmatprep.mubr.bf16.mxu0 0
    %3960 = vmatmul.mubr.bf16.gmra.mxu0 %v3789
    %v3961 = vpop.f32.mrf.mxu0
    %v3962 = vadd.f32 %v3821, %v3961
    %v3963 = vpop.f32.mrf.mxu0
    %v3964 = vpop.f32.mrf.mxu0
    %v3965 = vadd.f32 %v3821, %v3964
    %v3966 = vpop.f32.mrf.mxu0
    %3967 = vmatprep.mubr.bf16.mxu0 0
    %3968 = vmatmul.mubr.bf16.gmra.mxu0 %v3790
    %v3969 = vpop.f32.mrf.mxu0
    %v3970 = vadd.f32 %v3821, %v3969
    %v3971 = vpop.f32.mrf.mxu0
    %v3972 = vpop.f32.mrf.mxu0
    %v3973 = vadd.f32 %v3821, %v3972
    %v3974 = vpop.f32.mrf.mxu0
    %3975 = vmatprep.mubr.bf16.mxu0 0
    %3976 = vmatmul.mubr.bf16.gmra.mxu0 %v3791
    %v3977 = vpop.f32.mrf.mxu0
    %v3978 = vadd.f32 %v3821, %v3977
    %v3979 = vpop.f32.mrf.mxu0
    %v3980 = vpop.f32.mrf.mxu0
    %v3981 = vadd.f32 %v3821, %v3980
    %v3982 = vpop.f32.mrf.mxu0
    %3983 = vmatprep.mubr.bf16.mxu0 0
    %3984 = vmatmul.mubr.bf16.gmra.mxu0 %v3792
    %v3985 = vpop.f32.mrf.mxu0
    %v3986 = vadd.f32 %v3821, %v3985
    %v3987 = vpop.f32.mrf.mxu0
    %v3988 = vpop.f32.mrf.mxu0
    %v3989 = vadd.f32 %v3821, %v3988
    %v3990 = vpop.f32.mrf.mxu0
    %3991 = vmatprep.mubr.bf16.mxu0 0
    %3992 = vmatmul.mubr.bf16.gmra.mxu0 %v3793
    %v3993 = vpop.f32.mrf.mxu0
    %v3994 = vadd.f32 %v3821, %v3993
    %v3995 = vpop.f32.mrf.mxu0
    %v3996 = vpop.f32.mrf.mxu0
    %v3997 = vadd.f32 %v3821, %v3996
    %v3998 = vpop.f32.mrf.mxu0
    %3999 = vmatprep.mubr.bf16.mxu0 0
    %4000 = vmatmul.mubr.bf16.gmra.mxu0 %v3794
    %v4001 = vpop.f32.mrf.mxu0
    %v4002 = vadd.f32 %v3821, %v4001
    %v4003 = vpop.f32.mrf.mxu0
    %v4004 = vpop.f32.mrf.mxu0
    %v4005 = vadd.f32 %v3821, %v4004
    %v4006 = vpop.f32.mrf.mxu0
    %4007 = vmatprep.mubr.bf16.mxu0 0
    %4008 = vmatmul.mubr.bf16.gmra.mxu0 %v3795
    %v4009 = vpop.f32.mrf.mxu0
    %v4010 = vadd.f32 %v3821, %v4009
    %v4011 = vpop.f32.mrf.mxu0
    %v4012 = vpop.f32.mrf.mxu0
    %v4013 = vadd.f32 %v3821, %v4012
    %v4014 = vpop.f32.mrf.mxu0
    %4015 = vmatprep.mubr.bf16.mxu0 0
    %4016 = vmatmul.mubr.bf16.gmra.mxu0 %v3796
    %v4017 = vpop.f32.mrf.mxu0
    %v4018 = vadd.f32 %v3821, %v4017
    %v4019 = vpop.f32.mrf.mxu0
    %v4020 = vpop.f32.mrf.mxu0
    %v4021 = vadd.f32 %v3821, %v4020
    %v4022 = vpop.f32.mrf.mxu0
    %4023 = vmatprep.mubr.bf16.mxu0 0
    %4024 = vmatmul.mubr.bf16.gmra.mxu0 %v3797
    %v4025 = vpop.f32.mrf.mxu0
    %v4026 = vadd.f32 %v3821, %v4025
    %v4027 = vpop.f32.mrf.mxu0
    %v4028 = vpop.f32.mrf.mxu0
    %v4029 = vadd.f32 %v3821, %v4028
    %v4030 = vpop.f32.mrf.mxu0
    %4031 = vdwg.mxu0
    %v4032 = vmul.f32 %v3906, 0.5
    %v4033 = vmul.f32 %v3909, 0.5
    %v4034 = vmul.f32 %v3914, 0.5
    %v4035 = vmul.f32 %v3917, 0.5
    %v4036 = vmul.f32 %v3922, 0.5
    %v4037 = vmul.f32 %v3925, 0.5
    %v4038 = vmul.f32 %v3930, 0.5
    %v4039 = vmul.f32 %v3933, 0.5
    %v4040 = vmul.f32 %v3938, 0.5
    %v4041 = vmul.f32 %v3941, 0.5
    %v4042 = vmul.f32 %v3946, 0.5
    %v4043 = vmul.f32 %v3949, 0.5
    %v4044 = vmul.f32 %v3954, 0.5
    %v4045 = vmul.f32 %v3957, 0.5
    %v4046 = vmul.f32 %v3962, 0.5
    %v4047 = vmul.f32 %v3965, 0.5
    %v4048 = vmul.f32 %v3970, 0.5
    %v4049 = vmul.f32 %v3973, 0.5
    %v4050 = vmul.f32 %v3978, 0.5
    %v4051 = vmul.f32 %v3981, 0.5
    %v4052 = vmul.f32 %v3986, 0.5
    %v4053 = vmul.f32 %v3989, 0.5
    %v4054 = vmul.f32 %v3994, 0.5
    %v4055 = vmul.f32 %v3997, 0.5
    %v4056 = vmul.f32 %v4002, 0.5
    %v4057 = vmul.f32 %v4005, 0.5
    %v4058 = vmul.f32 %v4010, 0.5
    %v4059 = vmul.f32 %v4013, 0.5
    %v4060 = vmul.f32 %v4018, 0.5
    %v4061 = vmul.f32 %v4021, 0.5
    %v4062 = vmul.f32 %v4026, 0.5
    %v4063 = vmul.f32 %v4029, 0.5
    %v4064 = vmul.f32 %v3906, 0.044715
    %v4065 = vmul.f32 %v3909, 0.044715
    %v4066 = vmul.f32 %v3914, 0.044715
    %v4067 = vmul.f32 %v3917, 0.044715
    %v4068 = vmul.f32 %v3922, 0.044715
    %v4069 = vmul.f32 %v3925, 0.044715
    %v4070 = vmul.f32 %v3930, 0.044715
    %v4071 = vmul.f32 %v3933, 0.044715
    %v4072 = vmul.f32 %v3938, 0.044715
    %v4073 = vmul.f32 %v3941, 0.044715
    %v4074 = vmul.f32 %v3946, 0.044715
    %v4075 = vmul.f32 %v3949, 0.044715
    %v4076 = vmul.f32 %v3954, 0.044715
    %v4077 = vmul.f32 %v3957, 0.044715
    %v4078 = vmul.f32 %v3962, 0.044715
    %v4079 = vmul.f32 %v3965, 0.044715
    %v4080 = vmul.f32 %v3970, 0.044715
    %v4081 = vmul.f32 %v3973, 0.044715
    %v4082 = vmul.f32 %v3978, 0.044715
    %v4083 = vmul.f32 %v3981, 0.044715
    %v4084 = vmul.f32 %v3986, 0.044715
    %v4085 = vmul.f32 %v3989, 0.044715
    %v4086 = vmul.f32 %v3994, 0.044715
    %v4087 = vmul.f32 %v3997, 0.044715
    %v4088 = vmul.f32 %v4002, 0.044715
    %v4089 = vmul.f32 %v4005, 0.044715
    %v4090 = vmul.f32 %v4010, 0.044715
    %v4091 = vmul.f32 %v4013, 0.044715
    %v4092 = vmul.f32 %v4018, 0.044715
    %v4093 = vmul.f32 %v4021, 0.044715
    %v4094 = vmul.f32 %v4026, 0.044715
    %v4095 = vmul.f32 %v4029, 0.044715
    %v4096 = vmul.f32 %v4064, %v3906
    %v4097 = vmul.f32 %v4065, %v3909
    %v4098 = vmul.f32 %v4066, %v3914
    %v4099 = vmul.f32 %v4067, %v3917
    %v4100 = vmul.f32 %v4068, %v3922
    %v4101 = vmul.f32 %v4069, %v3925
    %v4102 = vmul.f32 %v4070, %v3930
    %v4103 = vmul.f32 %v4071, %v3933
    %v4104 = vmul.f32 %v4072, %v3938
    %v4105 = vmul.f32 %v4073, %v3941
    %v4106 = vmul.f32 %v4074, %v3946
    %v4107 = vmul.f32 %v4075, %v3949
    %v4108 = vmul.f32 %v4076, %v3954
    %v4109 = vmul.f32 %v4077, %v3957
    %v4110 = vmul.f32 %v4078, %v3962
    %v4111 = vmul.f32 %v4079, %v3965
    %v4112 = vmul.f32 %v4080, %v3970
    %v4113 = vmul.f32 %v4081, %v3973
    %v4114 = vmul.f32 %v4082, %v3978
    %v4115 = vmul.f32 %v4083, %v3981
    %v4116 = vmul.f32 %v4084, %v3986
    %v4117 = vmul.f32 %v4085, %v3989
    %v4118 = vmul.f32 %v4086, %v3994
    %v4119 = vmul.f32 %v4087, %v3997
    %v4120 = vmul.f32 %v4088, %v4002
    %v4121 = vmul.f32 %v4089, %v4005
    %v4122 = vmul.f32 %v4090, %v4010
    %v4123 = vmul.f32 %v4091, %v4013
    %v4124 = vmul.f32 %v4092, %v4018
    %v4125 = vmul.f32 %v4093, %v4021
    %v4126 = vmul.f32 %v4094, %v4026
    %v4127 = vmul.f32 %v4095, %v4029
    %v4128 = vmul.f32 %v4096, %v3906
    %v4129 = vmul.f32 %v4097, %v3909
    %v4130 = vmul.f32 %v4098, %v3914
    %v4131 = vmul.f32 %v4099, %v3917
    %v4132 = vmul.f32 %v4100, %v3922
    %v4133 = vmul.f32 %v4101, %v3925
    %v4134 = vmul.f32 %v4102, %v3930
    %v4135 = vmul.f32 %v4103, %v3933
    %v4136 = vmul.f32 %v4104, %v3938
    %v4137 = vmul.f32 %v4105, %v3941
    %v4138 = vmul.f32 %v4106, %v3946
    %v4139 = vmul.f32 %v4107, %v3949
    %v4140 = vmul.f32 %v4108, %v3954
    %v4141 = vmul.f32 %v4109, %v3957
    %v4142 = vmul.f32 %v4110, %v3962
    %v4143 = vmul.f32 %v4111, %v3965
    %v4144 = vmul.f32 %v4112, %v3970
    %v4145 = vmul.f32 %v4113, %v3973
    %v4146 = vmul.f32 %v4114, %v3978
    %v4147 = vmul.f32 %v4115, %v3981
    %v4148 = vmul.f32 %v4116, %v3986
    %v4149 = vmul.f32 %v4117, %v3989
    %v4150 = vmul.f32 %v4118, %v3994
    %v4151 = vmul.f32 %v4119, %v3997
    %v4152 = vmul.f32 %v4120, %v4002
    %v4153 = vmul.f32 %v4121, %v4005
    %v4154 = vmul.f32 %v4122, %v4010
    %v4155 = vmul.f32 %v4123, %v4013
    %v4156 = vmul.f32 %v4124, %v4018
    %v4157 = vmul.f32 %v4125, %v4021
    %v4158 = vmul.f32 %v4126, %v4026
    %v4159 = vmul.f32 %v4127, %v4029
    %v4160 = vadd.f32 %v3906, %v4128
    %v4161 = vadd.f32 %v3909, %v4129
    %v4162 = vadd.f32 %v3914, %v4130
    %v4163 = vadd.f32 %v3917, %v4131
    %v4164 = vadd.f32 %v3922, %v4132
    %v4165 = vadd.f32 %v3925, %v4133
    %v4166 = vadd.f32 %v3930, %v4134
    %v4167 = vadd.f32 %v3933, %v4135
    %v4168 = vadd.f32 %v3938, %v4136
    %v4169 = vadd.f32 %v3941, %v4137
    %v4170 = vadd.f32 %v3946, %v4138
    %v4171 = vadd.f32 %v3949, %v4139
    %v4172 = vadd.f32 %v3954, %v4140
    %v4173 = vadd.f32 %v3957, %v4141
    %v4174 = vadd.f32 %v3962, %v4142
    %v4175 = vadd.f32 %v3965, %v4143
    %v4176 = vadd.f32 %v3970, %v4144
    %v4177 = vadd.f32 %v3973, %v4145
    %v4178 = vadd.f32 %v3978, %v4146
    %v4179 = vadd.f32 %v3981, %v4147
    %v4180 = vadd.f32 %v3986, %v4148
    %v4181 = vadd.f32 %v3989, %v4149
    %v4182 = vadd.f32 %v3994, %v4150
    %v4183 = vadd.f32 %v3997, %v4151
    %v4184 = vadd.f32 %v4002, %v4152
    %v4185 = vadd.f32 %v4005, %v4153
    %v4186 = vadd.f32 %v4010, %v4154
    %v4187 = vadd.f32 %v4013, %v4155
    %v4188 = vadd.f32 %v4018, %v4156
    %v4189 = vadd.f32 %v4021, %v4157
    %v4190 = vadd.f32 %v4026, %v4158
    %v4191 = vadd.f32 %v4029, %v4159
    %v4192 = vmul.f32 %v4160, 0.7978846
    %v4193 = vmul.f32 %v4161, 0.7978846
    %v4194 = vmul.f32 %v4162, 0.7978846
    %v4195 = vmul.f32 %v4163, 0.7978846
    %v4196 = vmul.f32 %v4164, 0.7978846
    %v4197 = vmul.f32 %v4165, 0.7978846
    %v4198 = vmul.f32 %v4166, 0.7978846
    %v4199 = vmul.f32 %v4167, 0.7978846
    %v4200 = vmul.f32 %v4168, 0.7978846
    %v4201 = vmul.f32 %v4169, 0.7978846
    %v4202 = vmul.f32 %v4170, 0.7978846
    %v4203 = vmul.f32 %v4171, 0.7978846
    %v4204 = vmul.f32 %v4172, 0.7978846
    %v4205 = vmul.f32 %v4173, 0.7978846
    %v4206 = vmul.f32 %v4174, 0.7978846
    %v4207 = vmul.f32 %v4175, 0.7978846
    %v4208 = vmul.f32 %v4176, 0.7978846
    %v4209 = vmul.f32 %v4177, 0.7978846
    %v4210 = vmul.f32 %v4178, 0.7978846
    %v4211 = vmul.f32 %v4179, 0.7978846
    %v4212 = vmul.f32 %v4180, 0.7978846
    %v4213 = vmul.f32 %v4181, 0.7978846
    %v4214 = vmul.f32 %v4182, 0.7978846
    %v4215 = vmul.f32 %v4183, 0.7978846
    %v4216 = vmul.f32 %v4184, 0.7978846
    %v4217 = vmul.f32 %v4185, 0.7978846
    %v4218 = vmul.f32 %v4186, 0.7978846
    %v4219 = vmul.f32 %v4187, 0.7978846
    %v4220 = vmul.f32 %v4188, 0.7978846
    %v4221 = vmul.f32 %v4189, 0.7978846
    %v4222 = vmul.f32 %v4190, 0.7978846
    %v4223 = vmul.f32 %v4191, 0.7978846
    %v4224 = vtanh.pop %v4192
    %v4225 = vtanh.pop %v4193
    %v4226 = vtanh.pop %v4194
    %v4227 = vtanh.pop %v4195
    %v4228 = vtanh.pop %v4196
    %v4229 = vtanh.pop %v4197
    %v4230 = vtanh.pop %v4198
    %v4231 = vtanh.pop %v4199
    %v4232 = vtanh.pop %v4200
    %v4233 = vtanh.pop %v4201
    %v4234 = vtanh.pop %v4202
    %v4235 = vtanh.pop %v4203
    %v4236 = vtanh.pop %v4204
    %v4237 = vtanh.pop %v4205
    %v4238 = vtanh.pop %v4206
    %v4239 = vtanh.pop %v4207
    %v4240 = vtanh.pop %v4208
    %v4241 = vtanh.pop %v4209
    %v4242 = vtanh.pop %v4210
    %v4243 = vtanh.pop %v4211
    %v4244 = vtanh.pop %v4212
    %v4245 = vtanh.pop %v4213
    %v4246 = vtanh.pop %v4214
    %v4247 = vtanh.pop %v4215
    %v4248 = vtanh.pop %v4216
    %v4249 = vtanh.pop %v4217
    %v4250 = vtanh.pop %v4218
    %v4251 = vtanh.pop %v4219
    %v4252 = vtanh.pop %v4220
    %v4253 = vtanh.pop %v4221
    %v4254 = vtanh.pop %v4222
    %v4255 = vtanh.pop %v4223
    %v4256 = vadd.f32 %v4224, 1.0
    %v4257 = vadd.f32 %v4225, 1.0
    %v4258 = vadd.f32 %v4226, 1.0
    %v4259 = vadd.f32 %v4227, 1.0
    %v4260 = vadd.f32 %v4228, 1.0
    %v4261 = vadd.f32 %v4229, 1.0
    %v4262 = vadd.f32 %v4230, 1.0
    %v4263 = vadd.f32 %v4231, 1.0
    %v4264 = vadd.f32 %v4232, 1.0
    %v4265 = vadd.f32 %v4233, 1.0
    %v4266 = vadd.f32 %v4234, 1.0
    %v4267 = vadd.f32 %v4235, 1.0
    %v4268 = vadd.f32 %v4236, 1.0
    %v4269 = vadd.f32 %v4237, 1.0
    %v4270 = vadd.f32 %v4238, 1.0
    %v4271 = vadd.f32 %v4239, 1.0
    %v4272 = vadd.f32 %v4240, 1.0
    %v4273 = vadd.f32 %v4241, 1.0
    %v4274 = vadd.f32 %v4242, 1.0
    %v4275 = vadd.f32 %v4243, 1.0
    %v4276 = vadd.f32 %v4244, 1.0
    %v4277 = vadd.f32 %v4245, 1.0
    %v4278 = vadd.f32 %v4246, 1.0
    %v4279 = vadd.f32 %v4247, 1.0
    %v4280 = vadd.f32 %v4248, 1.0
    %v4281 = vadd.f32 %v4249, 1.0
    %v4282 = vadd.f32 %v4250, 1.0
    %v4283 = vadd.f32 %v4251, 1.0
    %v4284 = vadd.f32 %v4252, 1.0
    %v4285 = vadd.f32 %v4253, 1.0
    %v4286 = vadd.f32 %v4254, 1.0
    %v4287 = vadd.f32 %v4255, 1.0
    %v4288 = vmul.f32 %v4032, %v4256
    %v4289 = vmul.f32 %v4033, %v4257
    %v4290 = vmul.f32 %v4034, %v4258
    %v4291 = vmul.f32 %v4035, %v4259
    %v4292 = vmul.f32 %v4036, %v4260
    %v4293 = vmul.f32 %v4037, %v4261
    %v4294 = vmul.f32 %v4038, %v4262
    %v4295 = vmul.f32 %v4039, %v4263
    %v4296 = vmul.f32 %v4040, %v4264
    %v4297 = vmul.f32 %v4041, %v4265
    %v4298 = vmul.f32 %v4042, %v4266
    %v4299 = vmul.f32 %v4043, %v4267
    %v4300 = vmul.f32 %v4044, %v4268
    %v4301 = vmul.f32 %v4045, %v4269
    %v4302 = vmul.f32 %v4046, %v4270
    %v4303 = vmul.f32 %v4047, %v4271
    %v4304 = vmul.f32 %v4048, %v4272
    %v4305 = vmul.f32 %v4049, %v4273
    %v4306 = vmul.f32 %v4050, %v4274
    %v4307 = vmul.f32 %v4051, %v4275
    %v4308 = vmul.f32 %v4052, %v4276
    %v4309 = vmul.f32 %v4053, %v4277
    %v4310 = vmul.f32 %v4054, %v4278
    %v4311 = vmul.f32 %v4055, %v4279
    %v4312 = vmul.f32 %v4056, %v4280
    %v4313 = vmul.f32 %v4057, %v4281
    %v4314 = vmul.f32 %v4058, %v4282
    %v4315 = vmul.f32 %v4059, %v4283
    %v4316 = vmul.f32 %v4060, %v4284
    %v4317 = vmul.f32 %v4061, %v4285
    %v4318 = vmul.f32 %v4062, %v4286
    %v4319 = vmul.f32 %v4063, %v4287
    %v4320 = vpack.c.bf16 %v4289, %v4288
    %v4321 = vpack.c.bf16 %v4291, %v4290
    %v4322 = vpack.c.bf16 %v4293, %v4292
    %v4323 = vpack.c.bf16 %v4295, %v4294
    %v4324 = vpack.c.bf16 %v4297, %v4296
    %v4325 = vpack.c.bf16 %v4299, %v4298
    %v4326 = vpack.c.bf16 %v4301, %v4300
    %v4327 = vpack.c.bf16 %v4303, %v4302
    %v4328 = vpack.c.bf16 %v4305, %v4304
    %v4329 = vpack.c.bf16 %v4307, %v4306
    %v4330 = vpack.c.bf16 %v4309, %v4308
    %v4331 = vpack.c.bf16 %v4311, %v4310
    %v4332 = vpack.c.bf16 %v4313, %v4312
    %v4333 = vpack.c.bf16 %v4315, %v4314
    %v4334 = vpack.c.bf16 %v4317, %v4316
    %v4335 = vpack.c.bf16 %v4319, %v4318
    %s4336 = scalar_lea.vmem [#allocation4], 64
    %v4337 = vld [vmem:[%s4336] sm:$0xf]
    %v4338 = vld [vmem:[%s4336 + $0x4] sm:$0xf]
    %v4339 = vld [vmem:[%s4336 + $0x8] sm:$0xf]
    %v4340 = vld [vmem:[%s4336 + $0xc] sm:$0xf]
    %v4341 = vld [vmem:[%s4336 + $0x10] sm:$0xf]
    %v4342 = vld [vmem:[%s4336 + $0x14] sm:$0xf]
    %v4343 = vld [vmem:[%s4336 + $0x18] sm:$0xf]
    %v4344 = vld [vmem:[%s4336 + $0x1c] sm:$0xf]
    %v4345 = vld [vmem:[%s4336 + $0x20] sm:$0xf]
    %v4346 = vld [vmem:[%s4336 + $0x24] sm:$0xf]
    %v4347 = vld [vmem:[%s4336 + $0x28] sm:$0xf]
    %v4348 = vld [vmem:[%s4336 + $0x2c] sm:$0xf]
    %v4349 = vld [vmem:[%s4336 + $0x30] sm:$0xf]
    %v4350 = vld [vmem:[%s4336 + $0x34] sm:$0xf]
    %v4351 = vld [vmem:[%s4336 + $0x38] sm:$0xf]
    %v4352 = vld [vmem:[%s4336 + $0x3c] sm:$0xf]
    %s4353 = scalar_lea.vmem %s8, 1
    %v4354 = vld [vmem:[%s4353] sm:$0x1]
    %v4356 = vlaneseq
    %v4357 = vshrl.u32 %v4356, 7
    %v4358 = vsub.s32 0, %v4357
    %v4359 = vrot.slane %v4354, %v4358
    %v4377 = vunpack.c.l.b16 %v4337
    %v4378 = vunpack.c.l.b16 %v4338
    %v4379 = vunpack.c.l.b16 %v4339
    %v4380 = vunpack.c.l.b16 %v4340
    %v4381 = vunpack.c.l.b16 %v4341
    %v4382 = vunpack.c.l.b16 %v4342
    %v4383 = vunpack.c.l.b16 %v4343
    %v4384 = vunpack.c.l.b16 %v4344
    %v4385 = vunpack.c.l.b16 %v4345
    %v4386 = vunpack.c.l.b16 %v4346
    %v4387 = vunpack.c.l.b16 %v4347
    %v4388 = vunpack.c.l.b16 %v4348
    %v4389 = vunpack.c.l.b16 %v4349
    %v4390 = vunpack.c.l.b16 %v4350
    %v4391 = vunpack.c.l.b16 %v4351
    %v4392 = vunpack.c.l.b16 %v4352
    %v4393 = vpack.c.b16 %v4378, %v4377
    %v4394 = vpack.c.b16 %v4380, %v4379
    %v4395 = vpack.c.b16 %v4382, %v4381
    %v4396 = vpack.c.b16 %v4384, %v4383
    %v4397 = vpack.c.b16 %v4386, %v4385
    %v4398 = vpack.c.b16 %v4388, %v4387
    %v4399 = vpack.c.b16 %v4390, %v4389
    %v4400 = vpack.c.b16 %v4392, %v4391
    %4409 = vmatprep.subr.bf16.mxu0 0
    %4410 = vmatpush1.bf16.msra.mxu0 %v4400
    %4411 = vmatprep.subr.bf16.mxu0 0
    %4412 = vmatpush1.bf16.msra.mxu0 %v4399
    %4413 = vmatprep.subr.bf16.mxu0 0
    %4414 = vmatpush1.bf16.msra.mxu0 %v4398
    %4415 = vmatprep.subr.bf16.mxu0 0
    %4416 = vmatpush1.bf16.msra.mxu0 %v4397
    %4417 = vmatprep.subr.bf16.mxu0 0
    %4418 = vmatpush1.bf16.msra.mxu0 %v4396
    %4419 = vmatprep.subr.bf16.mxu0 0
    %4420 = vmatpush1.bf16.msra.mxu0 %v4395
    %4421 = vmatprep.subr.bf16.mxu0 0
    %4422 = vmatpush1.bf16.msra.mxu0 %v4394
    %4423 = vmatprep.subr.bf16.mxu0 0
    %4424 = vmatpush1.bf16.msra.mxu0 %v4393
    %4425 = vmatprep.subr.bf16.mxu0 0
    %4426 = vmatpush2.bf16.msra.mxu0 0
    %4427 = vmatprep.subr.bf16.mxu0 0
    %4428 = vmatpush2.bf16.msra.mxu0 0
    %4429 = vmatprep.subr.bf16.mxu0 0
    %4430 = vmatpush2.bf16.msra.mxu0 0
    %4431 = vmatprep.subr.bf16.mxu0 0
    %4432 = vmatpush2.bf16.msra.mxu0 0
    %4433 = vmatprep.subr.bf16.mxu0 0
    %4434 = vmatpush2.bf16.msra.mxu0 0
    %4435 = vmatprep.subr.bf16.mxu0 0
    %4436 = vmatpush2.bf16.msra.mxu0 0
    %4437 = vmatprep.subr.bf16.mxu0 0
    %4438 = vmatpush2.bf16.msra.mxu0 0
    %4439 = vmatprep.subr.bf16.mxu0 0
    %4440 = vmatpush2.bf16.msra.mxu0 0
    %4441 = vmatprep.mubr.bf16.mxu0 0
    %4442 = vmatmul.mubr.bf16.gmra.mxu0 %v4320
    %v4443 = vpop.f32.mrf.mxu0
    %v4444 = vadd.f32 %v4359, %v4443
    %v4445 = vpop.f32.mrf.mxu0
    %v4446 = vpop.f32.mrf.mxu0
    %v4447 = vadd.f32 %v4359, %v4446
    %v4448 = vpop.f32.mrf.mxu0
    %4449 = vmatprep.mubr.bf16.mxu0 0
    %4450 = vmatmul.mubr.bf16.gmra.mxu0 %v4321
    %v4451 = vpop.f32.mrf.mxu0
    %v4452 = vadd.f32 %v4359, %v4451
    %v4453 = vpop.f32.mrf.mxu0
    %v4454 = vpop.f32.mrf.mxu0
    %v4455 = vadd.f32 %v4359, %v4454
    %v4456 = vpop.f32.mrf.mxu0
    %4457 = vmatprep.mubr.bf16.mxu0 0
    %4458 = vmatmul.mubr.bf16.gmra.mxu0 %v4322
    %v4459 = vpop.f32.mrf.mxu0
    %v4460 = vadd.f32 %v4359, %v4459
    %v4461 = vpop.f32.mrf.mxu0
    %v4462 = vpop.f32.mrf.mxu0
    %v4463 = vadd.f32 %v4359, %v4462
    %v4464 = vpop.f32.mrf.mxu0
    %4465 = vmatprep.mubr.bf16.mxu0 0
    %4466 = vmatmul.mubr.bf16.gmra.mxu0 %v4323
    %v4467 = vpop.f32.mrf.mxu0
    %v4468 = vadd.f32 %v4359, %v4467
    %v4469 = vpop.f32.mrf.mxu0
    %v4470 = vpop.f32.mrf.mxu0
    %v4471 = vadd.f32 %v4359, %v4470
    %v4472 = vpop.f32.mrf.mxu0
    %4473 = vmatprep.mubr.bf16.mxu0 0
    %4474 = vmatmul.mubr.bf16.gmra.mxu0 %v4324
    %v4475 = vpop.f32.mrf.mxu0
    %v4476 = vadd.f32 %v4359, %v4475
    %v4477 = vpop.f32.mrf.mxu0
    %v4478 = vpop.f32.mrf.mxu0
    %v4479 = vadd.f32 %v4359, %v4478
    %v4480 = vpop.f32.mrf.mxu0
    %4481 = vmatprep.mubr.bf16.mxu0 0
    %4482 = vmatmul.mubr.bf16.gmra.mxu0 %v4325
    %v4483 = vpop.f32.mrf.mxu0
    %v4484 = vadd.f32 %v4359, %v4483
    %v4485 = vpop.f32.mrf.mxu0
    %v4486 = vpop.f32.mrf.mxu0
    %v4487 = vadd.f32 %v4359, %v4486
    %v4488 = vpop.f32.mrf.mxu0
    %4489 = vmatprep.mubr.bf16.mxu0 0
    %4490 = vmatmul.mubr.bf16.gmra.mxu0 %v4326
    %v4491 = vpop.f32.mrf.mxu0
    %v4492 = vadd.f32 %v4359, %v4491
    %v4493 = vpop.f32.mrf.mxu0
    %v4494 = vpop.f32.mrf.mxu0
    %v4495 = vadd.f32 %v4359, %v4494
    %v4496 = vpop.f32.mrf.mxu0
    %4497 = vmatprep.mubr.bf16.mxu0 0
    %4498 = vmatmul.mubr.bf16.gmra.mxu0 %v4327
    %v4499 = vpop.f32.mrf.mxu0
    %v4500 = vadd.f32 %v4359, %v4499
    %v4501 = vpop.f32.mrf.mxu0
    %v4502 = vpop.f32.mrf.mxu0
    %v4503 = vadd.f32 %v4359, %v4502
    %v4504 = vpop.f32.mrf.mxu0
    %4505 = vmatprep.mubr.bf16.mxu0 0
    %4506 = vmatmul.mubr.bf16.gmra.mxu0 %v4328
    %v4507 = vpop.f32.mrf.mxu0
    %v4508 = vadd.f32 %v4359, %v4507
    %v4509 = vpop.f32.mrf.mxu0
    %v4510 = vpop.f32.mrf.mxu0
    %v4511 = vadd.f32 %v4359, %v4510
    %v4512 = vpop.f32.mrf.mxu0
    %4513 = vmatprep.mubr.bf16.mxu0 0
    %4514 = vmatmul.mubr.bf16.gmra.mxu0 %v4329
    %v4515 = vpop.f32.mrf.mxu0
    %v4516 = vadd.f32 %v4359, %v4515
    %v4517 = vpop.f32.mrf.mxu0
    %v4518 = vpop.f32.mrf.mxu0
    %v4519 = vadd.f32 %v4359, %v4518
    %v4520 = vpop.f32.mrf.mxu0
    %4521 = vmatprep.mubr.bf16.mxu0 0
    %4522 = vmatmul.mubr.bf16.gmra.mxu0 %v4330
    %v4523 = vpop.f32.mrf.mxu0
    %v4524 = vadd.f32 %v4359, %v4523
    %v4525 = vpop.f32.mrf.mxu0
    %v4526 = vpop.f32.mrf.mxu0
    %v4527 = vadd.f32 %v4359, %v4526
    %v4528 = vpop.f32.mrf.mxu0
    %4529 = vmatprep.mubr.bf16.mxu0 0
    %4530 = vmatmul.mubr.bf16.gmra.mxu0 %v4331
    %v4531 = vpop.f32.mrf.mxu0
    %v4532 = vadd.f32 %v4359, %v4531
    %v4533 = vpop.f32.mrf.mxu0
    %v4534 = vpop.f32.mrf.mxu0
    %v4535 = vadd.f32 %v4359, %v4534
    %v4536 = vpop.f32.mrf.mxu0
    %4537 = vmatprep.mubr.bf16.mxu0 0
    %4538 = vmatmul.mubr.bf16.gmra.mxu0 %v4332
    %v4539 = vpop.f32.mrf.mxu0
    %v4540 = vadd.f32 %v4359, %v4539
    %v4541 = vpop.f32.mrf.mxu0
    %v4542 = vpop.f32.mrf.mxu0
    %v4543 = vadd.f32 %v4359, %v4542
    %v4544 = vpop.f32.mrf.mxu0
    %4545 = vmatprep.mubr.bf16.mxu0 0
    %4546 = vmatmul.mubr.bf16.gmra.mxu0 %v4333
    %v4547 = vpop.f32.mrf.mxu0
    %v4548 = vadd.f32 %v4359, %v4547
    %v4549 = vpop.f32.mrf.mxu0
    %v4550 = vpop.f32.mrf.mxu0
    %v4551 = vadd.f32 %v4359, %v4550
    %v4552 = vpop.f32.mrf.mxu0
    %4553 = vmatprep.mubr.bf16.mxu0 0
    %4554 = vmatmul.mubr.bf16.gmra.mxu0 %v4334
    %v4555 = vpop.f32.mrf.mxu0
    %v4556 = vadd.f32 %v4359, %v4555
    %v4557 = vpop.f32.mrf.mxu0
    %v4558 = vpop.f32.mrf.mxu0
    %v4559 = vadd.f32 %v4359, %v4558
    %v4560 = vpop.f32.mrf.mxu0
    %4561 = vmatprep.mubr.bf16.mxu0 0
    %4562 = vmatmul.mubr.bf16.gmra.mxu0 %v4335
    %v4563 = vpop.f32.mrf.mxu0
    %v4564 = vadd.f32 %v4359, %v4563
    %v4565 = vpop.f32.mrf.mxu0
    %v4566 = vpop.f32.mrf.mxu0
    %v4567 = vadd.f32 %v4359, %v4566
    %v4568 = vpop.f32.mrf.mxu0
    %4569 = vdwg.mxu0
    %v4570 = vadd.f32 %v3718, %v4444
    %v4571 = vadd.f32 %v3719, %v4447
    %v4572 = vadd.f32 %v3720, %v4452
    %v4573 = vadd.f32 %v3721, %v4455
    %v4574 = vadd.f32 %v3722, %v4460
    %v4575 = vadd.f32 %v3723, %v4463
    %v4576 = vadd.f32 %v3724, %v4468
    %v4577 = vadd.f32 %v3725, %v4471
    %v4578 = vadd.f32 %v3726, %v4476
    %v4579 = vadd.f32 %v3727, %v4479
    %v4580 = vadd.f32 %v3728, %v4484
    %v4581 = vadd.f32 %v3729, %v4487
    %v4582 = vadd.f32 %v3730, %v4492
    %v4583 = vadd.f32 %v3731, %v4495
    %v4584 = vadd.f32 %v3732, %v4500
    %v4585 = vadd.f32 %v3733, %v4503
    %v4586 = vadd.f32 %v3734, %v4508
    %v4587 = vadd.f32 %v3735, %v4511
    %v4588 = vadd.f32 %v3736, %v4516
    %v4589 = vadd.f32 %v3737, %v4519
    %v4590 = vadd.f32 %v3738, %v4524
    %v4591 = vadd.f32 %v3739, %v4527
    %v4592 = vadd.f32 %v3740, %v4532
    %v4593 = vadd.f32 %v3741, %v4535
    %v4594 = vadd.f32 %v3742, %v4540
    %v4595 = vadd.f32 %v3743, %v4543
    %v4596 = vadd.f32 %v3744, %v4548
    %v4597 = vadd.f32 %v3745, %v4551
    %v4598 = vadd.f32 %v3746, %v4556
    %v4599 = vadd.f32 %v3747, %v4559
    %v4600 = vadd.f32 %v3748, %v4564
    %v4601 = vadd.f32 %v3749, %v4567
    %s4602 = scalar_lea.vmem %s9, 1
    %v4603 = vld [vmem:[%s4602] sm:$0x1]
    %s4604 = scalar_lea.vmem %s10, 1
    %v4605 = vld [vmem:[%s4604] sm:$0x1]
    %4606 = vadd.xlane.f32.xlu0 %v4570
    %v4607 = vpop.xlane.xlu0 %4606
    %4608 = vadd.xlane.f32.xlu0 %v4571
    %v4609 = vpop.xlane.xlu0 %4608
    %4610 = vadd.xlane.f32.xlu0 %v4572
    %v4611 = vpop.xlane.xlu0 %4610
    %4612 = vadd.xlane.f32.xlu0 %v4573
    %v4613 = vpop.xlane.xlu0 %4612
    %4614 = vadd.xlane.f32.xlu0 %v4574
    %v4615 = vpop.xlane.xlu0 %4614
    %4616 = vadd.xlane.f32.xlu0 %v4575
    %v4617 = vpop.xlane.xlu0 %4616
    %4618 = vadd.xlane.f32.xlu0 %v4576
    %v4619 = vpop.xlane.xlu0 %4618
    %4620 = vadd.xlane.f32.xlu0 %v4577
    %v4621 = vpop.xlane.xlu0 %4620
    %4622 = vadd.xlane.f32.xlu0 %v4578
    %v4623 = vpop.xlane.xlu0 %4622
    %4624 = vadd.xlane.f32.xlu0 %v4579
    %v4625 = vpop.xlane.xlu0 %4624
    %4626 = vadd.xlane.f32.xlu0 %v4580
    %v4627 = vpop.xlane.xlu0 %4626
    %4628 = vadd.xlane.f32.xlu0 %v4581
    %v4629 = vpop.xlane.xlu0 %4628
    %4630 = vadd.xlane.f32.xlu0 %v4582
    %v4631 = vpop.xlane.xlu0 %4630
    %4632 = vadd.xlane.f32.xlu0 %v4583
    %v4633 = vpop.xlane.xlu0 %4632
    %4634 = vadd.xlane.f32.xlu0 %v4584
    %v4635 = vpop.xlane.xlu0 %4634
    %4636 = vadd.xlane.f32.xlu0 %v4585
    %v4637 = vpop.xlane.xlu0 %4636
    %4638 = vadd.xlane.f32.xlu0 %v4586
    %v4639 = vpop.xlane.xlu0 %4638
    %4640 = vadd.xlane.f32.xlu0 %v4587
    %v4641 = vpop.xlane.xlu0 %4640
    %4642 = vadd.xlane.f32.xlu0 %v4588
    %v4643 = vpop.xlane.xlu0 %4642
    %4644 = vadd.xlane.f32.xlu0 %v4589
    %v4645 = vpop.xlane.xlu0 %4644
    %4646 = vadd.xlane.f32.xlu0 %v4590
    %v4647 = vpop.xlane.xlu0 %4646
    %4648 = vadd.xlane.f32.xlu0 %v4591
    %v4649 = vpop.xlane.xlu0 %4648
    %4650 = vadd.xlane.f32.xlu0 %v4592
    %v4651 = vpop.xlane.xlu0 %4650
    %4652 = vadd.xlane.f32.xlu0 %v4593
    %v4653 = vpop.xlane.xlu0 %4652
    %4654 = vadd.xlane.f32.xlu0 %v4594
    %v4655 = vpop.xlane.xlu0 %4654
    %4656 = vadd.xlane.f32.xlu0 %v4595
    %v4657 = vpop.xlane.xlu0 %4656
    %4658 = vadd.xlane.f32.xlu0 %v4596
    %v4659 = vpop.xlane.xlu0 %4658
    %4660 = vadd.xlane.f32.xlu0 %v4597
    %v4661 = vpop.xlane.xlu0 %4660
    %4662 = vadd.xlane.f32.xlu0 %v4598
    %v4663 = vpop.xlane.xlu0 %4662
    %4664 = vadd.xlane.f32.xlu0 %v4599
    %v4665 = vpop.xlane.xlu0 %4664
    %4666 = vadd.xlane.f32.xlu0 %v4600
    %v4667 = vpop.xlane.xlu0 %4666
    %4668 = vadd.xlane.f32.xlu0 %v4601
    %v4669 = vpop.xlane.xlu0 %4668
    %v4670 = vmul.f32 %v4607, %v3385
    %v4671 = vmul.f32 %v4609, %v3385
    %v4672 = vmul.f32 %v4611, %v3385
    %v4673 = vmul.f32 %v4613, %v3385
    %v4674 = vmul.f32 %v4615, %v3385
    %v4675 = vmul.f32 %v4617, %v3385
    %v4676 = vmul.f32 %v4619, %v3385
    %v4677 = vmul.f32 %v4621, %v3385
    %v4678 = vmul.f32 %v4623, %v3385
    %v4679 = vmul.f32 %v4625, %v3385
    %v4680 = vmul.f32 %v4627, %v3385
    %v4681 = vmul.f32 %v4629, %v3385
    %v4682 = vmul.f32 %v4631, %v3385
    %v4683 = vmul.f32 %v4633, %v3385
    %v4684 = vmul.f32 %v4635, %v3385
    %v4685 = vmul.f32 %v4637, %v3385
    %v4686 = vmul.f32 %v4639, %v3385
    %v4687 = vmul.f32 %v4641, %v3385
    %v4688 = vmul.f32 %v4643, %v3385
    %v4689 = vmul.f32 %v4645, %v3385
    %v4690 = vmul.f32 %v4647, %v3385
    %v4691 = vmul.f32 %v4649, %v3385
    %v4692 = vmul.f32 %v4651, %v3385
    %v4693 = vmul.f32 %v4653, %v3385
    %v4694 = vmul.f32 %v4655, %v3385
    %v4695 = vmul.f32 %v4657, %v3385
    %v4696 = vmul.f32 %v4659, %v3385
    %v4697 = vmul.f32 %v4661, %v3385
    %v4698 = vmul.f32 %v4663, %v3385
    %v4699 = vmul.f32 %v4665, %v3385
    %v4700 = vmul.f32 %v4667, %v3385
    %v4701 = vmul.f32 %v4669, %v3385
    %v4702 = vsub.f32 %v4570, %v4670
    %v4703 = vsub.f32 %v4571, %v4671
    %v4704 = vsub.f32 %v4572, %v4672
    %v4705 = vsub.f32 %v4573, %v4673
    %v4706 = vsub.f32 %v4574, %v4674
    %v4707 = vsub.f32 %v4575, %v4675
    %v4708 = vsub.f32 %v4576, %v4676
    %v4709 = vsub.f32 %v4577, %v4677
    %v4710 = vsub.f32 %v4578, %v4678
    %v4711 = vsub.f32 %v4579, %v4679
    %v4712 = vsub.f32 %v4580, %v4680
    %v4713 = vsub.f32 %v4581, %v4681
    %v4714 = vsub.f32 %v4582, %v4682
    %v4715 = vsub.f32 %v4583, %v4683
    %v4716 = vsub.f32 %v4584, %v4684
    %v4717 = vsub.f32 %v4585, %v4685
    %v4718 = vsub.f32 %v4586, %v4686
    %v4719 = vsub.f32 %v4587, %v4687
    %v4720 = vsub.f32 %v4588, %v4688
    %v4721 = vsub.f32 %v4589, %v4689
    %v4722 = vsub.f32 %v4590, %v4690
    %v4723 = vsub.f32 %v4591, %v4691
    %v4724 = vsub.f32 %v4592, %v4692
    %v4725 = vsub.f32 %v4593, %v4693
    %v4726 = vsub.f32 %v4594, %v4694
    %v4727 = vsub.f32 %v4595, %v4695
    %v4728 = vsub.f32 %v4596, %v4696
    %v4729 = vsub.f32 %v4597, %v4697
    %v4730 = vsub.f32 %v4598, %v4698
    %v4731 = vsub.f32 %v4599, %v4699
    %v4732 = vsub.f32 %v4600, %v4700
    %v4733 = vsub.f32 %v4601, %v4701
    %v4734 = vmul.f32 %v4702, %v4702
    %v4735 = vmul.f32 %v4703, %v4703
    %v4736 = vmul.f32 %v4704, %v4704
    %v4737 = vmul.f32 %v4705, %v4705
    %v4738 = vmul.f32 %v4706, %v4706
    %v4739 = vmul.f32 %v4707, %v4707
    %v4740 = vmul.f32 %v4708, %v4708
    %v4741 = vmul.f32 %v4709, %v4709
    %v4742 = vmul.f32 %v4710, %v4710
    %v4743 = vmul.f32 %v4711, %v4711
    %v4744 = vmul.f32 %v4712, %v4712
    %v4745 = vmul.f32 %v4713, %v4713
    %v4746 = vmul.f32 %v4714, %v4714
    %v4747 = vmul.f32 %v4715, %v4715
    %v4748 = vmul.f32 %v4716, %v4716
    %v4749 = vmul.f32 %v4717, %v4717
    %v4750 = vmul.f32 %v4718, %v4718
    %v4751 = vmul.f32 %v4719, %v4719
    %v4752 = vmul.f32 %v4720, %v4720
    %v4753 = vmul.f32 %v4721, %v4721
    %v4754 = vmul.f32 %v4722, %v4722
    %v4755 = vmul.f32 %v4723, %v4723
    %v4756 = vmul.f32 %v4724, %v4724
    %v4757 = vmul.f32 %v4725, %v4725
    %v4758 = vmul.f32 %v4726, %v4726
    %v4759 = vmul.f32 %v4727, %v4727
    %v4760 = vmul.f32 %v4728, %v4728
    %v4761 = vmul.f32 %v4729, %v4729
    %v4762 = vmul.f32 %v4730, %v4730
    %v4763 = vmul.f32 %v4731, %v4731
    %v4764 = vmul.f32 %v4732, %v4732
    %v4765 = vmul.f32 %v4733, %v4733
    %4766 = vadd.xlane.f32.xlu0 %v4734
    %v4767 = vpop.xlane.xlu0 %4766
    %4768 = vadd.xlane.f32.xlu0 %v4735
    %v4769 = vpop.xlane.xlu0 %4768
    %4770 = vadd.xlane.f32.xlu0 %v4736
    %v4771 = vpop.xlane.xlu0 %4770
    %4772 = vadd.xlane.f32.xlu0 %v4737
    %v4773 = vpop.xlane.xlu0 %4772
    %4774 = vadd.xlane.f32.xlu0 %v4738
    %v4775 = vpop.xlane.xlu0 %4774
    %4776 = vadd.xlane.f32.xlu0 %v4739
    %v4777 = vpop.xlane.xlu0 %4776
    %4778 = vadd.xlane.f32.xlu0 %v4740
    %v4779 = vpop.xlane.xlu0 %4778
    %4780 = vadd.xlane.f32.xlu0 %v4741
    %v4781 = vpop.xlane.xlu0 %4780
    %4782 = vadd.xlane.f32.xlu0 %v4742
    %v4783 = vpop.xlane.xlu0 %4782
    %4784 = vadd.xlane.f32.xlu0 %v4743
    %v4785 = vpop.xlane.xlu0 %4784
    %4786 = vadd.xlane.f32.xlu0 %v4744
    %v4787 = vpop.xlane.xlu0 %4786
    %4788 = vadd.xlane.f32.xlu0 %v4745
    %v4789 = vpop.xlane.xlu0 %4788
    %4790 = vadd.xlane.f32.xlu0 %v4746
    %v4791 = vpop.xlane.xlu0 %4790
    %4792 = vadd.xlane.f32.xlu0 %v4747
    %v4793 = vpop.xlane.xlu0 %4792
    %4794 = vadd.xlane.f32.xlu0 %v4748
    %v4795 = vpop.xlane.xlu0 %4794
    %4796 = vadd.xlane.f32.xlu0 %v4749
    %v4797 = vpop.xlane.xlu0 %4796
    %4798 = vadd.xlane.f32.xlu0 %v4750
    %v4799 = vpop.xlane.xlu0 %4798
    %4800 = vadd.xlane.f32.xlu0 %v4751
    %v4801 = vpop.xlane.xlu0 %4800
    %4802 = vadd.xlane.f32.xlu0 %v4752
    %v4803 = vpop.xlane.xlu0 %4802
    %4804 = vadd.xlane.f32.xlu0 %v4753
    %v4805 = vpop.xlane.xlu0 %4804
    %4806 = vadd.xlane.f32.xlu0 %v4754
    %v4807 = vpop.xlane.xlu0 %4806
    %4808 = vadd.xlane.f32.xlu0 %v4755
    %v4809 = vpop.xlane.xlu0 %4808
    %4810 = vadd.xlane.f32.xlu0 %v4756
    %v4811 = vpop.xlane.xlu0 %4810
    %4812 = vadd.xlane.f32.xlu0 %v4757
    %v4813 = vpop.xlane.xlu0 %4812
    %4814 = vadd.xlane.f32.xlu0 %v4758
    %v4815 = vpop.xlane.xlu0 %4814
    %4816 = vadd.xlane.f32.xlu0 %v4759
    %v4817 = vpop.xlane.xlu0 %4816
    %4818 = vadd.xlane.f32.xlu0 %v4760
    %v4819 = vpop.xlane.xlu0 %4818
    %4820 = vadd.xlane.f32.xlu0 %v4761
    %v4821 = vpop.xlane.xlu0 %4820
    %4822 = vadd.xlane.f32.xlu0 %v4762
    %v4823 = vpop.xlane.xlu0 %4822
    %4824 = vadd.xlane.f32.xlu0 %v4763
    %v4825 = vpop.xlane.xlu0 %4824
    %4826 = vadd.xlane.f32.xlu0 %v4764
    %v4827 = vpop.xlane.xlu0 %4826
    %4828 = vadd.xlane.f32.xlu0 %v4765
    %v4829 = vpop.xlane.xlu0 %4828
    %v4830 = vmul.f32 %v4767, %v3385
    %v4831 = vmul.f32 %v4769, %v3385
    %v4832 = vmul.f32 %v4771, %v3385
    %v4833 = vmul.f32 %v4773, %v3385
    %v4834 = vmul.f32 %v4775, %v3385
    %v4835 = vmul.f32 %v4777, %v3385
    %v4836 = vmul.f32 %v4779, %v3385
    %v4837 = vmul.f32 %v4781, %v3385
    %v4838 = vmul.f32 %v4783, %v3385
    %v4839 = vmul.f32 %v4785, %v3385
    %v4840 = vmul.f32 %v4787, %v3385
    %v4841 = vmul.f32 %v4789, %v3385
    %v4842 = vmul.f32 %v4791, %v3385
    %v4843 = vmul.f32 %v4793, %v3385
    %v4844 = vmul.f32 %v4795, %v3385
    %v4845 = vmul.f32 %v4797, %v3385
    %v4846 = vmul.f32 %v4799, %v3385
    %v4847 = vmul.f32 %v4801, %v3385
    %v4848 = vmul.f32 %v4803, %v3385
    %v4849 = vmul.f32 %v4805, %v3385
    %v4850 = vmul.f32 %v4807, %v3385
    %v4851 = vmul.f32 %v4809, %v3385
    %v4852 = vmul.f32 %v4811, %v3385
    %v4853 = vmul.f32 %v4813, %v3385
    %v4854 = vmul.f32 %v4815, %v3385
    %v4855 = vmul.f32 %v4817, %v3385
    %v4856 = vmul.f32 %v4819, %v3385
    %v4857 = vmul.f32 %v4821, %v3385
    %v4858 = vmul.f32 %v4823, %v3385
    %v4859 = vmul.f32 %v4825, %v3385
    %v4860 = vmul.f32 %v4827, %v3385
    %v4861 = vmul.f32 %v4829, %v3385
    %v4862 = vadd.f32 %v4830, 1e-05
    %v4863 = vadd.f32 %v4831, 1e-05
    %v4864 = vadd.f32 %v4832, 1e-05
    %v4865 = vadd.f32 %v4833, 1e-05
    %v4866 = vadd.f32 %v4834, 1e-05
    %v4867 = vadd.f32 %v4835, 1e-05
    %v4868 = vadd.f32 %v4836, 1e-05
    %v4869 = vadd.f32 %v4837, 1e-05
    %v4870 = vadd.f32 %v4838, 1e-05
    %v4871 = vadd.f32 %v4839, 1e-05
    %v4872 = vadd.f32 %v4840, 1e-05
    %v4873 = vadd.f32 %v4841, 1e-05
    %v4874 = vadd.f32 %v4842, 1e-05
    %v4875 = vadd.f32 %v4843, 1e-05
    %v4876 = vadd.f32 %v4844, 1e-05
    %v4877 = vadd.f32 %v4845, 1e-05
    %v4878 = vadd.f32 %v4846, 1e-05
    %v4879 = vadd.f32 %v4847, 1e-05
    %v4880 = vadd.f32 %v4848, 1e-05
    %v4881 = vadd.f32 %v4849, 1e-05
    %v4882 = vadd.f32 %v4850, 1e-05
    %v4883 = vadd.f32 %v4851, 1e-05
    %v4884 = vadd.f32 %v4852, 1e-05
    %v4885 = vadd.f32 %v4853, 1e-05
    %v4886 = vadd.f32 %v4854, 1e-05
    %v4887 = vadd.f32 %v4855, 1e-05
    %v4888 = vadd.f32 %v4856, 1e-05
    %v4889 = vadd.f32 %v4857, 1e-05
    %v4890 = vadd.f32 %v4858, 1e-05
    %v4891 = vadd.f32 %v4859, 1e-05
    %v4892 = vadd.f32 %v4860, 1e-05
    %v4893 = vadd.f32 %v4861, 1e-05
    %v4894 = vrsqrt.pop %v4862
    %v4895 = vrsqrt.pop %v4863
    %v4896 = vrsqrt.pop %v4864
    %v4897 = vrsqrt.pop %v4865
    %v4898 = vrsqrt.pop %v4866
    %v4899 = vrsqrt.pop %v4867
    %v4900 = vrsqrt.pop %v4868
    %v4901 = vrsqrt.pop %v4869
    %v4902 = vrsqrt.pop %v4870
    %v4903 = vrsqrt.pop %v4871
    %v4904 = vrsqrt.pop %v4872
    %v4905 = vrsqrt.pop %v4873
    %v4906 = vrsqrt.pop %v4874
    %v4907 = vrsqrt.pop %v4875
    %v4908 = vrsqrt.pop %v4876
    %v4909 = vrsqrt.pop %v4877
    %v4910 = vrsqrt.pop %v4878
    %v4911 = vrsqrt.pop %v4879
    %v4912 = vrsqrt.pop %v4880
    %v4913 = vrsqrt.pop %v4881
    %v4914 = vrsqrt.pop %v4882
    %v4915 = vrsqrt.pop %v4883
    %v4916 = vrsqrt.pop %v4884
    %v4917 = vrsqrt.pop %v4885
    %v4918 = vrsqrt.pop %v4886
    %v4919 = vrsqrt.pop %v4887
    %v4920 = vrsqrt.pop %v4888
    %v4921 = vrsqrt.pop %v4889
    %v4922 = vrsqrt.pop %v4890
    %v4923 = vrsqrt.pop %v4891
    %v4924 = vrsqrt.pop %v4892
    %v4925 = vrsqrt.pop %v4893
    %v4926 = vmul.f32 %v4702, %v4894
    %v4927 = vmul.f32 %v4703, %v4895
    %v4928 = vmul.f32 %v4704, %v4896
    %v4929 = vmul.f32 %v4705, %v4897
    %v4930 = vmul.f32 %v4706, %v4898
    %v4931 = vmul.f32 %v4707, %v4899
    %v4932 = vmul.f32 %v4708, %v4900
    %v4933 = vmul.f32 %v4709, %v4901
    %v4934 = vmul.f32 %v4710, %v4902
    %v4935 = vmul.f32 %v4711, %v4903
    %v4936 = vmul.f32 %v4712, %v4904
    %v4937 = vmul.f32 %v4713, %v4905
    %v4938 = vmul.f32 %v4714, %v4906
    %v4939 = vmul.f32 %v4715, %v4907
    %v4940 = vmul.f32 %v4716, %v4908
    %v4941 = vmul.f32 %v4717, %v4909
    %v4942 = vmul.f32 %v4718, %v4910
    %v4943 = vmul.f32 %v4719, %v4911
    %v4944 = vmul.f32 %v4720, %v4912
    %v4945 = vmul.f32 %v4721, %v4913
    %v4946 = vmul.f32 %v4722, %v4914
    %v4947 = vmul.f32 %v4723, %v4915
    %v4948 = vmul.f32 %v4724, %v4916
    %v4949 = vmul.f32 %v4725, %v4917
    %v4950 = vmul.f32 %v4726, %v4918
    %v4951 = vmul.f32 %v4727, %v4919
    %v4952 = vmul.f32 %v4728, %v4920
    %v4953 = vmul.f32 %v4729, %v4921
    %v4954 = vmul.f32 %v4730, %v4922
    %v4955 = vmul.f32 %v4731, %v4923
    %v4956 = vmul.f32 %v4732, %v4924
    %v4957 = vmul.f32 %v4733, %v4925
    %v4959 = vlaneseq
    %v4960 = vshrl.u32 %v4959, 7
    %v4961 = vsub.s32 0, %v4960
    %v4962 = vrot.slane %v4603, %v4961
    %v4964 = vmul.f32 %v4926, %v4962
    %v4965 = vmul.f32 %v4927, %v4962
    %v4966 = vmul.f32 %v4928, %v4962
    %v4967 = vmul.f32 %v4929, %v4962
    %v4968 = vmul.f32 %v4930, %v4962
    %v4969 = vmul.f32 %v4931, %v4962
    %v4970 = vmul.f32 %v4932, %v4962
    %v4971 = vmul.f32 %v4933, %v4962
    %v4972 = vmul.f32 %v4934, %v4962
    %v4973 = vmul.f32 %v4935, %v4962
    %v4974 = vmul.f32 %v4936, %v4962
    %v4975 = vmul.f32 %v4937, %v4962
    %v4976 = vmul.f32 %v4938, %v4962
    %v4977 = vmul.f32 %v4939, %v4962
    %v4978 = vmul.f32 %v4940, %v4962
    %v4979 = vmul.f32 %v4941, %v4962
    %v4980 = vmul.f32 %v4942, %v4962
    %v4981 = vmul.f32 %v4943, %v4962
    %v4982 = vmul.f32 %v4944, %v4962
    %v4983 = vmul.f32 %v4945, %v4962
    %v4984 = vmul.f32 %v4946, %v4962
    %v4985 = vmul.f32 %v4947, %v4962
    %v4986 = vmul.f32 %v4948, %v4962
    %v4987 = vmul.f32 %v4949, %v4962
    %v4988 = vmul.f32 %v4950, %v4962
    %v4989 = vmul.f32 %v4951, %v4962
    %v4990 = vmul.f32 %v4952, %v4962
    %v4991 = vmul.f32 %v4953, %v4962
    %v4992 = vmul.f32 %v4954, %v4962
    %v4993 = vmul.f32 %v4955, %v4962
    %v4994 = vmul.f32 %v4956, %v4962
    %v4995 = vmul.f32 %v4957, %v4962
    %v4997 = vlaneseq
    %v4998 = vshrl.u32 %v4997, 7
    %v4999 = vsub.s32 0, %v4998
    %v5000 = vrot.slane %v4605, %v4999
    %v5002 = vadd.f32 %v4964, %v5000
    %v5003 = vadd.f32 %v4965, %v5000
    %v5004 = vadd.f32 %v4966, %v5000
    %v5005 = vadd.f32 %v4967, %v5000
    %v5006 = vadd.f32 %v4968, %v5000
    %v5007 = vadd.f32 %v4969, %v5000
    %v5008 = vadd.f32 %v4970, %v5000
    %v5009 = vadd.f32 %v4971, %v5000
    %v5010 = vadd.f32 %v4972, %v5000
    %v5011 = vadd.f32 %v4973, %v5000
    %v5012 = vadd.f32 %v4974, %v5000
    %v5013 = vadd.f32 %v4975, %v5000
    %v5014 = vadd.f32 %v4976, %v5000
    %v5015 = vadd.f32 %v4977, %v5000
    %v5016 = vadd.f32 %v4978, %v5000
    %v5017 = vadd.f32 %v4979, %v5000
    %v5018 = vadd.f32 %v4980, %v5000
    %v5019 = vadd.f32 %v4981, %v5000
    %v5020 = vadd.f32 %v4982, %v5000
    %v5021 = vadd.f32 %v4983, %v5000
    %v5022 = vadd.f32 %v4984, %v5000
    %v5023 = vadd.f32 %v4985, %v5000
    %v5024 = vadd.f32 %v4986, %v5000
    %v5025 = vadd.f32 %v4987, %v5000
    %v5026 = vadd.f32 %v4988, %v5000
    %v5027 = vadd.f32 %v4989, %v5000
    %v5028 = vadd.f32 %v4990, %v5000
    %v5029 = vadd.f32 %v4991, %v5000
    %v5030 = vadd.f32 %v4992, %v5000
    %v5031 = vadd.f32 %v4993, %v5000
    %v5032 = vadd.f32 %v4994, %v5000
    %v5033 = vadd.f32 %v4995, %v5000
    %v5034 = vpack.c.bf16 %v5003, %v5002
    %v5035 = vpack.c.bf16 %v5005, %v5004
    %v5036 = vpack.c.bf16 %v5007, %v5006
    %v5037 = vpack.c.bf16 %v5009, %v5008
    %v5038 = vpack.c.bf16 %v5011, %v5010
    %v5039 = vpack.c.bf16 %v5013, %v5012
    %v5040 = vpack.c.bf16 %v5015, %v5014
    %v5041 = vpack.c.bf16 %v5017, %v5016
    %v5042 = vpack.c.bf16 %v5019, %v5018
    %v5043 = vpack.c.bf16 %v5021, %v5020
    %v5044 = vpack.c.bf16 %v5023, %v5022
    %v5045 = vpack.c.bf16 %v5025, %v5024
    %v5046 = vpack.c.bf16 %v5027, %v5026
    %v5047 = vpack.c.bf16 %v5029, %v5028
    %v5048 = vpack.c.bf16 %v5031, %v5030
    %v5049 = vpack.c.bf16 %v5033, %v5032
    %v5050 = vld [vmem:[%s11] sm:$0xf]
    %v5051 = vld [vmem:[%s11 + $0x4] sm:$0xf]
    %v5052 = vld [vmem:[%s11 + $0x8] sm:$0xf]
    %v5053 = vld [vmem:[%s11 + $0xc] sm:$0xf]
    %v5054 = vld [vmem:[%s11 + $0x10] sm:$0xf]
    %v5055 = vld [vmem:[%s11 + $0x14] sm:$0xf]
    %v5056 = vld [vmem:[%s11 + $0x18] sm:$0xf]
    %v5057 = vld [vmem:[%s11 + $0x1c] sm:$0xf]
    %v5058 = vld [vmem:[%s11 + $0x20] sm:$0xf]
    %v5059 = vld [vmem:[%s11 + $0x24] sm:$0xf]
    %v5060 = vld [vmem:[%s11 + $0x28] sm:$0xf]
    %v5061 = vld [vmem:[%s11 + $0x2c] sm:$0xf]
    %v5062 = vld [vmem:[%s11 + $0x30] sm:$0xf]
    %v5063 = vld [vmem:[%s11 + $0x34] sm:$0xf]
    %v5064 = vld [vmem:[%s11 + $0x38] sm:$0xf]
    %v5065 = vld [vmem:[%s11 + $0x3c] sm:$0xf]
    %v5066 = vld [vmem:[%s12] sm:$0x1]
    %v5068 = vlaneseq
    %v5069 = vshrl.u32 %v5068, 7
    %v5070 = vsub.s32 0, %v5069
    %v5071 = vrot.slane %v5066, %v5070
    %v5089 = vunpack.c.l.b16 %v5050
    %v5090 = vunpack.c.l.b16 %v5051
    %v5091 = vunpack.c.l.b16 %v5052
    %v5092 = vunpack.c.l.b16 %v5053
    %v5093 = vunpack.c.l.b16 %v5054
    %v5094 = vunpack.c.l.b16 %v5055
    %v5095 = vunpack.c.l.b16 %v5056
    %v5096 = vunpack.c.l.b16 %v5057
    %v5097 = vunpack.c.l.b16 %v5058
    %v5098 = vunpack.c.l.b16 %v5059
    %v5099 = vunpack.c.l.b16 %v5060
    %v5100 = vunpack.c.l.b16 %v5061
    %v5101 = vunpack.c.l.b16 %v5062
    %v5102 = vunpack.c.l.b16 %v5063
    %v5103 = vunpack.c.l.b16 %v5064
    %v5104 = vunpack.c.l.b16 %v5065
    %v5105 = vpack.c.b16 %v5090, %v5089
    %v5106 = vpack.c.b16 %v5092, %v5091
    %v5107 = vpack.c.b16 %v5094, %v5093
    %v5108 = vpack.c.b16 %v5096, %v5095
    %v5109 = vpack.c.b16 %v5098, %v5097
    %v5110 = vpack.c.b16 %v5100, %v5099
    %v5111 = vpack.c.b16 %v5102, %v5101
    %v5112 = vpack.c.b16 %v5104, %v5103
    %5121 = vmatprep.subr.bf16.mxu0 0
    %5122 = vmatpush1.bf16.msra.mxu0 %v5112
    %5123 = vmatprep.subr.bf16.mxu0 0
    %5124 = vmatpush1.bf16.msra.mxu0 %v5111
    %5125 = vmatprep.subr.bf16.mxu0 0
    %5126 = vmatpush1.bf16.msra.mxu0 %v5110
    %5127 = vmatprep.subr.bf16.mxu0 0
    %5128 = vmatpush1.bf16.msra.mxu0 %v5109
    %5129 = vmatprep.subr.bf16.mxu0 0
    %5130 = vmatpush1.bf16.msra.mxu0 %v5108
    %5131 = vmatprep.subr.bf16.mxu0 0
    %5132 = vmatpush1.bf16.msra.mxu0 %v5107
    %5133 = vmatprep.subr.bf16.mxu0 0
    %5134 = vmatpush1.bf16.msra.mxu0 %v5106
    %5135 = vmatprep.subr.bf16.mxu0 0
    %5136 = vmatpush1.bf16.msra.mxu0 %v5105
    %5137 = vmatprep.subr.bf16.mxu0 0
    %5138 = vmatpush2.bf16.msra.mxu0 0
    %5139 = vmatprep.subr.bf16.mxu0 0
    %5140 = vmatpush2.bf16.msra.mxu0 0
    %5141 = vmatprep.subr.bf16.mxu0 0
    %5142 = vmatpush2.bf16.msra.mxu0 0
    %5143 = vmatprep.subr.bf16.mxu0 0
    %5144 = vmatpush2.bf16.msra.mxu0 0
    %5145 = vmatprep.subr.bf16.mxu0 0
    %5146 = vmatpush2.bf16.msra.mxu0 0
    %5147 = vmatprep.subr.bf16.mxu0 0
    %5148 = vmatpush2.bf16.msra.mxu0 0
    %5149 = vmatprep.subr.bf16.mxu0 0
    %5150 = vmatpush2.bf16.msra.mxu0 0
    %5151 = vmatprep.subr.bf16.mxu0 0
    %5152 = vmatpush2.bf16.msra.mxu0 0
    %5153 = vmatprep.mubr.bf16.mxu0 0
    %5154 = vmatmul.mubr.bf16.gmra.mxu0 %v5034
    %v5155 = vpop.f32.mrf.mxu0
    %v5156 = vadd.f32 %v5071, %v5155
    %v5157 = vpop.f32.mrf.mxu0
    %v5158 = vpop.f32.mrf.mxu0
    %v5159 = vadd.f32 %v5071, %v5158
    %v5160 = vpop.f32.mrf.mxu0
    %5161 = vmatprep.mubr.bf16.mxu0 0
    %5162 = vmatmul.mubr.bf16.gmra.mxu0 %v5035
    %v5163 = vpop.f32.mrf.mxu0
    %v5164 = vadd.f32 %v5071, %v5163
    %v5165 = vpop.f32.mrf.mxu0
    %v5166 = vpop.f32.mrf.mxu0
    %v5167 = vadd.f32 %v5071, %v5166
    %v5168 = vpop.f32.mrf.mxu0
    %5169 = vmatprep.mubr.bf16.mxu0 0
    %5170 = vmatmul.mubr.bf16.gmra.mxu0 %v5036
    %v5171 = vpop.f32.mrf.mxu0
    %v5172 = vadd.f32 %v5071, %v5171
    %v5173 = vpop.f32.mrf.mxu0
    %v5174 = vpop.f32.mrf.mxu0
    %v5175 = vadd.f32 %v5071, %v5174
    %v5176 = vpop.f32.mrf.mxu0
    %5177 = vmatprep.mubr.bf16.mxu0 0
    %5178 = vmatmul.mubr.bf16.gmra.mxu0 %v5037
    %v5179 = vpop.f32.mrf.mxu0
    %v5180 = vadd.f32 %v5071, %v5179
    %v5181 = vpop.f32.mrf.mxu0
    %v5182 = vpop.f32.mrf.mxu0
    %v5183 = vadd.f32 %v5071, %v5182
    %v5184 = vpop.f32.mrf.mxu0
    %5185 = vmatprep.mubr.bf16.mxu0 0
    %5186 = vmatmul.mubr.bf16.gmra.mxu0 %v5038
    %v5187 = vpop.f32.mrf.mxu0
    %v5188 = vadd.f32 %v5071, %v5187
    %v5189 = vpop.f32.mrf.mxu0
    %v5190 = vpop.f32.mrf.mxu0
    %v5191 = vadd.f32 %v5071, %v5190
    %v5192 = vpop.f32.mrf.mxu0
    %5193 = vmatprep.mubr.bf16.mxu0 0
    %5194 = vmatmul.mubr.bf16.gmra.mxu0 %v5039
    %v5195 = vpop.f32.mrf.mxu0
    %v5196 = vadd.f32 %v5071, %v5195
    %v5197 = vpop.f32.mrf.mxu0
    %v5198 = vpop.f32.mrf.mxu0
    %v5199 = vadd.f32 %v5071, %v5198
    %v5200 = vpop.f32.mrf.mxu0
    %5201 = vmatprep.mubr.bf16.mxu0 0
    %5202 = vmatmul.mubr.bf16.gmra.mxu0 %v5040
    %v5203 = vpop.f32.mrf.mxu0
    %v5204 = vadd.f32 %v5071, %v5203
    %v5205 = vpop.f32.mrf.mxu0
    %v5206 = vpop.f32.mrf.mxu0
    %v5207 = vadd.f32 %v5071, %v5206
    %v5208 = vpop.f32.mrf.mxu0
    %5209 = vmatprep.mubr.bf16.mxu0 0
    %5210 = vmatmul.mubr.bf16.gmra.mxu0 %v5041
    %v5211 = vpop.f32.mrf.mxu0
    %v5212 = vadd.f32 %v5071, %v5211
    %v5213 = vpop.f32.mrf.mxu0
    %v5214 = vpop.f32.mrf.mxu0
    %v5215 = vadd.f32 %v5071, %v5214
    %v5216 = vpop.f32.mrf.mxu0
    %5217 = vmatprep.mubr.bf16.mxu0 0
    %5218 = vmatmul.mubr.bf16.gmra.mxu0 %v5042
    %v5219 = vpop.f32.mrf.mxu0
    %v5220 = vadd.f32 %v5071, %v5219
    %v5221 = vpop.f32.mrf.mxu0
    %v5222 = vpop.f32.mrf.mxu0
    %v5223 = vadd.f32 %v5071, %v5222
    %v5224 = vpop.f32.mrf.mxu0
    %5225 = vmatprep.mubr.bf16.mxu0 0
    %5226 = vmatmul.mubr.bf16.gmra.mxu0 %v5043
    %v5227 = vpop.f32.mrf.mxu0
    %v5228 = vadd.f32 %v5071, %v5227
    %v5229 = vpop.f32.mrf.mxu0
    %v5230 = vpop.f32.mrf.mxu0
    %v5231 = vadd.f32 %v5071, %v5230
    %v5232 = vpop.f32.mrf.mxu0
    %5233 = vmatprep.mubr.bf16.mxu0 0
    %5234 = vmatmul.mubr.bf16.gmra.mxu0 %v5044
    %v5235 = vpop.f32.mrf.mxu0
    %v5236 = vadd.f32 %v5071, %v5235
    %v5237 = vpop.f32.mrf.mxu0
    %v5238 = vpop.f32.mrf.mxu0
    %v5239 = vadd.f32 %v5071, %v5238
    %v5240 = vpop.f32.mrf.mxu0
    %5241 = vmatprep.mubr.bf16.mxu0 0
    %5242 = vmatmul.mubr.bf16.gmra.mxu0 %v5045
    %v5243 = vpop.f32.mrf.mxu0
    %v5244 = vadd.f32 %v5071, %v5243
    %v5245 = vpop.f32.mrf.mxu0
    %v5246 = vpop.f32.mrf.mxu0
    %v5247 = vadd.f32 %v5071, %v5246
    %v5248 = vpop.f32.mrf.mxu0
    %5249 = vmatprep.mubr.bf16.mxu0 0
    %5250 = vmatmul.mubr.bf16.gmra.mxu0 %v5046
    %v5251 = vpop.f32.mrf.mxu0
    %v5252 = vadd.f32 %v5071, %v5251
    %v5253 = vpop.f32.mrf.mxu0
    %v5254 = vpop.f32.mrf.mxu0
    %v5255 = vadd.f32 %v5071, %v5254
    %v5256 = vpop.f32.mrf.mxu0
    %5257 = vmatprep.mubr.bf16.mxu0 0
    %5258 = vmatmul.mubr.bf16.gmra.mxu0 %v5047
    %v5259 = vpop.f32.mrf.mxu0
    %v5260 = vadd.f32 %v5071, %v5259
    %v5261 = vpop.f32.mrf.mxu0
    %v5262 = vpop.f32.mrf.mxu0
    %v5263 = vadd.f32 %v5071, %v5262
    %v5264 = vpop.f32.mrf.mxu0
    %5265 = vmatprep.mubr.bf16.mxu0 0
    %5266 = vmatmul.mubr.bf16.gmra.mxu0 %v5048
    %v5267 = vpop.f32.mrf.mxu0
    %v5268 = vadd.f32 %v5071, %v5267
    %v5269 = vpop.f32.mrf.mxu0
    %v5270 = vpop.f32.mrf.mxu0
    %v5271 = vadd.f32 %v5071, %v5270
    %v5272 = vpop.f32.mrf.mxu0
    %5273 = vmatprep.mubr.bf16.mxu0 0
    %5274 = vmatmul.mubr.bf16.gmra.mxu0 %v5049
    %v5275 = vpop.f32.mrf.mxu0
    %v5276 = vadd.f32 %v5071, %v5275
    %v5277 = vpop.f32.mrf.mxu0
    %v5278 = vpop.f32.mrf.mxu0
    %v5279 = vadd.f32 %v5071, %v5278
    %v5280 = vpop.f32.mrf.mxu0
    %5281 = vdwg.mxu0
    %vm5282 = vcmask 64512
    %5283 = vst.msk [vmem:[%s13] sm:$0xff] %vm5282, %v5156
    %5284 = vst.msk [vmem:[%s13 + $0x8] sm:$0xff] %vm5282, %v5159
    %5285 = vst.msk [vmem:[%s13 + $0x10] sm:$0xff] %vm5282, %v5164
    %5286 = vst.msk [vmem:[%s13 + $0x18] sm:$0xff] %vm5282, %v5167
    %5287 = vst.msk [vmem:[%s13 + $0x20] sm:$0xff] %vm5282, %v5172
    %5288 = vst.msk [vmem:[%s13 + $0x28] sm:$0xff] %vm5282, %v5175
    %5289 = vst.msk [vmem:[%s13 + $0x30] sm:$0xff] %vm5282, %v5180
    %5290 = vst.msk [vmem:[%s13 + $0x38] sm:$0xff] %vm5282, %v5183
    %5291 = vst.msk [vmem:[%s13 + $0x40] sm:$0xff] %vm5282, %v5188
    %5292 = vst.msk [vmem:[%s13 + $0x48] sm:$0xff] %vm5282, %v5191
    %5293 = vst.msk [vmem:[%s13 + $0x50] sm:$0xff] %vm5282, %v5196
    %5294 = vst.msk [vmem:[%s13 + $0x58] sm:$0xff] %vm5282, %v5199
    %5295 = vst.msk [vmem:[%s13 + $0x60] sm:$0xff] %vm5282, %v5204
    %5296 = vst.msk [vmem:[%s13 + $0x68] sm:$0xff] %vm5282, %v5207
    %5297 = vst.msk [vmem:[%s13 + $0x70] sm:$0xff] %vm5282, %v5212
    %5298 = vst.msk [vmem:[%s13 + $0x78] sm:$0xff] %vm5282, %v5215
    %5299 = vst.msk [vmem:[%s13 + $0x80] sm:$0xff] %vm5282, %v5220
    %5300 = vst.msk [vmem:[%s13 + $0x88] sm:$0xff] %vm5282, %v5223
    %5301 = vst.msk [vmem:[%s13 + $0x90] sm:$0xff] %vm5282, %v5228
    %5302 = vst.msk [vmem:[%s13 + $0x98] sm:$0xff] %vm5282, %v5231
    %5303 = vst.msk [vmem:[%s13 + $0xa0] sm:$0xff] %vm5282, %v5236
    %5304 = vst.msk [vmem:[%s13 + $0xa8] sm:$0xff] %vm5282, %v5239
    %5305 = vst.msk [vmem:[%s13 + $0xb0] sm:$0xff] %vm5282, %v5244
    %5306 = vst.msk [vmem:[%s13 + $0xb8] sm:$0xff] %vm5282, %v5247
    %5307 = vst.msk [vmem:[%s13 + $0xc0] sm:$0xff] %vm5282, %v5252
    %5308 = vst.msk [vmem:[%s13 + $0xc8] sm:$0xff] %vm5282, %v5255
    %5309 = vst.msk [vmem:[%s13 + $0xd0] sm:$0xff] %vm5282, %v5260
    %5310 = vst.msk [vmem:[%s13 + $0xd8] sm:$0xff] %vm5282, %v5263
    %5311 = vst.msk [vmem:[%s13 + $0xe0] sm:$0xff] %vm5282, %v5268
    %5312 = vst.msk [vmem:[%s13 + $0xe8] sm:$0xff] %vm5282, %v5271
    %5313 = vst.msk [vmem:[%s13 + $0xf0] sm:$0xff] %vm5282, %v5276
    %5314 = vst.msk [vmem:[%s13 + $0xf8] sm:$0xff] %vm5282, %v5279
    // Predicated region
    $region62: #{tpu_custom_call.1} parent=1 // pred_check
      _
    $region63: #{tpu_custom_call.1} parent=1 // pred_check_branch
      %5316 = sbr.rel (0) target = $region65
    $region64: #{tpu_custom_call.1} parent=1 // pred_region
      _
    $region65: #{tpu_custom_call.1} parent=1 // pred_fallthru
      _
    // Predicated region
    $region66: #{tpu_custom_call.1} parent=1 // pred_check
      _
    $region67: #{tpu_custom_call.1} parent=1 // pred_check_branch
      %5318 = sbr.rel (0) target = $region69
    $region68: #{tpu_custom_call.1} parent=1 // pred_region
      _
    $region69: #{tpu_custom_call.1} parent=1 // pred_fallthru
      _
    %5319 = vsyncpa [#allocation3], 1
    %5320 = vsyncpa [#allocation5], 1

</llo_original>
